<compile_context>
chip_gen: v7x
topology: tpu7x:2x2x1
jax: 0.10.0
libtpu: 0.0.40
codegen_flags: <defaults>
</compile_context>

<pallas_src>
import numpy as np

import jax
import jax.numpy as jnp
from jax import lax
from jax.experimental import pallas as pl
from jax.experimental.pallas import tpu as pltpu


# ---- stand-in for ai8x.dev constants (scaled down for a small synthetic test) ----
WEIGHT_INPUTS = 64
WEIGHT_DEPTH = 64

# ---- model hyper-parameters (small shapes, consistent with the module) ----
NUM_CLASSES = 10
NUM_CHANNELS = 3
DIMENSIONS = (16, 16)   # != 28, so conv2 padding = 1 (module picks 2 only for 28x28)
PLANES = 16
POOL = 2
FC_INPUTS = 8

assert PLANES + NUM_CHANNELS <= WEIGHT_INPUTS
assert PLANES + FC_INPUTS <= WEIGHT_DEPTH - 1
assert DIMENSIONS[0] == DIMENSIONS[1]

CONV3_OUT = WEIGHT_DEPTH - PLANES - FC_INPUTS   # 40
PAD2 = 2 if DIMENSIONS[0] == 28 else 1
assert PAD2 == 1, "fused kernel implements the pad=1 (non-28x28) configuration"

# ---- fused-kernel geometry ----
CPAD = 128

H1, W1 = DIMENSIONS                     # 16x16 conv1 output (dense layout)
H2, W2 = H1 // 2, W1 // 2               # 8x8   conv2 input (after maxpool)
H3, W3 = H2 // 2, W2 // 2               # 4x4   conv3 input (after maxpool)
H4, W4 = H3 // 2, W3 // 2               # 2x2   conv4 input (after avgpool)
WP2, WP3, WP4 = W2 + 2, W3 + 2, W4 + 2  # padded widths 10, 6, 4

NP1 = H1 * W1                           # 256 conv1 output rows (dense, no junk cols)
M2, M3, M4 = H2 * WP2, H3 * WP3, H4 * WP4   # 80, 24, 8 conv2/3/4 output rows

K0_LANES = 32                           # im2col lanes: 9 taps * 3 ch = 27 -> pad 32
K1, K2, K3 = NP1, M2, M3                # pool selection contraction lengths
R2, R3, R4 = 104, 40, 24                # conv2/3/4 padded-input scratch rows
S1R, S2R, S3R = 280, 96, 32             # conv1/2/3 output scratch rows (>= K+W+1, x8)


# ------------------------------ the fused Pallas kernel ------------------------------

def _ai85net6_kernel(x_ref, w1_ref, w2_ref, w3_ref, w4_ref, w5_ref,
                     sel1_ref, sel2_ref, sel3_ref, o_ref,
                     s1, p2, s2, p3, s3, p4, s4):
    f32 = jnp.float32
    bf16 = jnp.bfloat16

    # Zero the conv-output tail rows once per grid step: the shifted pool reads touch
    # them and 0 * junk in the selection matmul must stay finite.  (Not gated on
    # program_id: each core owns its scratch.)
    s1[pl.ds(NP1, S1R - NP1), :] = jnp.zeros((S1R - NP1, CPAD), f32)
    s2[pl.ds(M2, S2R - M2), :] = jnp.zeros((S2R - M2, CPAD), f32)
    s3[pl.ds(M3, S3R - M3), :] = jnp.zeros((S3R - M3, CPAD), f32)

    def act(v):                         # ReLU + ai8x clamp, in f32
        return jnp.clip(jnp.maximum(v, 0.0), -1.0, 1.0)

    def conv3x3(in_ref, w_ref, out_ref, h_out, wpad):
        # 3x3 "same" conv over the flat padded-row layout: 9 per-tap bf16
        # (M,128)@(128,128) MXU matmuls accumulated in f32 (clean chain -> MRB on v7x).
        m = h_out * wpad
        acc = jnp.zeros((m, CPAD), f32)
        for t in range(9):
            dy, dx = divmod(t, 3)
            a = in_ref[pl.ds(dy * wpad + dx, m), :]
            acc = acc + jnp.dot(a, w_ref[t], preferred_element_type=f32)
        out_ref[pl.ds(0, m), :] = act(acc)

    def pool2x2(in_ref, sel_ref, out_ref, row_stride, k, mode):
        # 2x2/stride-2 pool + clamp + write of the next layer's zero-padded bf16 input:
        # elementwise combine (f32) of 4 shifted windows, then one 0/1 bf16 selection
        # matmul that compacts stride-2 positions and lays out the padded border.
        a = in_ref[pl.ds(0, k), :]
        b = in_ref[pl.ds(1, k), :]
        c = in_ref[pl.ds(row_stride, k), :]
        d = in_ref[pl.ds(row_stride + 1, k), :]
        if mode == "max":
            comb = jnp.maximum(jnp.maximum(a, b), jnp.maximum(c, d))
        else:  # "avg"
            comb = (a + b + c + d) * 0.25
        pooled = jnp.dot(sel_ref[...], comb.astype(bf16), preferred_element_type=f32)
        out_ref[...] = jnp.clip(pooled, -1.0, 1.0).astype(bf16)

    nimg = x_ref.shape[0]               # batch block size (static)
    for bimg in range(nimg):
        # conv1: single im2col matmul, chunked over rows to keep the f32 result small.
        xcol = x_ref[bimg]                                   # (256, 32) bf16
        for ch in range(NP1 // 128):
            r = jnp.dot(xcol[ch * 128:(ch + 1) * 128, :], w1_ref[...],
                        preferred_element_type=f32)
            s1[pl.ds(ch * 128, 128), :] = act(r)
        pool2x2(s1, sel1_ref, p2, W1, K1, "max")             # dense layout: stride W1

        conv3x3(p2, w2_ref, s2, H2, WP2)
        pool2x2(s2, sel2_ref, p3, WP2, K2, "max")

        conv3x3(p3, w3_ref, s3, H3, WP3)
        pool2x2(s3, sel3_ref, p4, WP3, K3, "avg")

        conv3x3(p4, w4_ref, s4, H4, WP4)

        # conv5 ("FC"): 4 (1,128)@(128,128) bf16 matmuls over the valid conv4 rows
        # (flat rows 0,1,WP4,WP4+1 = spatial (0,0),(0,1),(1,0),(1,1)), then clamp.
        s4v = s4[...].astype(bf16)                           # (8, 128)
        acc = jnp.zeros((1, CPAD), f32)
        for pos, row in enumerate((0, 1, WP4, WP4 + 1)):
            acc = acc + jnp.dot(s4v[row:row + 1, :], w5_ref[pos],
                                preferred_element_type=f32)
        o_ref[bimg] = jnp.clip(acc, -1.0, 1.0)               # single (1,128) write


# ------------------------------ host-side one-time prep ------------------------------

def prep_weights(p):
    """Reorder PyTorch-layout conv weights into MXU-ready, lane-padded bf16 slabs."""
    def conv_taps(w):                                   # (Cout, Cin, 3, 3)
        cout, cin = int(w.shape[0]), int(w.shape[1])
        taps = jnp.transpose(w, (2, 3, 1, 0)).reshape(9, cin, cout)   # [t, cin, cout]
        buf = jnp.zeros((9, CPAD, CPAD), jnp.float32)
        return buf.at[:, :cin, :cout].set(taps).astype(jnp.bfloat16)

    wp = {k: conv_taps(p[k]) for k in ("w2", "w3", "w4")}

    # conv1 folded for im2col: row = tap*3 + cin, col = cout (27 real rows -> 32).
    w1 = jnp.transpose(p["w1"], (2, 3, 1, 0)).reshape(9 * NUM_CHANNELS, PLANES)
    w1b = jnp.zeros((K0_LANES, CPAD), jnp.float32)
    wp["w1"] = w1b.at[:9 * NUM_CHANNELS, :PLANES].set(w1).astype(jnp.bfloat16)

    # conv5 weight (num_classes, FC_INPUTS*H4*W4, 1, 1); NCHW flatten = c*4 + y*2 + x.
    w5m = p["w5"][:, :, 0, 0]                           # (num_classes, FC_INPUTS*4)
    w5p = jnp.zeros((4, CPAD, CPAD), jnp.float32)
    for pos in range(4):
        blk = w5m[:, pos::4].T                          # (FC_INPUTS, num_classes)
        w5p = w5p.at[pos, :FC_INPUTS, :NUM_CLASSES].set(blk)
    wp["w5"] = w5p.astype(jnp.bfloat16)
    return wp


def _make_pool_sel(h_in, w_in, src_stride, wp_out, rows_out, k):
    """0/1 bf16 matrix: (padded flat next-layer rows) x (pool-base flat source row)."""
    sel = np.zeros((rows_out, k), np.float32)
    for py in range(1, h_in // 2 + 1):
        for px in range(1, w_in // 2 + 1):
            src = 2 * (py - 1) * src_stride + 2 * (px - 1)
            sel[py * wp_out + px, src] = 1.0
    return jnp.asarray(sel).astype(jnp.bfloat16)        # 0/1 exact in bf16


def make_pool_sels():
    return (_make_pool_sel(H1, W1, W1, WP2, R2, K1),    # conv1 output is dense (stride 16)
            _make_pool_sel(H2, W2, WP2, WP3, R3, K2),
            _make_pool_sel(H3, W3, WP3, WP4, R4, K3))


def _prep_input(x_nchw):
    """NCHW image -> bf16 im2col for conv1: rows = 16x16 pixels, lanes = tap*3+cin."""
    n = x_nchw.shape[0]
    xp = jnp.pad(x_nchw.astype(jnp.float32), ((0, 0), (0, 0), (1, 1), (1, 1)))
    taps = [xp[:, :, dy:dy + H1, dx:dx + W1] for dy in range(3) for dx in range(3)]
    col = jnp.stack(taps, axis=1)                           # (n, 9, C, 16, 16)
    col = col.transpose(0, 3, 4, 1, 2).reshape(n, NP1, 9 * NUM_CHANNELS)
    col = jnp.pad(col, ((0, 0), (0, 0), (0, K0_LANES - 9 * NUM_CHANNELS)))
    return col.astype(jnp.bfloat16)                         # (n, 256, 32)


# ------------------------------ fused forward ------------------------------

def _batch_block(n):
    # Keep the grid length >= 2 whenever possible so both v7x TensorCores get work.
    if n >= 8:
        return 4
    if n >= 4:
        return 2
    return 1


def _fused_forward(x_col, wp, sels, bb):
    n_pad = x_col.shape[0]
    nb = n_pad // bb
    const3 = lambda i: (0, 0, 0)
    out = pl.pallas_call(
        _ai85net6_kernel,
        grid=(nb,),
        in_specs=[
            pl.BlockSpec((bb, NP1, K0_LANES), lambda i: (i, 0, 0)),  # im2col images
            pl.BlockSpec((K0_LANES, CPAD), lambda i: (0, 0)),        # conv1 folded slab
            pl.BlockSpec((9, CPAD, CPAD), const3),                   # conv2 taps
            pl.BlockSpec((9, CPAD, CPAD), const3),                   # conv3 taps
            pl.BlockSpec((9, CPAD, CPAD), const3),                   # conv4 taps
            pl.BlockSpec((4, CPAD, CPAD), const3),                   # conv5 / FC
            pl.BlockSpec((R2, K1), lambda i: (0, 0)),                # pool selection mats
            pl.BlockSpec((R3, K2), lambda i: (0, 0)),
            pl.BlockSpec((R4, K3), lambda i: (0, 0)),
        ],
        out_specs=pl.BlockSpec((bb, 1, CPAD), lambda i: (i, 0, 0)),
        out_shape=jax.ShapeDtypeStruct((n_pad, 1, CPAD), jnp.float32),
        scratch_shapes=[
            pltpu.VMEM((S1R, CPAD), jnp.float32),    # conv1 out (f32: pooling is VPU work)
            pltpu.VMEM((R2, CPAD), jnp.bfloat16),    # conv2 padded in (MXU LHS -> bf16)
            pltpu.VMEM((S2R, CPAD), jnp.float32),    # conv2 out
            pltpu.VMEM((R3, CPAD), jnp.bfloat16),    # conv3 padded in
            pltpu.VMEM((S3R, CPAD), jnp.float32),    # conv3 out
            pltpu.VMEM((R4, CPAD), jnp.bfloat16),    # conv4 padded in
            pltpu.VMEM((M4, CPAD), jnp.float32),     # conv4 out
        ],
        compiler_params=pltpu.CompilerParams(
            dimension_semantics=("parallel",),       # batch blocks across TCs on v7x
        ),
    )(x_col, wp["w1"], wp["w2"], wp["w3"], wp["w4"], wp["w5"], *sels)
    return out


@jax.jit
def ai85net6_forward(x_nchw, wp, sels):
    n = x_nchw.shape[0]
    x_col = _prep_input(x_nchw)
    bb = _batch_block(n)
    n_pad = -(-n // bb) * bb
    if n_pad != n:
        x_col = jnp.pad(x_col, ((0, n_pad - n), (0, 0), (0, 0)))
    out = _fused_forward(x_col, wp, sels, bb)
    return out[:n, 0, :NUM_CLASSES]


# ------------------------------ pure-JAX reference ------------------------------

def _conv3x3_ref(x, w, pad):
    wt = jnp.transpose(w, (2, 3, 1, 0))  # HWIO
    return lax.conv_general_dilated(x, wt, (1, 1), [(pad, pad), (pad, pad)],
                                    dimension_numbers=("NHWC", "HWIO", "NHWC"))


def reference_forward(x_nchw, p):
    act = lambda y: jnp.clip(jnp.maximum(y, 0.0), -1.0, 1.0)
    mp = lambda y: jnp.clip(lax.reduce_window(y, -jnp.inf, lax.max,
                                              (1, 2, 2, 1), (1, 2, 2, 1), "VALID"), -1.0, 1.0)
    ap = lambda y: jnp.clip(lax.reduce_window(y, 0.0, lax.add,
                                              (1, 2, 2, 1), (1, 2, 2, 1), "VALID") / 4.0, -1.0, 1.0)
    x = jnp.transpose(x_nchw, (0, 2, 3, 1)).astype(jnp.float32)
    x = act(_conv3x3_ref(x, p["w1"], 1))
    x = act(_conv3x3_ref(mp(x), p["w2"], PAD2))
    x = act(_conv3x3_ref(mp(x), p["w3"], 1))
    x = act(_conv3x3_ref(ap(x), p["w4"], 1))
    n = x.shape[0]
    x = jnp.transpose(x, (0, 3, 1, 2)).reshape(n, -1)
    return jnp.clip(x @ p["w5"][:, :, 0, 0].T, -1.0, 1.0)


# ------------------------------ parameters ------------------------------

def _kaiming_conv(key, cout, cin, kh, kw):
    # nn.init.kaiming_normal_(mode='fan_out', nonlinearity='relu')
    fan_out = cout * kh * kw
    std = (2.0 / fan_out) ** 0.5
    return std * jax.random.normal(key, (cout, cin, kh, kw), jnp.float32)


def init_params(key):
    dim = DIMENSIONS[0]
    k1, k2, k3, k4, k5 = jax.random.split(key, 5)
    p = {"w1": _kaiming_conv(k1, PLANES, NUM_CHANNELS, 3, 3)}
    p["w2"] = _kaiming_conv(k2, PLANES, PLANES, 3, 3)
    dim //= 2
    if PAD2 == 2:
        dim += 2
    p["w3"] = _kaiming_conv(k3, CONV3_OUT, PLANES, 3, 3)
    dim //= 2
    p["w4"] = _kaiming_conv(k4, FC_INPUTS, CONV3_OUT, 3, 3)
    dim //= POOL
    p["w5"] = _kaiming_conv(k5, NUM_CLASSES, FC_INPUTS * dim * dim, 1, 1)
    return p


# ------------------------------ main ------------------------------

if __name__ == "__main__":
    key = jax.random.PRNGKey(0)
    kx, kp = jax.random.split(key)
    x = jax.random.uniform(kx, (2, NUM_CHANNELS, DIMENSIONS[0], DIMENSIONS[1]),
                           jnp.float32, minval=-1.0, maxval=1.0)   # NCHW, ai8x-normalized
    params = init_params(kp)

    wp = prep_weights(params)        # one-time bf16 weight layout
    sels = make_pool_sels()          # constant bf16 pooling selection matrices

    out = ai85net6_forward(x, wp, sels)
    jax.block_until_ready(out)

    ref = reference_forward(x, params)
    assert out.shape == (2, NUM_CLASSES)
    # bf16 MXU operands (f32 accumulation) vs the f32 reference -> relaxed tolerance.
    if not bool(jnp.allclose(out, ref, atol=5e-2, rtol=5e-2)):
        raise SystemExit("MISMATCH between Pallas kernel and JAX reference")
    print("KERNEL_OK")
</pallas_src>

<mosaic_0001>
module attributes {stable_mosaic.version = 11 : i64} {
  func.func @_ai85net6_kernel(%arg0: i32, %arg1: memref<1x256x32xbf16, #tpu.memory_space<vmem>>, %arg2: memref<32x128xbf16, #tpu.memory_space<vmem>>, %arg3: memref<9x128x128xbf16, #tpu.memory_space<vmem>>, %arg4: memref<9x128x128xbf16, #tpu.memory_space<vmem>>, %arg5: memref<9x128x128xbf16, #tpu.memory_space<vmem>>, %arg6: memref<4x128x128xbf16, #tpu.memory_space<vmem>>, %arg7: memref<104x256xbf16, #tpu.memory_space<vmem>>, %arg8: memref<40x80xbf16, #tpu.memory_space<vmem>>, %arg9: memref<24x24xbf16, #tpu.memory_space<vmem>>, %arg10: memref<1x1x128xf32, #tpu.memory_space<vmem>>, %arg11: memref<280x128xf32, #tpu.memory_space<vmem>>, %arg12: memref<104x128xbf16, #tpu.memory_space<vmem>>, %arg13: memref<96x128xf32, #tpu.memory_space<vmem>>, %arg14: memref<40x128xbf16, #tpu.memory_space<vmem>>, %arg15: memref<32x128xf32, #tpu.memory_space<vmem>>, %arg16: memref<24x128xbf16, #tpu.memory_space<vmem>>, %arg17: memref<8x128xf32, #tpu.memory_space<vmem>>) attributes {dimension_semantics = [#tpu.dimension_semantics<parallel>], iteration_bounds = array<i64: 2>, scalar_prefetch = 0 : i64, scratch_operands = 7 : i64, tpu.core_type = #tpu.core_type<tc>, window_params = [{transform_indices = @transform_0, window_bounds = array<i64: 1, 256, 32>}, {pipeline_mode = #tpu.pipeline_mode<synchronous>, transform_indices = @transform_1, window_bounds = array<i64: 32, 128>}, {pipeline_mode = #tpu.pipeline_mode<synchronous>, transform_indices = @transform_2, window_bounds = array<i64: 9, 128, 128>}, {pipeline_mode = #tpu.pipeline_mode<synchronous>, transform_indices = @transform_3, window_bounds = array<i64: 9, 128, 128>}, {pipeline_mode = #tpu.pipeline_mode<synchronous>, transform_indices = @transform_4, window_bounds = array<i64: 9, 128, 128>}, {pipeline_mode = #tpu.pipeline_mode<synchronous>, transform_indices = @transform_5, window_bounds = array<i64: 4, 128, 128>}, {pipeline_mode = #tpu.pipeline_mode<synchronous>, transform_indices = @transform_6, window_bounds = array<i64: 104, 256>}, {pipeline_mode = #tpu.pipeline_mode<synchronous>, transform_indices = @transform_7, window_bounds = array<i64: 40, 80>}, {pipeline_mode = #tpu.pipeline_mode<synchronous>, transform_indices = @transform_8, window_bounds = array<i64: 24, 24>}, {transform_indices = @transform_9, window_bounds = array<i64: 1, 1, 128>}]} {
    %cst = arith.constant 0.000000e+00 : f32
    %0 = vector.broadcast %cst : f32 to vector<24x128xf32>
    %c256 = arith.constant 256 : index
    %c0 = arith.constant 0 : index
    %1 = vector.load %arg11[%c256, %c0] : memref<280x128xf32, #tpu.memory_space<vmem>>, vector<24x128xf32>
    tpu.vector_store %arg11[%c256, %c0], %0 {strides = array<i32>} : memref<280x128xf32, #tpu.memory_space<vmem>>, vector<24x128xf32>,
    %cst_0 = arith.constant 0.000000e+00 : f32
    %2 = vector.broadcast %cst_0 : f32 to vector<16x128xf32>
    %c80 = arith.constant 80 : index
    %c0_1 = arith.constant 0 : index
    %3 = vector.load %arg13[%c80, %c0_1] : memref<96x128xf32, #tpu.memory_space<vmem>>, vector<16x128xf32>
    tpu.vector_store %arg13[%c80, %c0_1], %2 {strides = array<i32>} : memref<96x128xf32, #tpu.memory_space<vmem>>, vector<16x128xf32>,
    %cst_2 = arith.constant 0.000000e+00 : f32
    %4 = vector.broadcast %cst_2 : f32 to vector<8x128xf32>
    %c24 = arith.constant 24 : index
    %c0_3 = arith.constant 0 : index
    %5 = vector.load %arg15[%c24, %c0_3] : memref<32x128xf32, #tpu.memory_space<vmem>>, vector<8x128xf32>
    tpu.vector_store %arg15[%c24, %c0_3], %4 {strides = array<i32>} : memref<32x128xf32, #tpu.memory_space<vmem>>, vector<8x128xf32>,
    %c0_4 = arith.constant 0 : index
    %c0_5 = arith.constant 0 : index
    %c0_6 = arith.constant 0 : index
    %6 = vector.load %arg1[%c0_4, %c0_5, %c0_6] : memref<1x256x32xbf16, #tpu.memory_space<vmem>>, vector<1x256x32xbf16>
    %7 = vector.shape_cast %6 : vector<1x256x32xbf16> to vector<256x32xbf16>
    %8 = vector.extract_strided_slice %7 {offsets = [0, 0], sizes = [128, 32], strides = [1, 1]} : vector<256x32xbf16> to vector<128x32xbf16>
    %c0_7 = arith.constant 0 : index
    %c0_8 = arith.constant 0 : index
    %9 = vector.load %arg2[%c0_7, %c0_8] : memref<32x128xbf16, #tpu.memory_space<vmem>>, vector<32x128xbf16>
    %cst_9 = arith.constant dense<0.000000e+00> : vector<128x128xf32>
    %10 = tpu.matmul %8, %9, %cst_9 {dimension_numbers = #tpu.dot_dimension_numbers<[1], [0], [0], [1], [0, 0, 1, 1], [], []>} : vector<128x32xbf16>, vector<32x128xbf16>, vector<128x128xf32> -> vector<128x128xf32>
    %cst_10 = arith.constant 0.000000e+00 : f32
    %11 = vector.broadcast %cst_10 : f32 to vector<128x128xf32>
    %12 = arith.maximumf %10, %11 : vector<128x128xf32>
    %cst_11 = arith.constant -1.000000e+00 : f32
    %cst_12 = arith.constant 1.000000e+00 : f32
    %13 = vector.broadcast %cst_11 : f32 to vector<128x128xf32>
    %14 = arith.maximumf %13, %12 : vector<128x128xf32>
    %15 = vector.broadcast %cst_12 : f32 to vector<128x128xf32>
    %16 = arith.minimumf %15, %14 : vector<128x128xf32>
    %c0_13 = arith.constant 0 : index
    %c0_14 = arith.constant 0 : index
    %17 = vector.load %arg11[%c0_13, %c0_14] : memref<280x128xf32, #tpu.memory_space<vmem>>, vector<128x128xf32>
    tpu.vector_store %arg11[%c0_13, %c0_14], %16 {strides = array<i32>} : memref<280x128xf32, #tpu.memory_space<vmem>>, vector<128x128xf32>,
    %18 = vector.extract_strided_slice %7 {offsets = [128, 0], sizes = [128, 32], strides = [1, 1]} : vector<256x32xbf16> to vector<128x32xbf16>
    %c0_15 = arith.constant 0 : index
    %c0_16 = arith.constant 0 : index
    %19 = vector.load %arg2[%c0_15, %c0_16] : memref<32x128xbf16, #tpu.memory_space<vmem>>, vector<32x128xbf16>
    %cst_17 = arith.constant dense<0.000000e+00> : vector<128x128xf32>
    %20 = tpu.matmul %18, %19, %cst_17 {dimension_numbers = #tpu.dot_dimension_numbers<[1], [0], [0], [1], [0, 0, 1, 1], [], []>} : vector<128x32xbf16>, vector<32x128xbf16>, vector<128x128xf32> -> vector<128x128xf32>
    %cst_18 = arith.constant 0.000000e+00 : f32
    %21 = vector.broadcast %cst_18 : f32 to vector<128x128xf32>
    %22 = arith.maximumf %20, %21 : vector<128x128xf32>
    %cst_19 = arith.constant -1.000000e+00 : f32
    %cst_20 = arith.constant 1.000000e+00 : f32
    %23 = vector.broadcast %cst_19 : f32 to vector<128x128xf32>
    %24 = arith.maximumf %23, %22 : vector<128x128xf32>
    %25 = vector.broadcast %cst_20 : f32 to vector<128x128xf32>
    %26 = arith.minimumf %25, %24 : vector<128x128xf32>
    %c128 = arith.constant 128 : index
    %c0_21 = arith.constant 0 : index
    %27 = vector.load %arg11[%c128, %c0_21] : memref<280x128xf32, #tpu.memory_space<vmem>>, vector<128x128xf32>
    tpu.vector_store %arg11[%c128, %c0_21], %26 {strides = array<i32>} : memref<280x128xf32, #tpu.memory_space<vmem>>, vector<128x128xf32>,
    %c0_22 = arith.constant 0 : index
    %c0_23 = arith.constant 0 : index
    %28 = vector.load %arg11[%c0_22, %c0_23] : memref<280x128xf32, #tpu.memory_space<vmem>>, vector<256x128xf32>
    %c1 = arith.constant 1 : index
    %c0_24 = arith.constant 0 : index
    %29 = vector.load %arg11[%c1, %c0_24] : memref<280x128xf32, #tpu.memory_space<vmem>>, vector<256x128xf32>
    %c16 = arith.constant 16 : index
    %c0_25 = arith.constant 0 : index
    %30 = vector.load %arg11[%c16, %c0_25] : memref<280x128xf32, #tpu.memory_space<vmem>>, vector<256x128xf32>
    %c17 = arith.constant 17 : index
    %c0_26 = arith.constant 0 : index
    %31 = vector.load %arg11[%c17, %c0_26] : memref<280x128xf32, #tpu.memory_space<vmem>>, vector<256x128xf32>
    %32 = arith.maximumf %28, %29 : vector<256x128xf32>
    %33 = arith.maximumf %30, %31 : vector<256x128xf32>
    %34 = arith.maximumf %32, %33 : vector<256x128xf32>
    %c0_27 = arith.constant 0 : index
    %c0_28 = arith.constant 0 : index
    %35 = vector.load %arg7[%c0_27, %c0_28] : memref<104x256xbf16, #tpu.memory_space<vmem>>, vector<104x256xbf16>
    %36 = arith.truncf %34 : vector<256x128xf32> to vector<256x128xbf16>
    %cst_29 = arith.constant dense<0.000000e+00> : vector<104x128xf32>
    %37 = tpu.matmul %35, %36, %cst_29 {dimension_numbers = #tpu.dot_dimension_numbers<[1], [0], [0], [1], [0, 0, 1, 1], [], []>} : vector<104x256xbf16>, vector<256x128xbf16>, vector<104x128xf32> -> vector<104x128xf32>
    %cst_30 = arith.constant -1.000000e+00 : f32
    %cst_31 = arith.constant 1.000000e+00 : f32
    %38 = vector.broadcast %cst_30 : f32 to vector<104x128xf32>
    %39 = arith.maximumf %38, %37 : vector<104x128xf32>
    %40 = vector.broadcast %cst_31 : f32 to vector<104x128xf32>
    %41 = arith.minimumf %40, %39 : vector<104x128xf32>
    %42 = arith.truncf %41 : vector<104x128xf32> to vector<104x128xbf16>
    %c0_32 = arith.constant 0 : index
    %c0_33 = arith.constant 0 : index
    %43 = vector.load %arg12[%c0_32, %c0_33] : memref<104x128xbf16, #tpu.memory_space<vmem>>, vector<104x128xbf16>
    tpu.vector_store %arg12[%c0_32, %c0_33], %42 {strides = array<i32>} : memref<104x128xbf16, #tpu.memory_space<vmem>>, vector<104x128xbf16>,
    %cst_34 = arith.constant 0.000000e+00 : f32
    %44 = vector.broadcast %cst_34 : f32 to vector<80x128xf32>
    %c0_35 = arith.constant 0 : index
    %c0_36 = arith.constant 0 : index
    %45 = vector.load %arg12[%c0_35, %c0_36] : memref<104x128xbf16, #tpu.memory_space<vmem>>, vector<80x128xbf16>
    %c0_37 = arith.constant 0 : index
    %c0_38 = arith.constant 0 : index
    %c0_39 = arith.constant 0 : index
    %46 = vector.load %arg3[%c0_37, %c0_38, %c0_39] : memref<9x128x128xbf16, #tpu.memory_space<vmem>>, vector<1x128x128xbf16>
    %47 = vector.shape_cast %46 : vector<1x128x128xbf16> to vector<128x128xbf16>
    %cst_40 = arith.constant dense<0.000000e+00> : vector<80x128xf32>
    %48 = tpu.matmul %45, %47, %cst_40 {dimension_numbers = #tpu.dot_dimension_numbers<[1], [0], [0], [1], [0, 0, 1, 1], [], []>} : vector<80x128xbf16>, vector<128x128xbf16>, vector<80x128xf32> -> vector<80x128xf32>
    %49 = arith.addf %44, %48 : vector<80x128xf32>
    %c1_41 = arith.constant 1 : index
    %c0_42 = arith.constant 0 : index
    %50 = vector.load %arg12[%c1_41, %c0_42] : memref<104x128xbf16, #tpu.memory_space<vmem>>, vector<80x128xbf16>
    %c1_43 = arith.constant 1 : index
    %c0_44 = arith.constant 0 : index
    %c0_45 = arith.constant 0 : index
    %51 = vector.load %arg3[%c1_43, %c0_44, %c0_45] : memref<9x128x128xbf16, #tpu.memory_space<vmem>>, vector<1x128x128xbf16>
    %52 = vector.shape_cast %51 : vector<1x128x128xbf16> to vector<128x128xbf16>
    %cst_46 = arith.constant dense<0.000000e+00> : vector<80x128xf32>
    %53 = tpu.matmul %50, %52, %cst_46 {dimension_numbers = #tpu.dot_dimension_numbers<[1], [0], [0], [1], [0, 0, 1, 1], [], []>} : vector<80x128xbf16>, vector<128x128xbf16>, vector<80x128xf32> -> vector<80x128xf32>
    %54 = arith.addf %49, %53 : vector<80x128xf32>
    %c2 = arith.constant 2 : index
    %c0_47 = arith.constant 0 : index
    %55 = vector.load %arg12[%c2, %c0_47] : memref<104x128xbf16, #tpu.memory_space<vmem>>, vector<80x128xbf16>
    %c2_48 = arith.constant 2 : index
    %c0_49 = arith.constant 0 : index
    %c0_50 = arith.constant 0 : index
    %56 = vector.load %arg3[%c2_48, %c0_49, %c0_50] : memref<9x128x128xbf16, #tpu.memory_space<vmem>>, vector<1x128x128xbf16>
    %57 = vector.shape_cast %56 : vector<1x128x128xbf16> to vector<128x128xbf16>
    %cst_51 = arith.constant dense<0.000000e+00> : vector<80x128xf32>
    %58 = tpu.matmul %55, %57, %cst_51 {dimension_numbers = #tpu.dot_dimension_numbers<[1], [0], [0], [1], [0, 0, 1, 1], [], []>} : vector<80x128xbf16>, vector<128x128xbf16>, vector<80x128xf32> -> vector<80x128xf32>
    %59 = arith.addf %54, %58 : vector<80x128xf32>
    %c10 = arith.constant 10 : index
    %c0_52 = arith.constant 0 : index
    %60 = vector.load %arg12[%c10, %c0_52] : memref<104x128xbf16, #tpu.memory_space<vmem>>, vector<80x128xbf16>
    %c3 = arith.constant 3 : index
    %c0_53 = arith.constant 0 : index
    %c0_54 = arith.constant 0 : index
    %61 = vector.load %arg3[%c3, %c0_53, %c0_54] : memref<9x128x128xbf16, #tpu.memory_space<vmem>>, vector<1x128x128xbf16>
    %62 = vector.shape_cast %61 : vector<1x128x128xbf16> to vector<128x128xbf16>
    %cst_55 = arith.constant dense<0.000000e+00> : vector<80x128xf32>
    %63 = tpu.matmul %60, %62, %cst_55 {dimension_numbers = #tpu.dot_dimension_numbers<[1], [0], [0], [1], [0, 0, 1, 1], [], []>} : vector<80x128xbf16>, vector<128x128xbf16>, vector<80x128xf32> -> vector<80x128xf32>
    %64 = arith.addf %59, %63 : vector<80x128xf32>
    %c11 = arith.constant 11 : index
    %c0_56 = arith.constant 0 : index
    %65 = vector.load %arg12[%c11, %c0_56] : memref<104x128xbf16, #tpu.memory_space<vmem>>, vector<80x128xbf16>
    %c4 = arith.constant 4 : index
    %c0_57 = arith.constant 0 : index
    %c0_58 = arith.constant 0 : index
    %66 = vector.load %arg3[%c4, %c0_57, %c0_58] : memref<9x128x128xbf16, #tpu.memory_space<vmem>>, vector<1x128x128xbf16>
    %67 = vector.shape_cast %66 : vector<1x128x128xbf16> to vector<128x128xbf16>
    %cst_59 = arith.constant dense<0.000000e+00> : vector<80x128xf32>
    %68 = tpu.matmul %65, %67, %cst_59 {dimension_numbers = #tpu.dot_dimension_numbers<[1], [0], [0], [1], [0, 0, 1, 1], [], []>} : vector<80x128xbf16>, vector<128x128xbf16>, vector<80x128xf32> -> vector<80x128xf32>
    %69 = arith.addf %64, %68 : vector<80x128xf32>
    %c12 = arith.constant 12 : index
    %c0_60 = arith.constant 0 : index
    %70 = vector.load %arg12[%c12, %c0_60] : memref<104x128xbf16, #tpu.memory_space<vmem>>, vector<80x128xbf16>
    %c5 = arith.constant 5 : index
    %c0_61 = arith.constant 0 : index
    %c0_62 = arith.constant 0 : index
    %71 = vector.load %arg3[%c5, %c0_61, %c0_62] : memref<9x128x128xbf16, #tpu.memory_space<vmem>>, vector<1x128x128xbf16>
    %72 = vector.shape_cast %71 : vector<1x128x128xbf16> to vector<128x128xbf16>
    %cst_63 = arith.constant dense<0.000000e+00> : vector<80x128xf32>
    %73 = tpu.matmul %70, %72, %cst_63 {dimension_numbers = #tpu.dot_dimension_numbers<[1], [0], [0], [1], [0, 0, 1, 1], [], []>} : vector<80x128xbf16>, vector<128x128xbf16>, vector<80x128xf32> -> vector<80x128xf32>
    %74 = arith.addf %69, %73 : vector<80x128xf32>
    %c20 = arith.constant 20 : index
    %c0_64 = arith.constant 0 : index
    %75 = vector.load %arg12[%c20, %c0_64] : memref<104x128xbf16, #tpu.memory_space<vmem>>, vector<80x128xbf16>
    %c6 = arith.constant 6 : index
    %c0_65 = arith.constant 0 : index
    %c0_66 = arith.constant 0 : index
    %76 = vector.load %arg3[%c6, %c0_65, %c0_66] : memref<9x128x128xbf16, #tpu.memory_space<vmem>>, vector<1x128x128xbf16>
    %77 = vector.shape_cast %76 : vector<1x128x128xbf16> to vector<128x128xbf16>
    %cst_67 = arith.constant dense<0.000000e+00> : vector<80x128xf32>
    %78 = tpu.matmul %75, %77, %cst_67 {dimension_numbers = #tpu.dot_dimension_numbers<[1], [0], [0], [1], [0, 0, 1, 1], [], []>} : vector<80x128xbf16>, vector<128x128xbf16>, vector<80x128xf32> -> vector<80x128xf32>
    %79 = arith.addf %74, %78 : vector<80x128xf32>
    %c21 = arith.constant 21 : index
    %c0_68 = arith.constant 0 : index
    %80 = vector.load %arg12[%c21, %c0_68] : memref<104x128xbf16, #tpu.memory_space<vmem>>, vector<80x128xbf16>
    %c7 = arith.constant 7 : index
    %c0_69 = arith.constant 0 : index
    %c0_70 = arith.constant 0 : index
    %81 = vector.load %arg3[%c7, %c0_69, %c0_70] : memref<9x128x128xbf16, #tpu.memory_space<vmem>>, vector<1x128x128xbf16>
    %82 = vector.shape_cast %81 : vector<1x128x128xbf16> to vector<128x128xbf16>
    %cst_71 = arith.constant dense<0.000000e+00> : vector<80x128xf32>
    %83 = tpu.matmul %80, %82, %cst_71 {dimension_numbers = #tpu.dot_dimension_numbers<[1], [0], [0], [1], [0, 0, 1, 1], [], []>} : vector<80x128xbf16>, vector<128x128xbf16>, vector<80x128xf32> -> vector<80x128xf32>
    %84 = arith.addf %79, %83 : vector<80x128xf32>
    %c22 = arith.constant 22 : index
    %c0_72 = arith.constant 0 : index
    %85 = vector.load %arg12[%c22, %c0_72] : memref<104x128xbf16, #tpu.memory_space<vmem>>, vector<80x128xbf16>
    %c8 = arith.constant 8 : index
    %c0_73 = arith.constant 0 : index
    %c0_74 = arith.constant 0 : index
    %86 = vector.load %arg3[%c8, %c0_73, %c0_74] : memref<9x128x128xbf16, #tpu.memory_space<vmem>>, vector<1x128x128xbf16>
    %87 = vector.shape_cast %86 : vector<1x128x128xbf16> to vector<128x128xbf16>
    %cst_75 = arith.constant dense<0.000000e+00> : vector<80x128xf32>
    %88 = tpu.matmul %85, %87, %cst_75 {dimension_numbers = #tpu.dot_dimension_numbers<[1], [0], [0], [1], [0, 0, 1, 1], [], []>} : vector<80x128xbf16>, vector<128x128xbf16>, vector<80x128xf32> -> vector<80x128xf32>
    %89 = arith.addf %84, %88 : vector<80x128xf32>
    %cst_76 = arith.constant 0.000000e+00 : f32
    %90 = vector.broadcast %cst_76 : f32 to vector<80x128xf32>
    %91 = arith.maximumf %89, %90 : vector<80x128xf32>
    %cst_77 = arith.constant -1.000000e+00 : f32
    %cst_78 = arith.constant 1.000000e+00 : f32
    %92 = vector.broadcast %cst_77 : f32 to vector<80x128xf32>
    %93 = arith.maximumf %92, %91 : vector<80x128xf32>
    %94 = vector.broadcast %cst_78 : f32 to vector<80x128xf32>
    %95 = arith.minimumf %94, %93 : vector<80x128xf32>
    %c0_79 = arith.constant 0 : index
    %c0_80 = arith.constant 0 : index
    %96 = vector.load %arg13[%c0_79, %c0_80] : memref<96x128xf32, #tpu.memory_space<vmem>>, vector<80x128xf32>
    tpu.vector_store %arg13[%c0_79, %c0_80], %95 {strides = array<i32>} : memref<96x128xf32, #tpu.memory_space<vmem>>, vector<80x128xf32>,
    %c0_81 = arith.constant 0 : index
    %c0_82 = arith.constant 0 : index
    %97 = vector.load %arg13[%c0_81, %c0_82] : memref<96x128xf32, #tpu.memory_space<vmem>>, vector<80x128xf32>
    %c1_83 = arith.constant 1 : index
    %c0_84 = arith.constant 0 : index
    %98 = vector.load %arg13[%c1_83, %c0_84] : memref<96x128xf32, #tpu.memory_space<vmem>>, vector<80x128xf32>
    %c10_85 = arith.constant 10 : index
    %c0_86 = arith.constant 0 : index
    %99 = vector.load %arg13[%c10_85, %c0_86] : memref<96x128xf32, #tpu.memory_space<vmem>>, vector<80x128xf32>
    %c11_87 = arith.constant 11 : index
    %c0_88 = arith.constant 0 : index
    %100 = vector.load %arg13[%c11_87, %c0_88] : memref<96x128xf32, #tpu.memory_space<vmem>>, vector<80x128xf32>
    %101 = arith.maximumf %97, %98 : vector<80x128xf32>
    %102 = arith.maximumf %99, %100 : vector<80x128xf32>
    %103 = arith.maximumf %101, %102 : vector<80x128xf32>
    %c0_89 = arith.constant 0 : index
    %c0_90 = arith.constant 0 : index
    %104 = vector.load %arg8[%c0_89, %c0_90] : memref<40x80xbf16, #tpu.memory_space<vmem>>, vector<40x80xbf16>
    %105 = arith.truncf %103 : vector<80x128xf32> to vector<80x128xbf16>
    %cst_91 = arith.constant dense<0.000000e+00> : vector<40x128xf32>
    %106 = tpu.matmul %104, %105, %cst_91 {dimension_numbers = #tpu.dot_dimension_numbers<[1], [0], [0], [1], [0, 0, 1, 1], [], []>} : vector<40x80xbf16>, vector<80x128xbf16>, vector<40x128xf32> -> vector<40x128xf32>
    %cst_92 = arith.constant -1.000000e+00 : f32
    %cst_93 = arith.constant 1.000000e+00 : f32
    %107 = vector.broadcast %cst_92 : f32 to vector<40x128xf32>
    %108 = arith.maximumf %107, %106 : vector<40x128xf32>
    %109 = vector.broadcast %cst_93 : f32 to vector<40x128xf32>
    %110 = arith.minimumf %109, %108 : vector<40x128xf32>
    %111 = arith.truncf %110 : vector<40x128xf32> to vector<40x128xbf16>
    %c0_94 = arith.constant 0 : index
    %c0_95 = arith.constant 0 : index
    %112 = vector.load %arg14[%c0_94, %c0_95] : memref<40x128xbf16, #tpu.memory_space<vmem>>, vector<40x128xbf16>
    tpu.vector_store %arg14[%c0_94, %c0_95], %111 {strides = array<i32>} : memref<40x128xbf16, #tpu.memory_space<vmem>>, vector<40x128xbf16>,
    %cst_96 = arith.constant 0.000000e+00 : f32
    %113 = vector.broadcast %cst_96 : f32 to vector<24x128xf32>
    %c0_97 = arith.constant 0 : index
    %c0_98 = arith.constant 0 : index
    %114 = vector.load %arg14[%c0_97, %c0_98] : memref<40x128xbf16, #tpu.memory_space<vmem>>, vector<24x128xbf16>
    %c0_99 = arith.constant 0 : index
    %c0_100 = arith.constant 0 : index
    %c0_101 = arith.constant 0 : index
    %115 = vector.load %arg4[%c0_99, %c0_100, %c0_101] : memref<9x128x128xbf16, #tpu.memory_space<vmem>>, vector<1x128x128xbf16>
    %116 = vector.shape_cast %115 : vector<1x128x128xbf16> to vector<128x128xbf16>
    %cst_102 = arith.constant dense<0.000000e+00> : vector<24x128xf32>
    %117 = tpu.matmul %114, %116, %cst_102 {dimension_numbers = #tpu.dot_dimension_numbers<[1], [0], [0], [1], [0, 0, 1, 1], [], []>} : vector<24x128xbf16>, vector<128x128xbf16>, vector<24x128xf32> -> vector<24x128xf32>
    %118 = arith.addf %113, %117 : vector<24x128xf32>
    %c1_103 = arith.constant 1 : index
    %c0_104 = arith.constant 0 : index
    %119 = vector.load %arg14[%c1_103, %c0_104] : memref<40x128xbf16, #tpu.memory_space<vmem>>, vector<24x128xbf16>
    %c1_105 = arith.constant 1 : index
    %c0_106 = arith.constant 0 : index
    %c0_107 = arith.constant 0 : index
    %120 = vector.load %arg4[%c1_105, %c0_106, %c0_107] : memref<9x128x128xbf16, #tpu.memory_space<vmem>>, vector<1x128x128xbf16>
    %121 = vector.shape_cast %120 : vector<1x128x128xbf16> to vector<128x128xbf16>
    %cst_108 = arith.constant dense<0.000000e+00> : vector<24x128xf32>
    %122 = tpu.matmul %119, %121, %cst_108 {dimension_numbers = #tpu.dot_dimension_numbers<[1], [0], [0], [1], [0, 0, 1, 1], [], []>} : vector<24x128xbf16>, vector<128x128xbf16>, vector<24x128xf32> -> vector<24x128xf32>
    %123 = arith.addf %118, %122 : vector<24x128xf32>
    %c2_109 = arith.constant 2 : index
    %c0_110 = arith.constant 0 : index
    %124 = vector.load %arg14[%c2_109, %c0_110] : memref<40x128xbf16, #tpu.memory_space<vmem>>, vector<24x128xbf16>
    %c2_111 = arith.constant 2 : index
    %c0_112 = arith.constant 0 : index
    %c0_113 = arith.constant 0 : index
    %125 = vector.load %arg4[%c2_111, %c0_112, %c0_113] : memref<9x128x128xbf16, #tpu.memory_space<vmem>>, vector<1x128x128xbf16>
    %126 = vector.shape_cast %125 : vector<1x128x128xbf16> to vector<128x128xbf16>
    %cst_114 = arith.constant dense<0.000000e+00> : vector<24x128xf32>
    %127 = tpu.matmul %124, %126, %cst_114 {dimension_numbers = #tpu.dot_dimension_numbers<[1], [0], [0], [1], [0, 0, 1, 1], [], []>} : vector<24x128xbf16>, vector<128x128xbf16>, vector<24x128xf32> -> vector<24x128xf32>
    %128 = arith.addf %123, %127 : vector<24x128xf32>
    %c6_115 = arith.constant 6 : index
    %c0_116 = arith.constant 0 : index
    %129 = vector.load %arg14[%c6_115, %c0_116] : memref<40x128xbf16, #tpu.memory_space<vmem>>, vector<24x128xbf16>
    %c3_117 = arith.constant 3 : index
    %c0_118 = arith.constant 0 : index
    %c0_119 = arith.constant 0 : index
    %130 = vector.load %arg4[%c3_117, %c0_118, %c0_119] : memref<9x128x128xbf16, #tpu.memory_space<vmem>>, vector<1x128x128xbf16>
    %131 = vector.shape_cast %130 : vector<1x128x128xbf16> to vector<128x128xbf16>
    %cst_120 = arith.constant dense<0.000000e+00> : vector<24x128xf32>
    %132 = tpu.matmul %129, %131, %cst_120 {dimension_numbers = #tpu.dot_dimension_numbers<[1], [0], [0], [1], [0, 0, 1, 1], [], []>} : vector<24x128xbf16>, vector<128x128xbf16>, vector<24x128xf32> -> vector<24x128xf32>
    %133 = arith.addf %128, %132 : vector<24x128xf32>
    %c7_121 = arith.constant 7 : index
    %c0_122 = arith.constant 0 : index
    %134 = vector.load %arg14[%c7_121, %c0_122] : memref<40x128xbf16, #tpu.memory_space<vmem>>, vector<24x128xbf16>
    %c4_123 = arith.constant 4 : index
    %c0_124 = arith.constant 0 : index
    %c0_125 = arith.constant 0 : index
    %135 = vector.load %arg4[%c4_123, %c0_124, %c0_125] : memref<9x128x128xbf16, #tpu.memory_space<vmem>>, vector<1x128x128xbf16>
    %136 = vector.shape_cast %135 : vector<1x128x128xbf16> to vector<128x128xbf16>
    %cst_126 = arith.constant dense<0.000000e+00> : vector<24x128xf32>
    %137 = tpu.matmul %134, %136, %cst_126 {dimension_numbers = #tpu.dot_dimension_numbers<[1], [0], [0], [1], [0, 0, 1, 1], [], []>} : vector<24x128xbf16>, vector<128x128xbf16>, vector<24x128xf32> -> vector<24x128xf32>
    %138 = arith.addf %133, %137 : vector<24x128xf32>
    %c8_127 = arith.constant 8 : index
    %c0_128 = arith.constant 0 : index
    %139 = vector.load %arg14[%c8_127, %c0_128] : memref<40x128xbf16, #tpu.memory_space<vmem>>, vector<24x128xbf16>
    %c5_129 = arith.constant 5 : index
    %c0_130 = arith.constant 0 : index
    %c0_131 = arith.constant 0 : index
    %140 = vector.load %arg4[%c5_129, %c0_130, %c0_131] : memref<9x128x128xbf16, #tpu.memory_space<vmem>>, vector<1x128x128xbf16>
    %141 = vector.shape_cast %140 : vector<1x128x128xbf16> to vector<128x128xbf16>
    %cst_132 = arith.constant dense<0.000000e+00> : vector<24x128xf32>
    %142 = tpu.matmul %139, %141, %cst_132 {dimension_numbers = #tpu.dot_dimension_numbers<[1], [0], [0], [1], [0, 0, 1, 1], [], []>} : vector<24x128xbf16>, vector<128x128xbf16>, vector<24x128xf32> -> vector<24x128xf32>
    %143 = arith.addf %138, %142 : vector<24x128xf32>
    %c12_133 = arith.constant 12 : index
    %c0_134 = arith.constant 0 : index
    %144 = vector.load %arg14[%c12_133, %c0_134] : memref<40x128xbf16, #tpu.memory_space<vmem>>, vector<24x128xbf16>
    %c6_135 = arith.constant 6 : index
    %c0_136 = arith.constant 0 : index
    %c0_137 = arith.constant 0 : index
    %145 = vector.load %arg4[%c6_135, %c0_136, %c0_137] : memref<9x128x128xbf16, #tpu.memory_space<vmem>>, vector<1x128x128xbf16>
    %146 = vector.shape_cast %145 : vector<1x128x128xbf16> to vector<128x128xbf16>
    %cst_138 = arith.constant dense<0.000000e+00> : vector<24x128xf32>
    %147 = tpu.matmul %144, %146, %cst_138 {dimension_numbers = #tpu.dot_dimension_numbers<[1], [0], [0], [1], [0, 0, 1, 1], [], []>} : vector<24x128xbf16>, vector<128x128xbf16>, vector<24x128xf32> -> vector<24x128xf32>
    %148 = arith.addf %143, %147 : vector<24x128xf32>
    %c13 = arith.constant 13 : index
    %c0_139 = arith.constant 0 : index
    %149 = vector.load %arg14[%c13, %c0_139] : memref<40x128xbf16, #tpu.memory_space<vmem>>, vector<24x128xbf16>
    %c7_140 = arith.constant 7 : index
    %c0_141 = arith.constant 0 : index
    %c0_142 = arith.constant 0 : index
    %150 = vector.load %arg4[%c7_140, %c0_141, %c0_142] : memref<9x128x128xbf16, #tpu.memory_space<vmem>>, vector<1x128x128xbf16>
    %151 = vector.shape_cast %150 : vector<1x128x128xbf16> to vector<128x128xbf16>
    %cst_143 = arith.constant dense<0.000000e+00> : vector<24x128xf32>
    %152 = tpu.matmul %149, %151, %cst_143 {dimension_numbers = #tpu.dot_dimension_numbers<[1], [0], [0], [1], [0, 0, 1, 1], [], []>} : vector<24x128xbf16>, vector<128x128xbf16>, vector<24x128xf32> -> vector<24x128xf32>
    %153 = arith.addf %148, %152 : vector<24x128xf32>
    %c14 = arith.constant 14 : index
    %c0_144 = arith.constant 0 : index
    %154 = vector.load %arg14[%c14, %c0_144] : memref<40x128xbf16, #tpu.memory_space<vmem>>, vector<24x128xbf16>
    %c8_145 = arith.constant 8 : index
    %c0_146 = arith.constant 0 : index
    %c0_147 = arith.constant 0 : index
    %155 = vector.load %arg4[%c8_145, %c0_146, %c0_147] : memref<9x128x128xbf16, #tpu.memory_space<vmem>>, vector<1x128x128xbf16>
    %156 = vector.shape_cast %155 : vector<1x128x128xbf16> to vector<128x128xbf16>
    %cst_148 = arith.constant dense<0.000000e+00> : vector<24x128xf32>
    %157 = tpu.matmul %154, %156, %cst_148 {dimension_numbers = #tpu.dot_dimension_numbers<[1], [0], [0], [1], [0, 0, 1, 1], [], []>} : vector<24x128xbf16>, vector<128x128xbf16>, vector<24x128xf32> -> vector<24x128xf32>
    %158 = arith.addf %153, %157 : vector<24x128xf32>
    %cst_149 = arith.constant 0.000000e+00 : f32
    %159 = vector.broadcast %cst_149 : f32 to vector<24x128xf32>
    %160 = arith.maximumf %158, %159 : vector<24x128xf32>
    %cst_150 = arith.constant -1.000000e+00 : f32
    %cst_151 = arith.constant 1.000000e+00 : f32
    %161 = vector.broadcast %cst_150 : f32 to vector<24x128xf32>
    %162 = arith.maximumf %161, %160 : vector<24x128xf32>
    %163 = vector.broadcast %cst_151 : f32 to vector<24x128xf32>
    %164 = arith.minimumf %163, %162 : vector<24x128xf32>
    %c0_152 = arith.constant 0 : index
    %c0_153 = arith.constant 0 : index
    %165 = vector.load %arg15[%c0_152, %c0_153] : memref<32x128xf32, #tpu.memory_space<vmem>>, vector<24x128xf32>
    tpu.vector_store %arg15[%c0_152, %c0_153], %164 {strides = array<i32>} : memref<32x128xf32, #tpu.memory_space<vmem>>, vector<24x128xf32>,
    %c0_154 = arith.constant 0 : index
    %c0_155 = arith.constant 0 : index
    %166 = vector.load %arg15[%c0_154, %c0_155] : memref<32x128xf32, #tpu.memory_space<vmem>>, vector<24x128xf32>
    %c1_156 = arith.constant 1 : index
    %c0_157 = arith.constant 0 : index
    %167 = vector.load %arg15[%c1_156, %c0_157] : memref<32x128xf32, #tpu.memory_space<vmem>>, vector<24x128xf32>
    %c6_158 = arith.constant 6 : index
    %c0_159 = arith.constant 0 : index
    %168 = vector.load %arg15[%c6_158, %c0_159] : memref<32x128xf32, #tpu.memory_space<vmem>>, vector<24x128xf32>
    %c7_160 = arith.constant 7 : index
    %c0_161 = arith.constant 0 : index
    %169 = vector.load %arg15[%c7_160, %c0_161] : memref<32x128xf32, #tpu.memory_space<vmem>>, vector<24x128xf32>
    %170 = arith.addf %166, %167 : vector<24x128xf32>
    %171 = arith.addf %170, %168 : vector<24x128xf32>
    %172 = arith.addf %171, %169 : vector<24x128xf32>
    %cst_162 = arith.constant 2.500000e-01 : f32
    %173 = vector.broadcast %cst_162 : f32 to vector<24x128xf32>
    %174 = arith.mulf %172, %173 : vector<24x128xf32>
    %c0_163 = arith.constant 0 : index
    %c0_164 = arith.constant 0 : index
    %175 = vector.load %arg9[%c0_163, %c0_164] : memref<24x24xbf16, #tpu.memory_space<vmem>>, vector<24x24xbf16>
    %176 = arith.truncf %174 : vector<24x128xf32> to vector<24x128xbf16>
    %cst_165 = arith.constant dense<0.000000e+00> : vector<24x128xf32>
    %177 = tpu.matmul %175, %176, %cst_165 {dimension_numbers = #tpu.dot_dimension_numbers<[1], [0], [0], [1], [0, 0, 1, 1], [], []>} : vector<24x24xbf16>, vector<24x128xbf16>, vector<24x128xf32> -> vector<24x128xf32>
    %cst_166 = arith.constant -1.000000e+00 : f32
    %cst_167 = arith.constant 1.000000e+00 : f32
    %178 = vector.broadcast %cst_166 : f32 to vector<24x128xf32>
    %179 = arith.maximumf %178, %177 : vector<24x128xf32>
    %180 = vector.broadcast %cst_167 : f32 to vector<24x128xf32>
    %181 = arith.minimumf %180, %179 : vector<24x128xf32>
    %182 = arith.truncf %181 : vector<24x128xf32> to vector<24x128xbf16>
    %c0_168 = arith.constant 0 : index
    %c0_169 = arith.constant 0 : index
    %183 = vector.load %arg16[%c0_168, %c0_169] : memref<24x128xbf16, #tpu.memory_space<vmem>>, vector<24x128xbf16>
    tpu.vector_store %arg16[%c0_168, %c0_169], %182 {strides = array<i32>} : memref<24x128xbf16, #tpu.memory_space<vmem>>, vector<24x128xbf16>,
    %cst_170 = arith.constant 0.000000e+00 : f32
    %184 = vector.broadcast %cst_170 : f32 to vector<8x128xf32>
    %c0_171 = arith.constant 0 : index
    %c0_172 = arith.constant 0 : index
    %185 = vector.load %arg16[%c0_171, %c0_172] : memref<24x128xbf16, #tpu.memory_space<vmem>>, vector<8x128xbf16>
    %c0_173 = arith.constant 0 : index
    %c0_174 = arith.constant 0 : index
    %c0_175 = arith.constant 0 : index
    %186 = vector.load %arg5[%c0_173, %c0_174, %c0_175] : memref<9x128x128xbf16, #tpu.memory_space<vmem>>, vector<1x128x128xbf16>
    %187 = vector.shape_cast %186 : vector<1x128x128xbf16> to vector<128x128xbf16>
    %cst_176 = arith.constant dense<0.000000e+00> : vector<8x128xf32>
    %188 = tpu.matmul %185, %187, %cst_176 {dimension_numbers = #tpu.dot_dimension_numbers<[1], [0], [0], [1], [0, 0, 1, 1], [], []>} : vector<8x128xbf16>, vector<128x128xbf16>, vector<8x128xf32> -> vector<8x128xf32>
    %189 = arith.addf %184, %188 : vector<8x128xf32>
    %c1_177 = arith.constant 1 : index
    %c0_178 = arith.constant 0 : index
    %190 = vector.load %arg16[%c1_177, %c0_178] : memref<24x128xbf16, #tpu.memory_space<vmem>>, vector<8x128xbf16>
    %c1_179 = arith.constant 1 : index
    %c0_180 = arith.constant 0 : index
    %c0_181 = arith.constant 0 : index
    %191 = vector.load %arg5[%c1_179, %c0_180, %c0_181] : memref<9x128x128xbf16, #tpu.memory_space<vmem>>, vector<1x128x128xbf16>
    %192 = vector.shape_cast %191 : vector<1x128x128xbf16> to vector<128x128xbf16>
    %cst_182 = arith.constant dense<0.000000e+00> : vector<8x128xf32>
    %193 = tpu.matmul %190, %192, %cst_182 {dimension_numbers = #tpu.dot_dimension_numbers<[1], [0], [0], [1], [0, 0, 1, 1], [], []>} : vector<8x128xbf16>, vector<128x128xbf16>, vector<8x128xf32> -> vector<8x128xf32>
    %194 = arith.addf %189, %193 : vector<8x128xf32>
    %c2_183 = arith.constant 2 : index
    %c0_184 = arith.constant 0 : index
    %195 = vector.load %arg16[%c2_183, %c0_184] : memref<24x128xbf16, #tpu.memory_space<vmem>>, vector<8x128xbf16>
    %c2_185 = arith.constant 2 : index
    %c0_186 = arith.constant 0 : index
    %c0_187 = arith.constant 0 : index
    %196 = vector.load %arg5[%c2_185, %c0_186, %c0_187] : memref<9x128x128xbf16, #tpu.memory_space<vmem>>, vector<1x128x128xbf16>
    %197 = vector.shape_cast %196 : vector<1x128x128xbf16> to vector<128x128xbf16>
    %cst_188 = arith.constant dense<0.000000e+00> : vector<8x128xf32>
    %198 = tpu.matmul %195, %197, %cst_188 {dimension_numbers = #tpu.dot_dimension_numbers<[1], [0], [0], [1], [0, 0, 1, 1], [], []>} : vector<8x128xbf16>, vector<128x128xbf16>, vector<8x128xf32> -> vector<8x128xf32>
    %199 = arith.addf %194, %198 : vector<8x128xf32>
    %c4_189 = arith.constant 4 : index
    %c0_190 = arith.constant 0 : index
    %200 = vector.load %arg16[%c4_189, %c0_190] : memref<24x128xbf16, #tpu.memory_space<vmem>>, vector<8x128xbf16>
    %c3_191 = arith.constant 3 : index
    %c0_192 = arith.constant 0 : index
    %c0_193 = arith.constant 0 : index
    %201 = vector.load %arg5[%c3_191, %c0_192, %c0_193] : memref<9x128x128xbf16, #tpu.memory_space<vmem>>, vector<1x128x128xbf16>
    %202 = vector.shape_cast %201 : vector<1x128x128xbf16> to vector<128x128xbf16>
    %cst_194 = arith.constant dense<0.000000e+00> : vector<8x128xf32>
    %203 = tpu.matmul %200, %202, %cst_194 {dimension_numbers = #tpu.dot_dimension_numbers<[1], [0], [0], [1], [0, 0, 1, 1], [], []>} : vector<8x128xbf16>, vector<128x128xbf16>, vector<8x128xf32> -> vector<8x128xf32>
    %204 = arith.addf %199, %203 : vector<8x128xf32>
    %c5_195 = arith.constant 5 : index
    %c0_196 = arith.constant 0 : index
    %205 = vector.load %arg16[%c5_195, %c0_196] : memref<24x128xbf16, #tpu.memory_space<vmem>>, vector<8x128xbf16>
    %c4_197 = arith.constant 4 : index
    %c0_198 = arith.constant 0 : index
    %c0_199 = arith.constant 0 : index
    %206 = vector.load %arg5[%c4_197, %c0_198, %c0_199] : memref<9x128x128xbf16, #tpu.memory_space<vmem>>, vector<1x128x128xbf16>
    %207 = vector.shape_cast %206 : vector<1x128x128xbf16> to vector<128x128xbf16>
    %cst_200 = arith.constant dense<0.000000e+00> : vector<8x128xf32>
    %208 = tpu.matmul %205, %207, %cst_200 {dimension_numbers = #tpu.dot_dimension_numbers<[1], [0], [0], [1], [0, 0, 1, 1], [], []>} : vector<8x128xbf16>, vector<128x128xbf16>, vector<8x128xf32> -> vector<8x128xf32>
    %209 = arith.addf %204, %208 : vector<8x128xf32>
    %c6_201 = arith.constant 6 : index
    %c0_202 = arith.constant 0 : index
    %210 = vector.load %arg16[%c6_201, %c0_202] : memref<24x128xbf16, #tpu.memory_space<vmem>>, vector<8x128xbf16>
    %c5_203 = arith.constant 5 : index
    %c0_204 = arith.constant 0 : index
    %c0_205 = arith.constant 0 : index
    %211 = vector.load %arg5[%c5_203, %c0_204, %c0_205] : memref<9x128x128xbf16, #tpu.memory_space<vmem>>, vector<1x128x128xbf16>
    %212 = vector.shape_cast %211 : vector<1x128x128xbf16> to vector<128x128xbf16>
    %cst_206 = arith.constant dense<0.000000e+00> : vector<8x128xf32>
    %213 = tpu.matmul %210, %212, %cst_206 {dimension_numbers = #tpu.dot_dimension_numbers<[1], [0], [0], [1], [0, 0, 1, 1], [], []>} : vector<8x128xbf16>, vector<128x128xbf16>, vector<8x128xf32> -> vector<8x128xf32>
    %214 = arith.addf %209, %213 : vector<8x128xf32>
    %c8_207 = arith.constant 8 : index
    %c0_208 = arith.constant 0 : index
    %215 = vector.load %arg16[%c8_207, %c0_208] : memref<24x128xbf16, #tpu.memory_space<vmem>>, vector<8x128xbf16>
    %c6_209 = arith.constant 6 : index
    %c0_210 = arith.constant 0 : index
    %c0_211 = arith.constant 0 : index
    %216 = vector.load %arg5[%c6_209, %c0_210, %c0_211] : memref<9x128x128xbf16, #tpu.memory_space<vmem>>, vector<1x128x128xbf16>
    %217 = vector.shape_cast %216 : vector<1x128x128xbf16> to vector<128x128xbf16>
    %cst_212 = arith.constant dense<0.000000e+00> : vector<8x128xf32>
    %218 = tpu.matmul %215, %217, %cst_212 {dimension_numbers = #tpu.dot_dimension_numbers<[1], [0], [0], [1], [0, 0, 1, 1], [], []>} : vector<8x128xbf16>, vector<128x128xbf16>, vector<8x128xf32> -> vector<8x128xf32>
    %219 = arith.addf %214, %218 : vector<8x128xf32>
    %c9 = arith.constant 9 : index
    %c0_213 = arith.constant 0 : index
    %220 = vector.load %arg16[%c9, %c0_213] : memref<24x128xbf16, #tpu.memory_space<vmem>>, vector<8x128xbf16>
    %c7_214 = arith.constant 7 : index
    %c0_215 = arith.constant 0 : index
    %c0_216 = arith.constant 0 : index
    %221 = vector.load %arg5[%c7_214, %c0_215, %c0_216] : memref<9x128x128xbf16, #tpu.memory_space<vmem>>, vector<1x128x128xbf16>
    %222 = vector.shape_cast %221 : vector<1x128x128xbf16> to vector<128x128xbf16>
    %cst_217 = arith.constant dense<0.000000e+00> : vector<8x128xf32>
    %223 = tpu.matmul %220, %222, %cst_217 {dimension_numbers = #tpu.dot_dimension_numbers<[1], [0], [0], [1], [0, 0, 1, 1], [], []>} : vector<8x128xbf16>, vector<128x128xbf16>, vector<8x128xf32> -> vector<8x128xf32>
    %224 = arith.addf %219, %223 : vector<8x128xf32>
    %c10_218 = arith.constant 10 : index
    %c0_219 = arith.constant 0 : index
    %225 = vector.load %arg16[%c10_218, %c0_219] : memref<24x128xbf16, #tpu.memory_space<vmem>>, vector<8x128xbf16>
    %c8_220 = arith.constant 8 : index
    %c0_221 = arith.constant 0 : index
    %c0_222 = arith.constant 0 : index
    %226 = vector.load %arg5[%c8_220, %c0_221, %c0_222] : memref<9x128x128xbf16, #tpu.memory_space<vmem>>, vector<1x128x128xbf16>
    %227 = vector.shape_cast %226 : vector<1x128x128xbf16> to vector<128x128xbf16>
    %cst_223 = arith.constant dense<0.000000e+00> : vector<8x128xf32>
    %228 = tpu.matmul %225, %227, %cst_223 {dimension_numbers = #tpu.dot_dimension_numbers<[1], [0], [0], [1], [0, 0, 1, 1], [], []>} : vector<8x128xbf16>, vector<128x128xbf16>, vector<8x128xf32> -> vector<8x128xf32>
    %229 = arith.addf %224, %228 : vector<8x128xf32>
    %cst_224 = arith.constant 0.000000e+00 : f32
    %230 = vector.broadcast %cst_224 : f32 to vector<8x128xf32>
    %231 = arith.maximumf %229, %230 : vector<8x128xf32>
    %cst_225 = arith.constant -1.000000e+00 : f32
    %cst_226 = arith.constant 1.000000e+00 : f32
    %232 = vector.broadcast %cst_225 : f32 to vector<8x128xf32>
    %233 = arith.maximumf %232, %231 : vector<8x128xf32>
    %234 = vector.broadcast %cst_226 : f32 to vector<8x128xf32>
    %235 = arith.minimumf %234, %233 : vector<8x128xf32>
    %c0_227 = arith.constant 0 : index
    %c0_228 = arith.constant 0 : index
    %236 = vector.load %arg17[%c0_227, %c0_228] : memref<8x128xf32, #tpu.memory_space<vmem>>, vector<8x128xf32>
    tpu.vector_store %arg17[%c0_227, %c0_228], %235 {strides = array<i32>} : memref<8x128xf32, #tpu.memory_space<vmem>>, vector<8x128xf32>,
    %c0_229 = arith.constant 0 : index
    %c0_230 = arith.constant 0 : index
    %237 = vector.load %arg17[%c0_229, %c0_230] : memref<8x128xf32, #tpu.memory_space<vmem>>, vector<8x128xf32>
    %238 = arith.truncf %237 : vector<8x128xf32> to vector<8x128xbf16>
    %cst_231 = arith.constant 0.000000e+00 : f32
    %239 = vector.broadcast %cst_231 : f32 to vector<1x128xf32>
    %240 = vector.extract_strided_slice %238 {offsets = [0, 0], sizes = [1, 128], strides = [1, 1]} : vector<8x128xbf16> to vector<1x128xbf16>
    %c0_232 = arith.constant 0 : index
    %c0_233 = arith.constant 0 : index
    %c0_234 = arith.constant 0 : index
    %241 = vector.load %arg6[%c0_232, %c0_233, %c0_234] : memref<4x128x128xbf16, #tpu.memory_space<vmem>>, vector<1x128x128xbf16>
    %242 = vector.shape_cast %241 : vector<1x128x128xbf16> to vector<128x128xbf16>
    %cst_235 = arith.constant dense<0.000000e+00> : vector<1x128xf32>
    %243 = tpu.matmul %240, %242, %cst_235 {dimension_numbers = #tpu.dot_dimension_numbers<[1], [0], [0], [1], [0, 0, 1, 1], [], []>} : vector<1x128xbf16>, vector<128x128xbf16>, vector<1x128xf32> -> vector<1x128xf32>
    %244 = arith.addf %239, %243 : vector<1x128xf32>
    %245 = vector.extract_strided_slice %238 {offsets = [1, 0], sizes = [1, 128], strides = [1, 1]} : vector<8x128xbf16> to vector<1x128xbf16>
    %c1_236 = arith.constant 1 : index
    %c0_237 = arith.constant 0 : index
    %c0_238 = arith.constant 0 : index
    %246 = vector.load %arg6[%c1_236, %c0_237, %c0_238] : memref<4x128x128xbf16, #tpu.memory_space<vmem>>, vector<1x128x128xbf16>
    %247 = vector.shape_cast %246 : vector<1x128x128xbf16> to vector<128x128xbf16>
    %cst_239 = arith.constant dense<0.000000e+00> : vector<1x128xf32>
    %248 = tpu.matmul %245, %247, %cst_239 {dimension_numbers = #tpu.dot_dimension_numbers<[1], [0], [0], [1], [0, 0, 1, 1], [], []>} : vector<1x128xbf16>, vector<128x128xbf16>, vector<1x128xf32> -> vector<1x128xf32>
    %249 = arith.addf %244, %248 : vector<1x128xf32>
    %250 = vector.extract_strided_slice %238 {offsets = [4, 0], sizes = [1, 128], strides = [1, 1]} : vector<8x128xbf16> to vector<1x128xbf16>
    %c2_240 = arith.constant 2 : index
    %c0_241 = arith.constant 0 : index
    %c0_242 = arith.constant 0 : index
    %251 = vector.load %arg6[%c2_240, %c0_241, %c0_242] : memref<4x128x128xbf16, #tpu.memory_space<vmem>>, vector<1x128x128xbf16>
    %252 = vector.shape_cast %251 : vector<1x128x128xbf16> to vector<128x128xbf16>
    %cst_243 = arith.constant dense<0.000000e+00> : vector<1x128xf32>
    %253 = tpu.matmul %250, %252, %cst_243 {dimension_numbers = #tpu.dot_dimension_numbers<[1], [0], [0], [1], [0, 0, 1, 1], [], []>} : vector<1x128xbf16>, vector<128x128xbf16>, vector<1x128xf32> -> vector<1x128xf32>
    %254 = arith.addf %249, %253 : vector<1x128xf32>
    %255 = vector.extract_strided_slice %238 {offsets = [5, 0], sizes = [1, 128], strides = [1, 1]} : vector<8x128xbf16> to vector<1x128xbf16>
    %c3_244 = arith.constant 3 : index
    %c0_245 = arith.constant 0 : index
    %c0_246 = arith.constant 0 : index
    %256 = vector.load %arg6[%c3_244, %c0_245, %c0_246] : memref<4x128x128xbf16, #tpu.memory_space<vmem>>, vector<1x128x128xbf16>
    %257 = vector.shape_cast %256 : vector<1x128x128xbf16> to vector<128x128xbf16>
    %cst_247 = arith.constant dense<0.000000e+00> : vector<1x128xf32>
    %258 = tpu.matmul %255, %257, %cst_247 {dimension_numbers = #tpu.dot_dimension_numbers<[1], [0], [0], [1], [0, 0, 1, 1], [], []>} : vector<1x128xbf16>, vector<128x128xbf16>, vector<1x128xf32> -> vector<1x128xf32>
    %259 = arith.addf %254, %258 : vector<1x128xf32>
    %cst_248 = arith.constant -1.000000e+00 : f32
    %cst_249 = arith.constant 1.000000e+00 : f32
    %260 = vector.broadcast %cst_248 : f32 to vector<1x128xf32>
    %261 = arith.maximumf %260, %259 : vector<1x128xf32>
    %262 = vector.broadcast %cst_249 : f32 to vector<1x128xf32>
    %263 = arith.minimumf %262, %261 : vector<1x128xf32>
    %c0_250 = arith.constant 0 : index
    %c0_251 = arith.constant 0 : index
    %c0_252 = arith.constant 0 : index
    %264 = vector.load %arg10[%c0_250, %c0_251, %c0_252] : memref<1x1x128xf32, #tpu.memory_space<vmem>>, vector<1x1x128xf32>
    %265 = vector.shape_cast %264 : vector<1x1x128xf32> to vector<1x128xf32>
    %266 = vector.shape_cast %263 : vector<1x128xf32> to vector<1x1x128xf32>
    tpu.vector_store %arg10[%c0_250, %c0_251, %c0_252], %266 {strides = array<i32>} : memref<1x1x128xf32, #tpu.memory_space<vmem>>, vector<1x1x128xf32>,
    return
  }
  func.func @transform_0(%arg0: i32) -> (i32, i32, i32) {
    %c0_i32 = arith.constant 0 : i32
    %c0_i32_0 = arith.constant 0 : i32
    %c0_i32_1 = arith.constant 0 : i32
    return %arg0, %c0_i32, %c0_i32_0 : i32, i32, i32
  }
  func.func @transform_1(%arg0: i32) -> (i32, i32) {
    %c0_i32 = arith.constant 0 : i32
    %c0_i32_0 = arith.constant 0 : i32
    %c0_i32_1 = arith.constant 0 : i32
    return %c0_i32, %c0_i32_0 : i32, i32
  }
  func.func @transform_2(%arg0: i32) -> (i32, i32, i32) {
    %c0_i32 = arith.constant 0 : i32
    %c0_i32_0 = arith.constant 0 : i32
    %c0_i32_1 = arith.constant 0 : i32
    %c0_i32_2 = arith.constant 0 : i32
    return %c0_i32, %c0_i32_0, %c0_i32_1 : i32, i32, i32
  }
  func.func @transform_3(%arg0: i32) -> (i32, i32, i32) {
    %c0_i32 = arith.constant 0 : i32
    %c0_i32_0 = arith.constant 0 : i32
    %c0_i32_1 = arith.constant 0 : i32
    %c0_i32_2 = arith.constant 0 : i32
    return %c0_i32, %c0_i32_0, %c0_i32_1 : i32, i32, i32
  }
  func.func @transform_4(%arg0: i32) -> (i32, i32, i32) {
    %c0_i32 = arith.constant 0 : i32
    %c0_i32_0 = arith.constant 0 : i32
    %c0_i32_1 = arith.constant 0 : i32
    %c0_i32_2 = arith.constant 0 : i32
    return %c0_i32, %c0_i32_0, %c0_i32_1 : i32, i32, i32
  }
  func.func @transform_5(%arg0: i32) -> (i32, i32, i32) {
    %c0_i32 = arith.constant 0 : i32
    %c0_i32_0 = arith.constant 0 : i32
    %c0_i32_1 = arith.constant 0 : i32
    %c0_i32_2 = arith.constant 0 : i32
    return %c0_i32, %c0_i32_0, %c0_i32_1 : i32, i32, i32
  }
  func.func @transform_6(%arg0: i32) -> (i32, i32) {
    %c0_i32 = arith.constant 0 : i32
    %c0_i32_0 = arith.constant 0 : i32
    %c0_i32_1 = arith.constant 0 : i32
    return %c0_i32, %c0_i32_0 : i32, i32
  }
  func.func @transform_7(%arg0: i32) -> (i32, i32) {
    %c0_i32 = arith.constant 0 : i32
    %c0_i32_0 = arith.constant 0 : i32
    %c0_i32_1 = arith.constant 0 : i32
    return %c0_i32, %c0_i32_0 : i32, i32
  }
  func.func @transform_8(%arg0: i32) -> (i32, i32) {
    %c0_i32 = arith.constant 0 : i32
    %c0_i32_0 = arith.constant 0 : i32
    %c0_i32_1 = arith.constant 0 : i32
    return %c0_i32, %c0_i32_0 : i32, i32
  }
  func.func @transform_9(%arg0: i32) -> (i32, i32, i32) {
    %c0_i32 = arith.constant 0 : i32
    %c0_i32_0 = arith.constant 0 : i32
    %c0_i32_1 = arith.constant 0 : i32
    return %arg0, %c0_i32, %c0_i32_0 : i32, i32, i32
  }
}

</mosaic_0001>

<llo_original>
// kernel: ai85net6_forward.1
$region0: #{ai85net6_forward.1}
  #allocation0 [shape = 'u32[]', space=smem, size = 0x4, offset = 0x4, fixed_abs, tag = 'smem constant byte address 0x4 - core index']
  #allocation1 [shape = 'u32[144,128]{1,0:T(1,128)}', space=vmem, size = 0x12000, scoped, tag = 'internal scratch']
  #allocation2 [shape = 'f32[280,128]{1,0:T(8,128)}', space=vmem, size = 0x23000, scoped, tag = 'scratch operand']
  #allocation3 [shape = 'bf16[104,128]{1,0:T(8,128)(2,1)}', space=vmem, size = 0x6800, scoped, tag = 'scratch operand']
  #allocation4 [shape = 'f32[96,128]{1,0:T(8,128)}', space=vmem, size = 0xc000, scoped, tag = 'scratch operand']
  #allocation5 [shape = 'bf16[40,128]{1,0:T(8,128)(2,1)}', space=vmem, size = 0x2800, scoped, tag = 'scratch operand']
  #allocation6 [shape = 'f32[32,128]{1,0:T(8,128)}', space=vmem, size = 0x4000, scoped, tag = 'scratch operand']
  #allocation7 [shape = 'bf16[24,128]{1,0:T(8,128)(2,1)}', space=vmem, size = 0x1800, scoped, tag = 'scratch operand']
  #allocation8 [shape = 'f32[8,128]{1,0:T(8,128)}', space=vmem, size = 0x1000, scoped, tag = 'scratch operand']
  %s0 = inlined_call_operand.vmem [shape: bf16[2,256,32], index: 0, kind: input, shape index: {}]
  %s1 = inlined_call_operand.vmem [shape: bf16[32,128], index: 1, kind: input, shape index: {}]
  %s2 = inlined_call_operand.vmem [shape: bf16[9,128,128], index: 2, kind: input, shape index: {}]
  %s3 = inlined_call_operand.vmem [shape: bf16[9,128,128], index: 3, kind: input, shape index: {}]
  %s4 = inlined_call_operand.vmem [shape: bf16[9,128,128], index: 4, kind: input, shape index: {}]
  %s5 = inlined_call_operand.vmem [shape: bf16[4,128,128], index: 5, kind: input, shape index: {}]
  %s6 = inlined_call_operand.vmem [shape: bf16[104,256], index: 6, kind: input, shape index: {}]
  %s7 = inlined_call_operand.vmem [shape: bf16[40,80], index: 7, kind: input, shape index: {}]
  %s8 = inlined_call_operand.vmem [shape: bf16[24,24], index: 8, kind: input, shape index: {}]
  %s9 = inlined_call_operand.hbm [shape: f32[2,1,128], index: 9, kind: output, shape index: {}]
  %s10 = sld [smem:[#allocation0]]
  $region69: #{ai85net6_forward.1} parent=0
    _
  %s12 = ssub.s32 1, %s10
  %s13 = scalar_select 0, %s12, %s10
  $region1: #{ai85net6_forward.1} parent=0
    #allocation9 [shape = 'u8[1024]{0}', space=vmem, size = 0x400, scoped, tag = 'output window, operand 0']
    #allocation10 [shape = 's32[2]{0}', space=sflag, size = 0x8, scoped, tag = 'scoped memory for ai85net6_forward.1']
    %14 = vsyncpa [#allocation10], 0
    %s15 = scalar_lea.sflag [#allocation10], 1
    %16 = vsyncpa %s15, 0
    loop: start=0, step=1, limit=4
    $region2: #{ai85net6_forward.1} parent=1 // loop_pre_header
      _
    $region3: #{ai85net6_forward.1} parent=1 // loop_header
      %s18 = sphi 0, %s22
      %p19 = scmp.ge.s32.totalorder %s18, 4
      %s28 = sphi 0, %s30
      %s31 = sphi 0, %s28
      %s32 = sphi 0, %s31
      %s48 = sphi 0, %s32
      %s52 = sphi 0, %s52
      %s54 = sphi 0, %s52
      %s55 = sphi 0, %s54
      %s69 = sphi 0, %s55
      %s73 = sphi 0, %s73
      %s75 = sphi 0, %s73
      %s76 = sphi 0, %s75
      %s90 = sphi 0, %s76
      %s94 = sphi 0, %s94
      %s96 = sphi 0, %s94
      %s97 = sphi 0, %s96
      %s111 = sphi 0, %s97
      %s115 = sphi 0, %s115
      %s117 = sphi 0, %s115
      %s118 = sphi 0, %s117
      %s132 = sphi 0, %s118
      %s136 = sphi 0, %s136
      %s138 = sphi 0, %s136
      %s139 = sphi 0, %s138
      %s153 = sphi 0, %s139
      %s157 = sphi 0, %s157
      %s159 = sphi 0, %s157
      %s160 = sphi 0, %s159
      %s174 = sphi 0, %s160
      %s178 = sphi 0, %s178
      %s180 = sphi 0, %s178
      %s181 = sphi 0, %s180
      %s195 = sphi 0, %s181
      %s199 = sphi 0, %s199
      %s201 = sphi 0, %s199
      %s202 = sphi 0, %s201
      %s216 = sphi 0, %s202
      %s222 = sphi 0, %s224
      %s225 = sphi 0, %s222
      %s226 = sphi 0, %s225
      %s242 = sphi 0, %s226
    $region4: #{ai85net6_forward.1} parent=1 // loop_header_branch
      %21 = sbr.rel (%p19) target = $region8
    $region5: #{ai85net6_forward.1} parent=1 // loop_body
      %s23 = ssub.s32 %s18, 1
      %s24 = ssub.s32 %s18, 2
      %s25 = sadd.s32 %s18, 1
      %s26 = ssub.s32 %s18, %s25
      %p27 = scmp.eq.s32.totalorder %s26, 0
      %s29 = sadd.s32 %s28, 1
      %s30 = scalar_select %p27, %s28, %s29
      %p33 = pneg %p27
      %p34 = scmp.eq.s32.totalorder %s18, 1
      %p35 = por %p33, %p34
      %p36 = scmp.ne.s32.totalorder %s28, %s31
      %p37 = scmp.eq.s32.totalorder %s18, 0
      %p38 = por %p36, %p37
      %p39 = scmp.ne.s32.totalorder %s28, %s31
      %p40 = scmp.eq.s32.totalorder %s23, 1
      %p41 = por %p39, %p40
      %p42 = scmp.ne.s32.totalorder %s31, %s32
      %p43 = scmp.eq.s32.totalorder %s23, 0
      %p44 = por %p42, %p43
      %p45 = scmp.ne.s32.totalorder %s31, %s32
      %p46 = scmp.eq.s32.totalorder %s24, 1
      %p47 = por %p45, %p46
      %p49 = scmp.ne.s32.totalorder %s32, %s48
      %p50 = scmp.eq.s32.totalorder %s24, 0
      %p51 = por %p49, %p50
      %s53 = sadd.s32 %s52, 1
      %p56 = scmp.eq.s32.totalorder %s18, 1
      %p57 = scmp.ne.s32.totalorder %s52, %s54
      %p58 = scmp.eq.s32.totalorder %s18, 0
      %p59 = por %p57, %p58
      %p60 = scmp.ne.s32.totalorder %s52, %s54
      %p61 = scmp.eq.s32.totalorder %s23, 1
      %p62 = por %p60, %p61
      %p63 = scmp.ne.s32.totalorder %s54, %s55
      %p64 = scmp.eq.s32.totalorder %s23, 0
      %p65 = por %p63, %p64
      %p66 = scmp.ne.s32.totalorder %s54, %s55
      %p67 = scmp.eq.s32.totalorder %s24, 1
      %p68 = por %p66, %p67
      %p70 = scmp.ne.s32.totalorder %s55, %s69
      %p71 = scmp.eq.s32.totalorder %s24, 0
      %p72 = por %p70, %p71
      %s74 = sadd.s32 %s73, 1
      %p77 = scmp.eq.s32.totalorder %s18, 1
      %p78 = scmp.ne.s32.totalorder %s73, %s75
      %p79 = scmp.eq.s32.totalorder %s18, 0
      %p80 = por %p78, %p79
      %p81 = scmp.ne.s32.totalorder %s73, %s75
      %p82 = scmp.eq.s32.totalorder %s23, 1
      %p83 = por %p81, %p82
      %p84 = scmp.ne.s32.totalorder %s75, %s76
      %p85 = scmp.eq.s32.totalorder %s23, 0
      %p86 = por %p84, %p85
      %p87 = scmp.ne.s32.totalorder %s75, %s76
      %p88 = scmp.eq.s32.totalorder %s24, 1
      %p89 = por %p87, %p88
      %p91 = scmp.ne.s32.totalorder %s76, %s90
      %p92 = scmp.eq.s32.totalorder %s24, 0
      %p93 = por %p91, %p92
      %s95 = sadd.s32 %s94, 1
      %p98 = scmp.eq.s32.totalorder %s18, 1
      %p99 = scmp.ne.s32.totalorder %s94, %s96
      %p100 = scmp.eq.s32.totalorder %s18, 0
      %p101 = por %p99, %p100
      %p102 = scmp.ne.s32.totalorder %s94, %s96
      %p103 = scmp.eq.s32.totalorder %s23, 1
      %p104 = por %p102, %p103
      %p105 = scmp.ne.s32.totalorder %s96, %s97
      %p106 = scmp.eq.s32.totalorder %s23, 0
      %p107 = por %p105, %p106
      %p108 = scmp.ne.s32.totalorder %s96, %s97
      %p109 = scmp.eq.s32.totalorder %s24, 1
      %p110 = por %p108, %p109
      %p112 = scmp.ne.s32.totalorder %s97, %s111
      %p113 = scmp.eq.s32.totalorder %s24, 0
      %p114 = por %p112, %p113
      %s116 = sadd.s32 %s115, 1
      %p119 = scmp.eq.s32.totalorder %s18, 1
      %p120 = scmp.ne.s32.totalorder %s115, %s117
      %p121 = scmp.eq.s32.totalorder %s18, 0
      %p122 = por %p120, %p121
      %p123 = scmp.ne.s32.totalorder %s115, %s117
      %p124 = scmp.eq.s32.totalorder %s23, 1
      %p125 = por %p123, %p124
      %p126 = scmp.ne.s32.totalorder %s117, %s118
      %p127 = scmp.eq.s32.totalorder %s23, 0
      %p128 = por %p126, %p127
      %p129 = scmp.ne.s32.totalorder %s117, %s118
      %p130 = scmp.eq.s32.totalorder %s24, 1
      %p131 = por %p129, %p130
      %p133 = scmp.ne.s32.totalorder %s118, %s132
      %p134 = scmp.eq.s32.totalorder %s24, 0
      %p135 = por %p133, %p134
      %s137 = sadd.s32 %s136, 1
      %p140 = scmp.eq.s32.totalorder %s18, 1
      %p141 = scmp.ne.s32.totalorder %s136, %s138
      %p142 = scmp.eq.s32.totalorder %s18, 0
      %p143 = por %p141, %p142
      %p144 = scmp.ne.s32.totalorder %s136, %s138
      %p145 = scmp.eq.s32.totalorder %s23, 1
      %p146 = por %p144, %p145
      %p147 = scmp.ne.s32.totalorder %s138, %s139
      %p148 = scmp.eq.s32.totalorder %s23, 0
      %p149 = por %p147, %p148
      %p150 = scmp.ne.s32.totalorder %s138, %s139
      %p151 = scmp.eq.s32.totalorder %s24, 1
      %p152 = por %p150, %p151
      %p154 = scmp.ne.s32.totalorder %s139, %s153
      %p155 = scmp.eq.s32.totalorder %s24, 0
      %p156 = por %p154, %p155
      %s158 = sadd.s32 %s157, 1
      %p161 = scmp.eq.s32.totalorder %s18, 1
      %p162 = scmp.ne.s32.totalorder %s157, %s159
      %p163 = scmp.eq.s32.totalorder %s18, 0
      %p164 = por %p162, %p163
      %p165 = scmp.ne.s32.totalorder %s157, %s159
      %p166 = scmp.eq.s32.totalorder %s23, 1
      %p167 = por %p165, %p166
      %p168 = scmp.ne.s32.totalorder %s159, %s160
      %p169 = scmp.eq.s32.totalorder %s23, 0
      %p170 = por %p168, %p169
      %p171 = scmp.ne.s32.totalorder %s159, %s160
      %p172 = scmp.eq.s32.totalorder %s24, 1
      %p173 = por %p171, %p172
      %p175 = scmp.ne.s32.totalorder %s160, %s174
      %p176 = scmp.eq.s32.totalorder %s24, 0
      %p177 = por %p175, %p176
      %s179 = sadd.s32 %s178, 1
      %p182 = scmp.eq.s32.totalorder %s18, 1
      %p183 = scmp.ne.s32.totalorder %s178, %s180
      %p184 = scmp.eq.s32.totalorder %s18, 0
      %p185 = por %p183, %p184
      %p186 = scmp.ne.s32.totalorder %s178, %s180
      %p187 = scmp.eq.s32.totalorder %s23, 1
      %p188 = por %p186, %p187
      %p189 = scmp.ne.s32.totalorder %s180, %s181
      %p190 = scmp.eq.s32.totalorder %s23, 0
      %p191 = por %p189, %p190
      %p192 = scmp.ne.s32.totalorder %s180, %s181
      %p193 = scmp.eq.s32.totalorder %s24, 1
      %p194 = por %p192, %p193
      %p196 = scmp.ne.s32.totalorder %s181, %s195
      %p197 = scmp.eq.s32.totalorder %s24, 0
      %p198 = por %p196, %p197
      %s200 = sadd.s32 %s199, 1
      %p203 = scmp.eq.s32.totalorder %s18, 1
      %p204 = scmp.ne.s32.totalorder %s199, %s201
      %p205 = scmp.eq.s32.totalorder %s18, 0
      %p206 = por %p204, %p205
      %p207 = scmp.ne.s32.totalorder %s199, %s201
      %p208 = scmp.eq.s32.totalorder %s23, 1
      %p209 = por %p207, %p208
      %p210 = scmp.ne.s32.totalorder %s201, %s202
      %p211 = scmp.eq.s32.totalorder %s23, 0
      %p212 = por %p210, %p211
      %p213 = scmp.ne.s32.totalorder %s201, %s202
      %p214 = scmp.eq.s32.totalorder %s24, 1
      %p215 = por %p213, %p214
      %p217 = scmp.ne.s32.totalorder %s202, %s216
      %p218 = scmp.eq.s32.totalorder %s24, 0
      %p219 = por %p217, %p218
      %s220 = ssub.s32 %s18, %s25
      %p221 = scmp.eq.s32.totalorder %s220, 0
      %s223 = sadd.s32 %s222, 1
      %s224 = scalar_select %p221, %s222, %s223
      %p227 = pneg %p221
      %p228 = scmp.eq.s32.totalorder %s18, 1
      %p229 = por %p227, %p228
      %p230 = scmp.ne.s32.totalorder %s222, %s225
      %p231 = scmp.eq.s32.totalorder %s18, 0
      %p232 = por %p230, %p231
      %p233 = scmp.ne.s32.totalorder %s222, %s225
      %p234 = scmp.eq.s32.totalorder %s23, 1
      %p235 = por %p233, %p234
      %p236 = scmp.ne.s32.totalorder %s225, %s226
      %p237 = scmp.eq.s32.totalorder %s23, 0
      %p238 = por %p236, %p237
      %p239 = scmp.ne.s32.totalorder %s225, %s226
      %p240 = scmp.eq.s32.totalorder %s24, 1
      %p241 = por %p239, %p240
      %p243 = scmp.ne.s32.totalorder %s226, %s242
      %p244 = scmp.eq.s32.totalorder %s24, 0
      %p245 = por %p243, %p244
      %p246 = scmp.le.s32.totalorder 1, %s18
      %p247 = scmp.lt.s32.totalorder %s18, 3
      %p248 = pnand %p246, %p247
      %p249 = pneg %p248
      // Predicated region
      $region9: #{ai85net6_forward.1} parent=5 // pred_check
        _
      $region10: #{ai85net6_forward.1} parent=5 // pred_check_branch
        %251 = sbr.rel (%p248) target = $region12
      $region11: #{ai85net6_forward.1} parent=5 // pred_region
        %s252 = ssub.s32 %s18, 1
        // Predicated region
        $region13: #{ai85net6_forward.1} parent=11 // pred_check
          %p253 = pneg %p65
        $region14: #{ai85net6_forward.1} parent=11 // pred_check_branch
          %255 = sbr.rel (%p253) target = $region16
        $region15: #{ai85net6_forward.1} parent=11 // pred_region
          _
        $region16: #{ai85net6_forward.1} parent=11 // pred_fallthru
          _
        // Predicated region
        $region17: #{ai85net6_forward.1} parent=11 // pred_check
          %p256 = pneg %p86
        $region18: #{ai85net6_forward.1} parent=11 // pred_check_branch
          %258 = sbr.rel (%p256) target = $region20
        $region19: #{ai85net6_forward.1} parent=11 // pred_region
          _
        $region20: #{ai85net6_forward.1} parent=11 // pred_fallthru
          _
        // Predicated region
        $region21: #{ai85net6_forward.1} parent=11 // pred_check
          %p259 = pneg %p107
        $region22: #{ai85net6_forward.1} parent=11 // pred_check_branch
          %261 = sbr.rel (%p259) target = $region24
        $region23: #{ai85net6_forward.1} parent=11 // pred_region
          _
        $region24: #{ai85net6_forward.1} parent=11 // pred_fallthru
          _
        // Predicated region
        $region25: #{ai85net6_forward.1} parent=11 // pred_check
          %p262 = pneg %p128
        $region26: #{ai85net6_forward.1} parent=11 // pred_check_branch
          %264 = sbr.rel (%p262) target = $region28
        $region27: #{ai85net6_forward.1} parent=11 // pred_region
          _
        $region28: #{ai85net6_forward.1} parent=11 // pred_fallthru
          _
        // Predicated region
        $region29: #{ai85net6_forward.1} parent=11 // pred_check
          %p265 = pneg %p149
        $region30: #{ai85net6_forward.1} parent=11 // pred_check_branch
          %267 = sbr.rel (%p265) target = $region32
        $region31: #{ai85net6_forward.1} parent=11 // pred_region
          _
        $region32: #{ai85net6_forward.1} parent=11 // pred_fallthru
          _
        // Predicated region
        $region33: #{ai85net6_forward.1} parent=11 // pred_check
          %p268 = pneg %p170
        $region34: #{ai85net6_forward.1} parent=11 // pred_check_branch
          %270 = sbr.rel (%p268) target = $region36
        $region35: #{ai85net6_forward.1} parent=11 // pred_region
          _
        $region36: #{ai85net6_forward.1} parent=11 // pred_fallthru
          _
        // Predicated region
        $region37: #{ai85net6_forward.1} parent=11 // pred_check
          %p271 = pneg %p191
        $region38: #{ai85net6_forward.1} parent=11 // pred_check_branch
          %273 = sbr.rel (%p271) target = $region40
        $region39: #{ai85net6_forward.1} parent=11 // pred_region
          _
        $region40: #{ai85net6_forward.1} parent=11 // pred_fallthru
          _
        // Predicated region
        $region41: #{ai85net6_forward.1} parent=11 // pred_check
          %p274 = pneg %p212
        $region42: #{ai85net6_forward.1} parent=11 // pred_check_branch
          %276 = sbr.rel (%p274) target = $region44
        $region43: #{ai85net6_forward.1} parent=11 // pred_region
          _
        $region44: #{ai85net6_forward.1} parent=11 // pred_fallthru
          _
      $region12: #{ai85net6_forward.1} parent=5 // pred_fallthru
        _
      %p277 = scmp.lt.s32.totalorder %s18, 2
      // Predicated region
      $region45: #{ai85net6_forward.1} parent=5 // pred_check
        %p278 = pneg %p277
      $region46: #{ai85net6_forward.1} parent=5 // pred_check_branch
        %280 = sbr.rel (%p278) target = $region48
      $region47: #{ai85net6_forward.1} parent=5 // pred_region
        // Predicated region
        $region49: #{ai85net6_forward.1} parent=47 // pred_check
          %p281 = pneg %p38
        $region50: #{ai85net6_forward.1} parent=47 // pred_check_branch
          %283 = sbr.rel (%p281) target = $region52
        $region51: #{ai85net6_forward.1} parent=47 // pred_region
          %p284 = scmp.lt.s32.totalorder %s18, 1
          %s285 = scalar_select %p284, %s18, 1
          %s286 = smul.addr %s285, 32
          %s287 = smul.addr %s286, 4
          %s288 = scalar_lea.vmem %s0, %s287
        $region52: #{ai85net6_forward.1} parent=47 // pred_fallthru
          _
      $region48: #{ai85net6_forward.1} parent=5 // pred_fallthru
        _
      %p289 = scmp.le.s32.totalorder 1, %s18
      %p290 = scmp.lt.s32.totalorder %s18, 3
      %p291 = pnand %p289, %p290
      %p292 = pneg %p291
      // Predicated region
      $region53: #{ai85net6_forward.1} parent=5 // pred_check
        _
      $region54: #{ai85net6_forward.1} parent=5 // pred_check_branch
        %294 = sbr.rel (%p291) target = $region56
      $region55: #{ai85net6_forward.1} parent=5 // pred_region
        %s295 = ssub.s32 %s18, 1
        %p296 = scmp.lt.s32.totalorder %s23, 1
        %s297 = scalar_select %p296, %s23, 1
        %s298 = smul.addr %s297, 32
        %s299 = smul.addr %s298, 4
        %s300 = scalar_lea.vmem %s0, %s299
        %p301 = pneg %p44
        %p302 = pneg %p41
        %p303 = pneg %p65
        %p304 = pneg %p62
        %p305 = pneg %p86
        %p306 = pneg %p83
        %p307 = pneg %p107
        %p308 = pneg %p104
        %p309 = pneg %p128
        %p310 = pneg %p125
        %p311 = pneg %p149
        %p312 = pneg %p146
        %p313 = pneg %p170
        %p314 = pneg %p167
        %p315 = pneg %p191
        %p316 = pneg %p188
        %p317 = pneg %p212
        %p318 = pneg %p209
        %p319 = pneg %p238
        %p320 = pneg %p235
        %s321 = sand.u32 %s225, 1
        %s322 = scalar_lea.sflag [#allocation10], %s321
        %s323 = sand.u32 %s225, 1
        %s324 = scalar_lea.vmem [#allocation9], %s323
        %p325 = scmp.lt.s32.totalorder %s23, 1
        %s326 = scalar_select %p325, %s23, 1
        %s327 = smul.addr %s326, 32
        %s328 = smul.addr %s327, 4
        %s329 = scalar_lea.vmem %s0, %s328
        %331 = vst [vmem:[#allocation2 + $0x100] sm:$0xff] 0.0
        %332 = vst [vmem:[#allocation2 + $0x108] sm:$0xff] 0.0
        %333 = vst [vmem:[#allocation2 + $0x110] sm:$0xff] 0.0
        %334 = vst [vmem:[#allocation4 + $0x50] sm:$0xff] 0.0
        %335 = vst [vmem:[#allocation4 + $0x58] sm:$0xff] 0.0
        %336 = vst [vmem:[#allocation6 + $0x18] sm:$0xff] 0.0
        %v337 = vld [vmem:[%s329] sm:$0xf]
        %v338 = vld [vmem:[%s329 + $0x4] sm:$0xf]
        %v339 = vld [vmem:[%s329 + $0x8] sm:$0xf]
        %v340 = vld [vmem:[%s329 + $0xc] sm:$0xf]
        %v341 = vld [vmem:[%s329 + $0x10] sm:$0xf]
        %v342 = vld [vmem:[%s329 + $0x14] sm:$0xf]
        %v343 = vld [vmem:[%s329 + $0x18] sm:$0xf]
        %v344 = vld [vmem:[%s329 + $0x1c] sm:$0xf]
        %v345 = vld [vmem:[%s329 + $0x20] sm:$0xf]
        %v346 = vld [vmem:[%s329 + $0x24] sm:$0xf]
        %v347 = vld [vmem:[%s329 + $0x28] sm:$0xf]
        %v348 = vld [vmem:[%s329 + $0x2c] sm:$0xf]
        %v349 = vld [vmem:[%s329 + $0x30] sm:$0xf]
        %v350 = vld [vmem:[%s329 + $0x34] sm:$0xf]
        %v351 = vld [vmem:[%s329 + $0x38] sm:$0xf]
        %v352 = vld [vmem:[%s329 + $0x3c] sm:$0xf]
        %v353 = vld [vmem:[%s329 + $0x40] sm:$0xf]
        %v354 = vld [vmem:[%s329 + $0x44] sm:$0xf]
        %v355 = vld [vmem:[%s329 + $0x48] sm:$0xf]
        %v356 = vld [vmem:[%s329 + $0x4c] sm:$0xf]
        %v357 = vld [vmem:[%s329 + $0x50] sm:$0xf]
        %v358 = vld [vmem:[%s329 + $0x54] sm:$0xf]
        %v359 = vld [vmem:[%s329 + $0x58] sm:$0xf]
        %v360 = vld [vmem:[%s329 + $0x5c] sm:$0xf]
        %v361 = vld [vmem:[%s329 + $0x60] sm:$0xf]
        %v362 = vld [vmem:[%s329 + $0x64] sm:$0xf]
        %v363 = vld [vmem:[%s329 + $0x68] sm:$0xf]
        %v364 = vld [vmem:[%s329 + $0x6c] sm:$0xf]
        %v365 = vld [vmem:[%s329 + $0x70] sm:$0xf]
        %v366 = vld [vmem:[%s329 + $0x74] sm:$0xf]
        %v367 = vld [vmem:[%s329 + $0x78] sm:$0xf]
        %v368 = vld [vmem:[%s329 + $0x7c] sm:$0xf]
        %v369 = vld [vmem:[%s1] sm:$0xf]
        %v370 = vld [vmem:[%s1 + $0x4] sm:$0xf]
        %v371 = vld [vmem:[%s1 + $0x8] sm:$0xf]
        %v372 = vld [vmem:[%s1 + $0xc] sm:$0xf]
        %v389 = vunpack.c.l.b16 %v337
        %v390 = vunpack.c.l.b16 %v338
        %v391 = vunpack.c.l.b16 %v339
        %v392 = vunpack.c.l.b16 %v340
        %v393 = vunpack.c.l.b16 %v341
        %v394 = vunpack.c.l.b16 %v342
        %v395 = vunpack.c.l.b16 %v343
        %v396 = vunpack.c.l.b16 %v344
        %v397 = vunpack.c.l.b16 %v345
        %v398 = vunpack.c.l.b16 %v346
        %v399 = vunpack.c.l.b16 %v347
        %v400 = vunpack.c.l.b16 %v348
        %v401 = vunpack.c.l.b16 %v349
        %v402 = vunpack.c.l.b16 %v350
        %v403 = vunpack.c.l.b16 %v351
        %v404 = vunpack.c.l.b16 %v352
        %v405 = vpack.c.b16 %v390, %v389
        %v406 = vpack.c.b16 %v392, %v391
        %v407 = vpack.c.b16 %v394, %v393
        %v408 = vpack.c.b16 %v396, %v395
        %v409 = vpack.c.b16 %v398, %v397
        %v410 = vpack.c.b16 %v400, %v399
        %v411 = vpack.c.b16 %v402, %v401
        %v412 = vpack.c.b16 %v404, %v403
        %v417 = vunpack.c.l.b16 %v369
        %v418 = vunpack.c.l.b16 %v370
        %v419 = vunpack.c.l.b16 %v371
        %v420 = vunpack.c.l.b16 %v372
        %v421 = vpack.c.b16 %v418, %v417
        %v422 = vpack.c.b16 %v420, %v419
        %vm425 = vcmask 261120
        %v427 = vsel %vm425, %v405, 0
        %v430 = vsel %vm425, %v406, 0
        %v433 = vsel %vm425, %v407, 0
        %v436 = vsel %vm425, %v408, 0
        %v439 = vsel %vm425, %v409, 0
        %v442 = vsel %vm425, %v410, 0
        %v445 = vsel %vm425, %v411, 0
        %v448 = vsel %vm425, %v412, 0
        %450 = vmatprep.subr.bf16.mxu0 0
        %451 = vmatpush1.bf16.msra.mxu0 %v421
        %452 = vmatprep.subr.bf16.mxu0 0
        %453 = vmatpush1.bf16.msra.mxu0 %v422
        %454 = vmatprep.subr.bf16.mxu0 0
        %455 = vmatpush1.bf16.msra.mxu0 0
        %456 = vmatprep.subr.bf16.mxu0 0
        %457 = vmatpush1.bf16.msra.mxu0 0
        %458 = vmatprep.subr.bf16.mxu0 0
        %459 = vmatpush1.bf16.msra.mxu0 0
        %460 = vmatprep.subr.bf16.mxu0 0
        %461 = vmatpush1.bf16.msra.mxu0 0
        %462 = vmatprep.subr.bf16.mxu0 0
        %463 = vmatpush1.bf16.msra.mxu0 0
        %464 = vmatprep.subr.bf16.mxu0 0
        %465 = vmatpush1.bf16.msra.mxu0 0
        %466 = vmatprep.subr.bf16.mxu0 0
        %467 = vmatpush1.bf16.msra.mxu0 0
        %468 = vmatprep.subr.bf16.mxu0 0
        %469 = vmatpush1.bf16.msra.mxu0 0
        %470 = vmatprep.subr.bf16.mxu0 0
        %471 = vmatpush1.bf16.msra.mxu0 0
        %472 = vmatprep.subr.bf16.mxu0 0
        %473 = vmatpush1.bf16.msra.mxu0 0
        %474 = vmatprep.subr.bf16.mxu0 0
        %475 = vmatpush1.bf16.msra.mxu0 0
        %476 = vmatprep.subr.bf16.mxu0 0
        %477 = vmatpush1.bf16.msra.mxu0 0
        %478 = vmatprep.subr.bf16.mxu0 0
        %479 = vmatpush1.bf16.msra.mxu0 0
        %480 = vmatprep.subr.bf16.mxu0 0
        %481 = vmatpush1.bf16.msra.mxu0 0
        %482 = vmatprep.mubr.bf16.mxu0 0
        %483 = vmatmul.mubr.bf16.gmra.mrb[0].mxu0 %v427
        %v484 = vpop.f32.mrb[0].mxu0
        %v485 = vadd.f32 0.0, %v484
        %v486 = vpop.f32.mrb[0].mxu0
        %v487 = vpop.f32.mrb[0].mxu0
        %v488 = vadd.f32 0.0, %v487
        %v489 = vpop.f32.mrb[0].mxu0
        %490 = vmatprep.mubr.bf16.mxu0 0
        %491 = vmatmul.mubr.bf16.gmra.mrb[0].mxu0 %v430
        %v492 = vpop.f32.mrb[0].mxu0
        %v493 = vadd.f32 0.0, %v492
        %v494 = vpop.f32.mrb[0].mxu0
        %v495 = vpop.f32.mrb[0].mxu0
        %v496 = vadd.f32 0.0, %v495
        %v497 = vpop.f32.mrb[0].mxu0
        %498 = vmatprep.mubr.bf16.mxu0 0
        %499 = vmatmul.mubr.bf16.gmra.mrb[0].mxu0 %v433
        %v500 = vpop.f32.mrb[0].mxu0
        %v501 = vadd.f32 0.0, %v500
        %v502 = vpop.f32.mrb[0].mxu0
        %v503 = vpop.f32.mrb[0].mxu0
        %v504 = vadd.f32 0.0, %v503
        %v505 = vpop.f32.mrb[0].mxu0
        %506 = vmatprep.mubr.bf16.mxu0 0
        %507 = vmatmul.mubr.bf16.gmra.mrb[0].mxu0 %v436
        %v508 = vpop.f32.mrb[0].mxu0
        %v509 = vadd.f32 0.0, %v508
        %v510 = vpop.f32.mrb[0].mxu0
        %v511 = vpop.f32.mrb[0].mxu0
        %v512 = vadd.f32 0.0, %v511
        %v513 = vpop.f32.mrb[0].mxu0
        %514 = vmatprep.mubr.bf16.mxu0 0
        %515 = vmatmul.mubr.bf16.gmra.mrb[0].mxu0 %v439
        %v516 = vpop.f32.mrb[0].mxu0
        %v517 = vadd.f32 0.0, %v516
        %v518 = vpop.f32.mrb[0].mxu0
        %v519 = vpop.f32.mrb[0].mxu0
        %v520 = vadd.f32 0.0, %v519
        %v521 = vpop.f32.mrb[0].mxu0
        %522 = vmatprep.mubr.bf16.mxu0 0
        %523 = vmatmul.mubr.bf16.gmra.mrb[0].mxu0 %v442
        %v524 = vpop.f32.mrb[0].mxu0
        %v525 = vadd.f32 0.0, %v524
        %v526 = vpop.f32.mrb[0].mxu0
        %v527 = vpop.f32.mrb[0].mxu0
        %v528 = vadd.f32 0.0, %v527
        %v529 = vpop.f32.mrb[0].mxu0
        %530 = vmatprep.mubr.bf16.mxu0 0
        %531 = vmatmul.mubr.bf16.gmra.mrb[0].mxu0 %v445
        %v532 = vpop.f32.mrb[0].mxu0
        %v533 = vadd.f32 0.0, %v532
        %v534 = vpop.f32.mrb[0].mxu0
        %v535 = vpop.f32.mrb[0].mxu0
        %v536 = vadd.f32 0.0, %v535
        %v537 = vpop.f32.mrb[0].mxu0
        %538 = vmatprep.mubr.bf16.mxu0 0
        %539 = vmatmul.mubr.bf16.gmra.mrb[0].mxu0 %v448
        %v540 = vpop.f32.mrb[0].mxu0
        %v541 = vadd.f32 0.0, %v540
        %v542 = vpop.f32.mrb[0].mxu0
        %v543 = vpop.f32.mrb[0].mxu0
        %v544 = vadd.f32 0.0, %v543
        %v545 = vpop.f32.mrb[0].mxu0
        %546 = vdwg.mxu0
        %v547 = vmax.f32 %v485, 0.0
        %v548 = vmax.f32 %v488, 0.0
        %v549 = vmax.f32 %v493, 0.0
        %v550 = vmax.f32 %v496, 0.0
        %v551 = vmax.f32 %v501, 0.0
        %v552 = vmax.f32 %v504, 0.0
        %v553 = vmax.f32 %v509, 0.0
        %v554 = vmax.f32 %v512, 0.0
        %v555 = vmax.f32 %v517, 0.0
        %v556 = vmax.f32 %v520, 0.0
        %v557 = vmax.f32 %v525, 0.0
        %v558 = vmax.f32 %v528, 0.0
        %v559 = vmax.f32 %v533, 0.0
        %v560 = vmax.f32 %v536, 0.0
        %v561 = vmax.f32 %v541, 0.0
        %v562 = vmax.f32 %v544, 0.0
        %v563 = vmax.f32 %v547, -1.0
        %v564 = vmax.f32 %v548, -1.0
        %v565 = vmax.f32 %v549, -1.0
        %v566 = vmax.f32 %v550, -1.0
        %v567 = vmax.f32 %v551, -1.0
        %v568 = vmax.f32 %v552, -1.0
        %v569 = vmax.f32 %v553, -1.0
        %v570 = vmax.f32 %v554, -1.0
        %v571 = vmax.f32 %v555, -1.0
        %v572 = vmax.f32 %v556, -1.0
        %v573 = vmax.f32 %v557, -1.0
        %v574 = vmax.f32 %v558, -1.0
        %v575 = vmax.f32 %v559, -1.0
        %v576 = vmax.f32 %v560, -1.0
        %v577 = vmax.f32 %v561, -1.0
        %v578 = vmax.f32 %v562, -1.0
        %v579 = vmin.f32 %v563, 1.0
        %v580 = vmin.f32 %v564, 1.0
        %v581 = vmin.f32 %v565, 1.0
        %v582 = vmin.f32 %v566, 1.0
        %v583 = vmin.f32 %v567, 1.0
        %v584 = vmin.f32 %v568, 1.0
        %v585 = vmin.f32 %v569, 1.0
        %v586 = vmin.f32 %v570, 1.0
        %v587 = vmin.f32 %v571, 1.0
        %v588 = vmin.f32 %v572, 1.0
        %v589 = vmin.f32 %v573, 1.0
        %v590 = vmin.f32 %v574, 1.0
        %v591 = vmin.f32 %v575, 1.0
        %v592 = vmin.f32 %v576, 1.0
        %v593 = vmin.f32 %v577, 1.0
        %v594 = vmin.f32 %v578, 1.0
        %595 = vst [vmem:[#allocation2] sm:$0xff] %v579
        %596 = vst [vmem:[#allocation2 + $0x8] sm:$0xff] %v580
        %597 = vst [vmem:[#allocation2 + $0x10] sm:$0xff] %v581
        %598 = vst [vmem:[#allocation2 + $0x18] sm:$0xff] %v582
        %599 = vst [vmem:[#allocation2 + $0x20] sm:$0xff] %v583
        %600 = vst [vmem:[#allocation2 + $0x28] sm:$0xff] %v584
        %601 = vst [vmem:[#allocation2 + $0x30] sm:$0xff] %v585
        %602 = vst [vmem:[#allocation2 + $0x38] sm:$0xff] %v586
        %603 = vst [vmem:[#allocation2 + $0x40] sm:$0xff] %v587
        %604 = vst [vmem:[#allocation2 + $0x48] sm:$0xff] %v588
        %605 = vst [vmem:[#allocation2 + $0x50] sm:$0xff] %v589
        %606 = vst [vmem:[#allocation2 + $0x58] sm:$0xff] %v590
        %607 = vst [vmem:[#allocation2 + $0x60] sm:$0xff] %v591
        %608 = vst [vmem:[#allocation2 + $0x68] sm:$0xff] %v592
        %609 = vst [vmem:[#allocation2 + $0x70] sm:$0xff] %v593
        %610 = vst [vmem:[#allocation2 + $0x78] sm:$0xff] %v594
        %v611 = vld [vmem:[%s1] sm:$0xf]
        %v612 = vld [vmem:[%s1 + $0x4] sm:$0xf]
        %v613 = vld [vmem:[%s1 + $0x8] sm:$0xf]
        %v614 = vld [vmem:[%s1 + $0xc] sm:$0xf]
        %v631 = vunpack.c.l.b16 %v353
        %v632 = vunpack.c.l.b16 %v354
        %v633 = vunpack.c.l.b16 %v355
        %v634 = vunpack.c.l.b16 %v356
        %v635 = vunpack.c.l.b16 %v357
        %v636 = vunpack.c.l.b16 %v358
        %v637 = vunpack.c.l.b16 %v359
        %v638 = vunpack.c.l.b16 %v360
        %v639 = vunpack.c.l.b16 %v361
        %v640 = vunpack.c.l.b16 %v362
        %v641 = vunpack.c.l.b16 %v363
        %v642 = vunpack.c.l.b16 %v364
        %v643 = vunpack.c.l.b16 %v365
        %v644 = vunpack.c.l.b16 %v366
        %v645 = vunpack.c.l.b16 %v367
        %v646 = vunpack.c.l.b16 %v368
        %v647 = vpack.c.b16 %v632, %v631
        %v648 = vpack.c.b16 %v634, %v633
        %v649 = vpack.c.b16 %v636, %v635
        %v650 = vpack.c.b16 %v638, %v637
        %v651 = vpack.c.b16 %v640, %v639
        %v652 = vpack.c.b16 %v642, %v641
        %v653 = vpack.c.b16 %v644, %v643
        %v654 = vpack.c.b16 %v646, %v645
        %v659 = vunpack.c.l.b16 %v611
        %v660 = vunpack.c.l.b16 %v612
        %v661 = vunpack.c.l.b16 %v613
        %v662 = vunpack.c.l.b16 %v614
        %v663 = vpack.c.b16 %v660, %v659
        %v664 = vpack.c.b16 %v662, %v661
        %v668 = vsel %vm425, %v647, 0
        %v671 = vsel %vm425, %v648, 0
        %v674 = vsel %vm425, %v649, 0
        %v677 = vsel %vm425, %v650, 0
        %v680 = vsel %vm425, %v651, 0
        %v683 = vsel %vm425, %v652, 0
        %v686 = vsel %vm425, %v653, 0
        %v689 = vsel %vm425, %v654, 0
        %691 = vmatprep.subr.bf16.mxu0 0
        %692 = vmatpush1.bf16.msra.mxu0 %v663
        %693 = vmatprep.subr.bf16.mxu0 0
        %694 = vmatpush1.bf16.msra.mxu0 %v664
        %695 = vmatprep.subr.bf16.mxu0 0
        %696 = vmatpush1.bf16.msra.mxu0 0
        %697 = vmatprep.subr.bf16.mxu0 0
        %698 = vmatpush1.bf16.msra.mxu0 0
        %699 = vmatprep.subr.bf16.mxu0 0
        %700 = vmatpush1.bf16.msra.mxu0 0
        %701 = vmatprep.subr.bf16.mxu0 0
        %702 = vmatpush1.bf16.msra.mxu0 0
        %703 = vmatprep.subr.bf16.mxu0 0
        %704 = vmatpush1.bf16.msra.mxu0 0
        %705 = vmatprep.subr.bf16.mxu0 0
        %706 = vmatpush1.bf16.msra.mxu0 0
        %707 = vmatprep.subr.bf16.mxu0 0
        %708 = vmatpush1.bf16.msra.mxu0 0
        %709 = vmatprep.subr.bf16.mxu0 0
        %710 = vmatpush1.bf16.msra.mxu0 0
        %711 = vmatprep.subr.bf16.mxu0 0
        %712 = vmatpush1.bf16.msra.mxu0 0
        %713 = vmatprep.subr.bf16.mxu0 0
        %714 = vmatpush1.bf16.msra.mxu0 0
        %715 = vmatprep.subr.bf16.mxu0 0
        %716 = vmatpush1.bf16.msra.mxu0 0
        %717 = vmatprep.subr.bf16.mxu0 0
        %718 = vmatpush1.bf16.msra.mxu0 0
        %719 = vmatprep.subr.bf16.mxu0 0
        %720 = vmatpush1.bf16.msra.mxu0 0
        %721 = vmatprep.subr.bf16.mxu0 0
        %722 = vmatpush1.bf16.msra.mxu0 0
        %723 = vmatprep.mubr.bf16.mxu0 0
        %724 = vmatmul.mubr.bf16.gmra.mrb[0].mxu0 %v668
        %v725 = vpop.f32.mrb[0].mxu0
        %v726 = vadd.f32 0.0, %v725
        %v727 = vpop.f32.mrb[0].mxu0
        %v728 = vpop.f32.mrb[0].mxu0
        %v729 = vadd.f32 0.0, %v728
        %v730 = vpop.f32.mrb[0].mxu0
        %731 = vmatprep.mubr.bf16.mxu0 0
        %732 = vmatmul.mubr.bf16.gmra.mrb[0].mxu0 %v671
        %v733 = vpop.f32.mrb[0].mxu0
        %v734 = vadd.f32 0.0, %v733
        %v735 = vpop.f32.mrb[0].mxu0
        %v736 = vpop.f32.mrb[0].mxu0
        %v737 = vadd.f32 0.0, %v736
        %v738 = vpop.f32.mrb[0].mxu0
        %739 = vmatprep.mubr.bf16.mxu0 0
        %740 = vmatmul.mubr.bf16.gmra.mrb[0].mxu0 %v674
        %v741 = vpop.f32.mrb[0].mxu0
        %v742 = vadd.f32 0.0, %v741
        %v743 = vpop.f32.mrb[0].mxu0
        %v744 = vpop.f32.mrb[0].mxu0
        %v745 = vadd.f32 0.0, %v744
        %v746 = vpop.f32.mrb[0].mxu0
        %747 = vmatprep.mubr.bf16.mxu0 0
        %748 = vmatmul.mubr.bf16.gmra.mrb[0].mxu0 %v677
        %v749 = vpop.f32.mrb[0].mxu0
        %v750 = vadd.f32 0.0, %v749
        %v751 = vpop.f32.mrb[0].mxu0
        %v752 = vpop.f32.mrb[0].mxu0
        %v753 = vadd.f32 0.0, %v752
        %v754 = vpop.f32.mrb[0].mxu0
        %755 = vmatprep.mubr.bf16.mxu0 0
        %756 = vmatmul.mubr.bf16.gmra.mrb[0].mxu0 %v680
        %v757 = vpop.f32.mrb[0].mxu0
        %v758 = vadd.f32 0.0, %v757
        %v759 = vpop.f32.mrb[0].mxu0
        %v760 = vpop.f32.mrb[0].mxu0
        %v761 = vadd.f32 0.0, %v760
        %v762 = vpop.f32.mrb[0].mxu0
        %763 = vmatprep.mubr.bf16.mxu0 0
        %764 = vmatmul.mubr.bf16.gmra.mrb[0].mxu0 %v683
        %v765 = vpop.f32.mrb[0].mxu0
        %v766 = vadd.f32 0.0, %v765
        %v767 = vpop.f32.mrb[0].mxu0
        %v768 = vpop.f32.mrb[0].mxu0
        %v769 = vadd.f32 0.0, %v768
        %v770 = vpop.f32.mrb[0].mxu0
        %771 = vmatprep.mubr.bf16.mxu0 0
        %772 = vmatmul.mubr.bf16.gmra.mrb[0].mxu0 %v686
        %v773 = vpop.f32.mrb[0].mxu0
        %v774 = vadd.f32 0.0, %v773
        %v775 = vpop.f32.mrb[0].mxu0
        %v776 = vpop.f32.mrb[0].mxu0
        %v777 = vadd.f32 0.0, %v776
        %v778 = vpop.f32.mrb[0].mxu0
        %779 = vmatprep.mubr.bf16.mxu0 0
        %780 = vmatmul.mubr.bf16.gmra.mrb[0].mxu0 %v689
        %v781 = vpop.f32.mrb[0].mxu0
        %v782 = vadd.f32 0.0, %v781
        %v783 = vpop.f32.mrb[0].mxu0
        %v784 = vpop.f32.mrb[0].mxu0
        %v785 = vadd.f32 0.0, %v784
        %v786 = vpop.f32.mrb[0].mxu0
        %787 = vdwg.mxu0
        %v788 = vmax.f32 %v726, 0.0
        %v789 = vmax.f32 %v729, 0.0
        %v790 = vmax.f32 %v734, 0.0
        %v791 = vmax.f32 %v737, 0.0
        %v792 = vmax.f32 %v742, 0.0
        %v793 = vmax.f32 %v745, 0.0
        %v794 = vmax.f32 %v750, 0.0
        %v795 = vmax.f32 %v753, 0.0
        %v796 = vmax.f32 %v758, 0.0
        %v797 = vmax.f32 %v761, 0.0
        %v798 = vmax.f32 %v766, 0.0
        %v799 = vmax.f32 %v769, 0.0
        %v800 = vmax.f32 %v774, 0.0
        %v801 = vmax.f32 %v777, 0.0
        %v802 = vmax.f32 %v782, 0.0
        %v803 = vmax.f32 %v785, 0.0
        %v804 = vmax.f32 %v788, -1.0
        %v805 = vmax.f32 %v789, -1.0
        %v806 = vmax.f32 %v790, -1.0
        %v807 = vmax.f32 %v791, -1.0
        %v808 = vmax.f32 %v792, -1.0
        %v809 = vmax.f32 %v793, -1.0
        %v810 = vmax.f32 %v794, -1.0
        %v811 = vmax.f32 %v795, -1.0
        %v812 = vmax.f32 %v796, -1.0
        %v813 = vmax.f32 %v797, -1.0
        %v814 = vmax.f32 %v798, -1.0
        %v815 = vmax.f32 %v799, -1.0
        %v816 = vmax.f32 %v800, -1.0
        %v817 = vmax.f32 %v801, -1.0
        %v818 = vmax.f32 %v802, -1.0
        %v819 = vmax.f32 %v803, -1.0
        %v820 = vmin.f32 %v804, 1.0
        %v821 = vmin.f32 %v805, 1.0
        %v822 = vmin.f32 %v806, 1.0
        %v823 = vmin.f32 %v807, 1.0
        %v824 = vmin.f32 %v808, 1.0
        %v825 = vmin.f32 %v809, 1.0
        %v826 = vmin.f32 %v810, 1.0
        %v827 = vmin.f32 %v811, 1.0
        %v828 = vmin.f32 %v812, 1.0
        %v829 = vmin.f32 %v813, 1.0
        %v830 = vmin.f32 %v814, 1.0
        %v831 = vmin.f32 %v815, 1.0
        %v832 = vmin.f32 %v816, 1.0
        %v833 = vmin.f32 %v817, 1.0
        %v834 = vmin.f32 %v818, 1.0
        %v835 = vmin.f32 %v819, 1.0
        %836 = vst [vmem:[#allocation2 + $0x80] sm:$0xff] %v820
        %837 = vst [vmem:[#allocation2 + $0x88] sm:$0xff] %v821
        %838 = vst [vmem:[#allocation2 + $0x90] sm:$0xff] %v822
        %839 = vst [vmem:[#allocation2 + $0x98] sm:$0xff] %v823
        %840 = vst [vmem:[#allocation2 + $0xa0] sm:$0xff] %v824
        %841 = vst [vmem:[#allocation2 + $0xa8] sm:$0xff] %v825
        %842 = vst [vmem:[#allocation2 + $0xb0] sm:$0xff] %v826
        %843 = vst [vmem:[#allocation2 + $0xb8] sm:$0xff] %v827
        %844 = vst [vmem:[#allocation2 + $0xc0] sm:$0xff] %v828
        %845 = vst [vmem:[#allocation2 + $0xc8] sm:$0xff] %v829
        %846 = vst [vmem:[#allocation2 + $0xd0] sm:$0xff] %v830
        %847 = vst [vmem:[#allocation2 + $0xd8] sm:$0xff] %v831
        %848 = vst [vmem:[#allocation2 + $0xe0] sm:$0xff] %v832
        %849 = vst [vmem:[#allocation2 + $0xe8] sm:$0xff] %v833
        %850 = vst [vmem:[#allocation2 + $0xf0] sm:$0xff] %v834
        %851 = vst [vmem:[#allocation2 + $0xf8] sm:$0xff] %v835
        %v852 = vld [vmem:[#allocation2] sm:$0xff]
        %v853 = vld [vmem:[#allocation2 + $0x8] sm:$0xff]
        %v854 = vld [vmem:[#allocation2 + $0x10] sm:$0xff]
        %v855 = vld [vmem:[#allocation2 + $0x18] sm:$0xff]
        %v856 = vld [vmem:[#allocation2 + $0x20] sm:$0xff]
        %v857 = vld [vmem:[#allocation2 + $0x28] sm:$0xff]
        %v858 = vld [vmem:[#allocation2 + $0x30] sm:$0xff]
        %v859 = vld [vmem:[#allocation2 + $0x38] sm:$0xff]
        %v860 = vld [vmem:[#allocation2 + $0x40] sm:$0xff]
        %v861 = vld [vmem:[#allocation2 + $0x48] sm:$0xff]
        %v862 = vld [vmem:[#allocation2 + $0x50] sm:$0xff]
        %v863 = vld [vmem:[#allocation2 + $0x58] sm:$0xff]
        %v864 = vld [vmem:[#allocation2 + $0x60] sm:$0xff]
        %v865 = vld [vmem:[#allocation2 + $0x68] sm:$0xff]
        %v866 = vld [vmem:[#allocation2 + $0x70] sm:$0xff]
        %v867 = vld [vmem:[#allocation2 + $0x78] sm:$0xff]
        %v868 = vld [vmem:[#allocation2 + $0x80] sm:$0xff]
        %v869 = vld [vmem:[#allocation2 + $0x88] sm:$0xff]
        %v870 = vld [vmem:[#allocation2 + $0x90] sm:$0xff]
        %v871 = vld [vmem:[#allocation2 + $0x98] sm:$0xff]
        %v872 = vld [vmem:[#allocation2 + $0xa0] sm:$0xff]
        %v873 = vld [vmem:[#allocation2 + $0xa8] sm:$0xff]
        %v874 = vld [vmem:[#allocation2 + $0xb0] sm:$0xff]
        %v875 = vld [vmem:[#allocation2 + $0xb8] sm:$0xff]
        %v876 = vld [vmem:[#allocation2 + $0xc0] sm:$0xff]
        %v877 = vld [vmem:[#allocation2 + $0xc8] sm:$0xff]
        %v878 = vld [vmem:[#allocation2 + $0xd0] sm:$0xff]
        %v879 = vld [vmem:[#allocation2 + $0xd8] sm:$0xff]
        %v880 = vld [vmem:[#allocation2 + $0xe0] sm:$0xff]
        %v881 = vld [vmem:[#allocation2 + $0xe8] sm:$0xff]
        %v882 = vld [vmem:[#allocation2 + $0xf0] sm:$0xff]
        %v883 = vld [vmem:[#allocation2 + $0xf8] sm:$0xff]
        %v884 = vld [vmem:[#allocation2 + $0x1] sm:$0xff]
        %v885 = vld [vmem:[#allocation2 + $0x9] sm:$0xff]
        %v886 = vld [vmem:[#allocation2 + $0x11] sm:$0xff]
        %v887 = vld [vmem:[#allocation2 + $0x19] sm:$0xff]
        %v888 = vld [vmem:[#allocation2 + $0x21] sm:$0xff]
        %v889 = vld [vmem:[#allocation2 + $0x29] sm:$0xff]
        %v890 = vld [vmem:[#allocation2 + $0x31] sm:$0xff]
        %v891 = vld [vmem:[#allocation2 + $0x39] sm:$0xff]
        %v892 = vld [vmem:[#allocation2 + $0x41] sm:$0xff]
        %v893 = vld [vmem:[#allocation2 + $0x49] sm:$0xff]
        %v894 = vld [vmem:[#allocation2 + $0x51] sm:$0xff]
        %v895 = vld [vmem:[#allocation2 + $0x59] sm:$0xff]
        %v896 = vld [vmem:[#allocation2 + $0x61] sm:$0xff]
        %v897 = vld [vmem:[#allocation2 + $0x69] sm:$0xff]
        %v898 = vld [vmem:[#allocation2 + $0x71] sm:$0xff]
        %v899 = vld [vmem:[#allocation2 + $0x79] sm:$0xff]
        %v900 = vld [vmem:[#allocation2 + $0x81] sm:$0xff]
        %v901 = vld [vmem:[#allocation2 + $0x89] sm:$0xff]
        %v902 = vld [vmem:[#allocation2 + $0x91] sm:$0xff]
        %v903 = vld [vmem:[#allocation2 + $0x99] sm:$0xff]
        %v904 = vld [vmem:[#allocation2 + $0xa1] sm:$0xff]
        %v905 = vld [vmem:[#allocation2 + $0xa9] sm:$0xff]
        %v906 = vld [vmem:[#allocation2 + $0xb1] sm:$0xff]
        %v907 = vld [vmem:[#allocation2 + $0xb9] sm:$0xff]
        %v908 = vld [vmem:[#allocation2 + $0xc1] sm:$0xff]
        %v909 = vld [vmem:[#allocation2 + $0xc9] sm:$0xff]
        %v910 = vld [vmem:[#allocation2 + $0xd1] sm:$0xff]
        %v911 = vld [vmem:[#allocation2 + $0xd9] sm:$0xff]
        %v912 = vld [vmem:[#allocation2 + $0xe1] sm:$0xff]
        %v913 = vld [vmem:[#allocation2 + $0xe9] sm:$0xff]
        %v914 = vld [vmem:[#allocation2 + $0xf1] sm:$0xff]
        %v915 = vld [vmem:[#allocation2 + $0xf9] sm:$0xff]
        %v916 = vld [vmem:[#allocation2 + $0x100] sm:$0xff]
        %v917 = vld [vmem:[#allocation2 + $0x108] sm:$0xff]
        %v918 = vld [vmem:[#allocation2 + $0x101] sm:$0xff]
        %v919 = vld [vmem:[#allocation2 + $0x109] sm:$0xff]
        %v920 = vmax.f32 %v852, %v884
        %v921 = vmax.f32 %v853, %v885
        %v922 = vmax.f32 %v854, %v886
        %v923 = vmax.f32 %v855, %v887
        %v924 = vmax.f32 %v856, %v888
        %v925 = vmax.f32 %v857, %v889
        %v926 = vmax.f32 %v858, %v890
        %v927 = vmax.f32 %v859, %v891
        %v928 = vmax.f32 %v860, %v892
        %v929 = vmax.f32 %v861, %v893
        %v930 = vmax.f32 %v862, %v894
        %v931 = vmax.f32 %v863, %v895
        %v932 = vmax.f32 %v864, %v896
        %v933 = vmax.f32 %v865, %v897
        %v934 = vmax.f32 %v866, %v898
        %v935 = vmax.f32 %v867, %v899
        %v936 = vmax.f32 %v868, %v900
        %v937 = vmax.f32 %v869, %v901
        %v938 = vmax.f32 %v870, %v902
        %v939 = vmax.f32 %v871, %v903
        %v940 = vmax.f32 %v872, %v904
        %v941 = vmax.f32 %v873, %v905
        %v942 = vmax.f32 %v874, %v906
        %v943 = vmax.f32 %v875, %v907
        %v944 = vmax.f32 %v876, %v908
        %v945 = vmax.f32 %v877, %v909
        %v946 = vmax.f32 %v878, %v910
        %v947 = vmax.f32 %v879, %v911
        %v948 = vmax.f32 %v880, %v912
        %v949 = vmax.f32 %v881, %v913
        %v950 = vmax.f32 %v882, %v914
        %v951 = vmax.f32 %v883, %v915
        %v952 = vmax.f32 %v916, %v918
        %v953 = vmax.f32 %v917, %v919
        %v954 = vmax.f32 %v920, %v922
        %v955 = vmax.f32 %v921, %v923
        %v956 = vmax.f32 %v922, %v924
        %v957 = vmax.f32 %v923, %v925
        %v958 = vmax.f32 %v924, %v926
        %v959 = vmax.f32 %v925, %v927
        %v960 = vmax.f32 %v926, %v928
        %v961 = vmax.f32 %v927, %v929
        %v962 = vmax.f32 %v928, %v930
        %v963 = vmax.f32 %v929, %v931
        %v964 = vmax.f32 %v930, %v932
        %v965 = vmax.f32 %v931, %v933
        %v966 = vmax.f32 %v932, %v934
        %v967 = vmax.f32 %v933, %v935
        %v968 = vmax.f32 %v934, %v936
        %v969 = vmax.f32 %v935, %v937
        %v970 = vmax.f32 %v936, %v938
        %v971 = vmax.f32 %v937, %v939
        %v972 = vmax.f32 %v938, %v940
        %v973 = vmax.f32 %v939, %v941
        %v974 = vmax.f32 %v940, %v942
        %v975 = vmax.f32 %v941, %v943
        %v976 = vmax.f32 %v942, %v944
        %v977 = vmax.f32 %v943, %v945
        %v978 = vmax.f32 %v944, %v946
        %v979 = vmax.f32 %v945, %v947
        %v980 = vmax.f32 %v946, %v948
        %v981 = vmax.f32 %v947, %v949
        %v982 = vmax.f32 %v948, %v950
        %v983 = vmax.f32 %v949, %v951
        %v984 = vmax.f32 %v950, %v952
        %v985 = vmax.f32 %v951, %v953
        %v986 = vld [vmem:[%s6] sm:$0xff]
        %v987 = vld [vmem:[%s6 + $0x8] sm:$0xff]
        %v988 = vld [vmem:[%s6 + $0x10] sm:$0xff]
        %v989 = vld [vmem:[%s6 + $0x18] sm:$0xff]
        %v990 = vld [vmem:[%s6 + $0x20] sm:$0xff]
        %v991 = vld [vmem:[%s6 + $0x28] sm:$0xff]
        %v992 = vld [vmem:[%s6 + $0x30] sm:$0xff]
        %v993 = vld [vmem:[%s6 + $0x38] sm:$0xff]
        %v994 = vld [vmem:[%s6 + $0x40] sm:$0xff]
        %v995 = vld [vmem:[%s6 + $0x48] sm:$0xff]
        %v996 = vld [vmem:[%s6 + $0x50] sm:$0xff]
        %v997 = vld [vmem:[%s6 + $0x58] sm:$0xff]
        %v998 = vld [vmem:[%s6 + $0x60] sm:$0xff]
        %v999 = vpack.c.bf16 %v955, %v954
        %v1000 = vpack.c.bf16 %v957, %v956
        %v1001 = vpack.c.bf16 %v959, %v958
        %v1002 = vpack.c.bf16 %v961, %v960
        %v1003 = vpack.c.bf16 %v963, %v962
        %v1004 = vpack.c.bf16 %v965, %v964
        %v1005 = vpack.c.bf16 %v967, %v966
        %v1006 = vpack.c.bf16 %v969, %v968
        %v1007 = vpack.c.bf16 %v971, %v970
        %v1008 = vpack.c.bf16 %v973, %v972
        %v1009 = vpack.c.bf16 %v975, %v974
        %v1010 = vpack.c.bf16 %v977, %v976
        %v1011 = vpack.c.bf16 %v979, %v978
        %v1012 = vpack.c.bf16 %v981, %v980
        %v1013 = vpack.c.bf16 %v983, %v982
        %v1014 = vpack.c.bf16 %v985, %v984
        %v1028 = vunpack.c.l.b16 %v986
        %v1029 = vunpack.c.h.b16 %v986
        %v1030 = vunpack.c.l.b16 %v987
        %v1031 = vunpack.c.h.b16 %v987
        %v1032 = vunpack.c.l.b16 %v988
        %v1033 = vunpack.c.h.b16 %v988
        %v1034 = vunpack.c.l.b16 %v989
        %v1035 = vunpack.c.h.b16 %v989
        %v1036 = vunpack.c.l.b16 %v990
        %v1037 = vunpack.c.h.b16 %v990
        %v1038 = vunpack.c.l.b16 %v991
        %v1039 = vunpack.c.h.b16 %v991
        %v1040 = vunpack.c.l.b16 %v992
        %v1041 = vunpack.c.h.b16 %v992
        %v1042 = vunpack.c.l.b16 %v993
        %v1043 = vunpack.c.h.b16 %v993
        %v1044 = vunpack.c.l.b16 %v994
        %v1045 = vunpack.c.h.b16 %v994
        %v1046 = vunpack.c.l.b16 %v995
        %v1047 = vunpack.c.h.b16 %v995
        %v1048 = vunpack.c.l.b16 %v996
        %v1049 = vunpack.c.h.b16 %v996
        %v1050 = vunpack.c.l.b16 %v997
        %v1051 = vunpack.c.h.b16 %v997
        %v1052 = vunpack.c.l.b16 %v998
        %v1053 = vunpack.c.h.b16 %v998
        %v1054 = vpack.c.b16 %v1030, %v1028
        %v1055 = vpack.c.b16 %v1031, %v1029
        %v1056 = vpack.c.b16 %v1034, %v1032
        %v1057 = vpack.c.b16 %v1035, %v1033
        %v1058 = vpack.c.b16 %v1038, %v1036
        %v1059 = vpack.c.b16 %v1039, %v1037
        %v1060 = vpack.c.b16 %v1042, %v1040
        %v1061 = vpack.c.b16 %v1043, %v1041
        %v1062 = vpack.c.b16 %v1046, %v1044
        %v1063 = vpack.c.b16 %v1047, %v1045
        %v1064 = vpack.c.b16 %v1050, %v1048
        %v1065 = vpack.c.b16 %v1051, %v1049
        %v1066 = vpack.c.b16 %v1052, %v1052
        %v1067 = vpack.c.b16 %v1053, %v1053
        %1082 = vmatprep.subr.bf16.mxu0 0
        %1083 = vmatpush1.bf16.msra.mxu0 %v999
        %1084 = vmatprep.subr.bf16.mxu0 0
        %1085 = vmatpush1.bf16.msra.mxu0 %v1000
        %1086 = vmatprep.subr.bf16.mxu0 0
        %1087 = vmatpush1.bf16.msra.mxu0 %v1001
        %1088 = vmatprep.subr.bf16.mxu0 0
        %1089 = vmatpush1.bf16.msra.mxu0 %v1002
        %1090 = vmatprep.subr.bf16.mxu0 0
        %1091 = vmatpush1.bf16.msra.mxu0 %v1003
        %1092 = vmatprep.subr.bf16.mxu0 0
        %1093 = vmatpush1.bf16.msra.mxu0 %v1004
        %1094 = vmatprep.subr.bf16.mxu0 0
        %1095 = vmatpush1.bf16.msra.mxu0 %v1005
        %1096 = vmatprep.subr.bf16.mxu0 0
        %1097 = vmatpush1.bf16.msra.mxu0 %v1006
        %1098 = vmatprep.subr.bf16.mxu0 0
        %1099 = vmatpush1.bf16.msra.mxu0 %v1007
        %1100 = vmatprep.subr.bf16.mxu0 0
        %1101 = vmatpush1.bf16.msra.mxu0 %v1008
        %1102 = vmatprep.subr.bf16.mxu0 0
        %1103 = vmatpush1.bf16.msra.mxu0 %v1009
        %1104 = vmatprep.subr.bf16.mxu0 0
        %1105 = vmatpush1.bf16.msra.mxu0 %v1010
        %1106 = vmatprep.subr.bf16.mxu0 0
        %1107 = vmatpush1.bf16.msra.mxu0 %v1011
        %1108 = vmatprep.subr.bf16.mxu0 0
        %1109 = vmatpush1.bf16.msra.mxu0 %v1012
        %1110 = vmatprep.subr.bf16.mxu0 0
        %1111 = vmatpush1.bf16.msra.mxu0 %v1013
        %1112 = vmatprep.subr.bf16.mxu0 0
        %1113 = vmatpush1.bf16.msra.mxu0 %v1014
        %1114 = vmatprep.mubr.bf16.mxu0 %v1055
        %1115 = vmatmul.mubr.bf16.gmra.mrb[0].mxu0 %v1054
        %v1116 = vpop.f32.mrb[0].mxu0
        %v1117 = vadd.f32 0.0, %v1116
        %v1118 = vpop.f32.mrb[0].mxu0
        %v1119 = vpop.f32.mrb[0].mxu0
        %v1120 = vadd.f32 0.0, %v1119
        %v1121 = vpop.f32.mrb[0].mxu0
        %1122 = vmatprep.mubr.bf16.mxu0 %v1057
        %1123 = vmatmul.mubr.bf16.gmra.mrb[0].mxu0 %v1056
        %v1124 = vpop.f32.mrb[0].mxu0
        %v1125 = vadd.f32 0.0, %v1124
        %v1126 = vpop.f32.mrb[0].mxu0
        %v1127 = vpop.f32.mrb[0].mxu0
        %v1128 = vadd.f32 0.0, %v1127
        %v1129 = vpop.f32.mrb[0].mxu0
        %1130 = vmatprep.mubr.bf16.mxu0 %v1059
        %1131 = vmatmul.mubr.bf16.gmra.mrb[0].mxu0 %v1058
        %v1132 = vpop.f32.mrb[0].mxu0
        %v1133 = vadd.f32 0.0, %v1132
        %v1134 = vpop.f32.mrb[0].mxu0
        %v1135 = vpop.f32.mrb[0].mxu0
        %v1136 = vadd.f32 0.0, %v1135
        %v1137 = vpop.f32.mrb[0].mxu0
        %1138 = vmatprep.mubr.bf16.mxu0 %v1061
        %1139 = vmatmul.mubr.bf16.gmra.mrb[0].mxu0 %v1060
        %v1140 = vpop.f32.mrb[0].mxu0
        %v1141 = vadd.f32 0.0, %v1140
        %v1142 = vpop.f32.mrb[0].mxu0
        %v1143 = vpop.f32.mrb[0].mxu0
        %v1144 = vadd.f32 0.0, %v1143
        %v1145 = vpop.f32.mrb[0].mxu0
        %1146 = vmatprep.mubr.bf16.mxu0 %v1063
        %1147 = vmatmul.mubr.bf16.gmra.mrb[0].mxu0 %v1062
        %v1148 = vpop.f32.mrb[0].mxu0
        %v1149 = vadd.f32 0.0, %v1148
        %v1150 = vpop.f32.mrb[0].mxu0
        %v1151 = vpop.f32.mrb[0].mxu0
        %v1152 = vadd.f32 0.0, %v1151
        %v1153 = vpop.f32.mrb[0].mxu0
        %1154 = vmatprep.mubr.bf16.mxu0 %v1065
        %1155 = vmatmul.mubr.bf16.gmra.mrb[0].mxu0 %v1064
        %v1156 = vpop.f32.mrb[0].mxu0
        %v1157 = vadd.f32 0.0, %v1156
        %v1158 = vpop.f32.mrb[0].mxu0
        %v1159 = vpop.f32.mrb[0].mxu0
        %v1160 = vadd.f32 0.0, %v1159
        %v1161 = vpop.f32.mrb[0].mxu0
        %1162 = vmatprep.mubr.bf16.mxu0 %v1067
        %1163 = vmatmul.mubr.bf16.gmra.mrb[0].mxu0 %v1066
        %v1164 = vpop.f32.mrb[0].mxu0
        %v1165 = vadd.f32 0.0, %v1164
        %v1166 = vpop.f32.mrb[0].mxu0
        %v1167 = vpop.f32.mrb[0].mxu0
        %v1168 = vpop.f32.mrb[0].mxu0
        %1169 = vdwg.mxu0
        %v1170 = vmax.f32 %v1117, -1.0
        %v1171 = vmax.f32 %v1120, -1.0
        %v1172 = vmax.f32 %v1125, -1.0
        %v1173 = vmax.f32 %v1128, -1.0
        %v1174 = vmax.f32 %v1133, -1.0
        %v1175 = vmax.f32 %v1136, -1.0
        %v1176 = vmax.f32 %v1141, -1.0
        %v1177 = vmax.f32 %v1144, -1.0
        %v1178 = vmax.f32 %v1149, -1.0
        %v1179 = vmax.f32 %v1152, -1.0
        %v1180 = vmax.f32 %v1157, -1.0
        %v1181 = vmax.f32 %v1160, -1.0
        %v1182 = vmax.f32 %v1165, -1.0
        %v1183 = vmin.f32 %v1170, 1.0
        %v1184 = vmin.f32 %v1171, 1.0
        %v1185 = vmin.f32 %v1172, 1.0
        %v1186 = vmin.f32 %v1173, 1.0
        %v1187 = vmin.f32 %v1174, 1.0
        %v1188 = vmin.f32 %v1175, 1.0
        %v1189 = vmin.f32 %v1176, 1.0
        %v1190 = vmin.f32 %v1177, 1.0
        %v1191 = vmin.f32 %v1178, 1.0
        %v1192 = vmin.f32 %v1179, 1.0
        %v1193 = vmin.f32 %v1180, 1.0
        %v1194 = vmin.f32 %v1181, 1.0
        %v1195 = vmin.f32 %v1182, 1.0
        %v1196 = vpack.c.bf16 %v1184, %v1183
        %v1197 = vpack.c.bf16 %v1186, %v1185
        %v1198 = vpack.c.bf16 %v1188, %v1187
        %v1199 = vpack.c.bf16 %v1190, %v1189
        %v1200 = vpack.c.bf16 %v1192, %v1191
        %v1201 = vpack.c.bf16 %v1194, %v1193
        %v1202 = vpack.c.bf16 %v1195, %v1195
        %v1210 = vunpack.c.l.b16 %v1196
        %v1211 = vunpack.c.h.b16 %v1196
        %v1212 = vunpack.c.l.b16 %v1197
        %v1213 = vunpack.c.h.b16 %v1197
        %v1214 = vunpack.c.l.b16 %v1198
        %v1215 = vunpack.c.h.b16 %v1198
        %v1216 = vunpack.c.l.b16 %v1199
        %v1217 = vunpack.c.h.b16 %v1199
        %v1218 = vunpack.c.l.b16 %v1200
        %v1219 = vunpack.c.h.b16 %v1200
        %v1220 = vunpack.c.l.b16 %v1201
        %v1221 = vunpack.c.h.b16 %v1201
        %v1222 = vunpack.c.l.b16 %v1202
        %v1223 = vpack.c.b16 %v1210, %v1210
        %v1224 = vpack.c.b16 %v1211, %v1211
        %v1225 = vpack.c.b16 %v1212, %v1212
        %v1226 = vpack.c.b16 %v1213, %v1213
        %v1227 = vpack.c.b16 %v1214, %v1214
        %v1228 = vpack.c.b16 %v1215, %v1215
        %v1229 = vpack.c.b16 %v1216, %v1216
        %v1230 = vpack.c.b16 %v1217, %v1217
        %v1231 = vpack.c.b16 %v1218, %v1218
        %v1232 = vpack.c.b16 %v1219, %v1219
        %v1233 = vpack.c.b16 %v1220, %v1220
        %v1234 = vpack.c.b16 %v1221, %v1221
        %v1235 = vpack.c.b16 %v1222, %v1222
        %1249 = vst [vmem:[#allocation3] sm:$0xf] %v1223
        %1250 = vst [vmem:[#allocation3 + $0x4] sm:$0xf] %v1224
        %1251 = vst [vmem:[#allocation3 + $0x8] sm:$0xf] %v1225
        %1252 = vst [vmem:[#allocation3 + $0xc] sm:$0xf] %v1226
        %1253 = vst [vmem:[#allocation3 + $0x10] sm:$0xf] %v1227
        %1254 = vst [vmem:[#allocation3 + $0x14] sm:$0xf] %v1228
        %1255 = vst [vmem:[#allocation3 + $0x18] sm:$0xf] %v1229
        %1256 = vst [vmem:[#allocation3 + $0x1c] sm:$0xf] %v1230
        %1257 = vst [vmem:[#allocation3 + $0x20] sm:$0xf] %v1231
        %1258 = vst [vmem:[#allocation3 + $0x24] sm:$0xf] %v1232
        %1259 = vst [vmem:[#allocation3 + $0x28] sm:$0xf] %v1233
        %1260 = vst [vmem:[#allocation3 + $0x2c] sm:$0xf] %v1234
        %1261 = vst [vmem:[#allocation3 + $0x30] sm:$0xf] %v1235
        %v1262 = vld [vmem:[#allocation3] sm:$0xf]
        %v1263 = vld [vmem:[#allocation3 + $0x4] sm:$0xf]
        %v1264 = vld [vmem:[#allocation3 + $0x8] sm:$0xf]
        %v1265 = vld [vmem:[#allocation3 + $0xc] sm:$0xf]
        %v1266 = vld [vmem:[#allocation3 + $0x10] sm:$0xf]
        %v1267 = vld [vmem:[#allocation3 + $0x14] sm:$0xf]
        %v1268 = vld [vmem:[#allocation3 + $0x18] sm:$0xf]
        %v1269 = vld [vmem:[#allocation3 + $0x1c] sm:$0xf]
        %v1270 = vld [vmem:[#allocation3 + $0x20] sm:$0xf]
        %v1271 = vld [vmem:[#allocation3 + $0x24] sm:$0xf]
        %v1272 = vld [vmem:[%s2] sm:$0xf]
        %v1273 = vld [vmem:[%s2 + $0x4] sm:$0xf]
        %v1274 = vld [vmem:[%s2 + $0x8] sm:$0xf]
        %v1275 = vld [vmem:[%s2 + $0xc] sm:$0xf]
        %v1276 = vld [vmem:[%s2 + $0x10] sm:$0xf]
        %v1277 = vld [vmem:[%s2 + $0x14] sm:$0xf]
        %v1278 = vld [vmem:[%s2 + $0x18] sm:$0xf]
        %v1279 = vld [vmem:[%s2 + $0x1c] sm:$0xf]
        %v1280 = vld [vmem:[%s2 + $0x20] sm:$0xf]
        %v1281 = vld [vmem:[%s2 + $0x24] sm:$0xf]
        %v1282 = vld [vmem:[%s2 + $0x28] sm:$0xf]
        %v1283 = vld [vmem:[%s2 + $0x2c] sm:$0xf]
        %v1284 = vld [vmem:[%s2 + $0x30] sm:$0xf]
        %v1285 = vld [vmem:[%s2 + $0x34] sm:$0xf]
        %v1286 = vld [vmem:[%s2 + $0x38] sm:$0xf]
        %v1287 = vld [vmem:[%s2 + $0x3c] sm:$0xf]
        %v1288 = vld [vmem:[#allocation3 + $0x28] sm:$0x1]
        %s1289 = scalar_lea.vmem %s2, 64
        %v1290 = vld [vmem:[%s1289] sm:$0xf]
        %v1291 = vld [vmem:[%s1289 + $0x4] sm:$0xf]
        %v1292 = vld [vmem:[%s1289 + $0x8] sm:$0xf]
        %v1293 = vld [vmem:[%s1289 + $0xc] sm:$0xf]
        %v1294 = vld [vmem:[%s1289 + $0x10] sm:$0xf]
        %v1295 = vld [vmem:[%s1289 + $0x14] sm:$0xf]
        %v1296 = vld [vmem:[%s1289 + $0x18] sm:$0xf]
        %v1297 = vld [vmem:[%s1289 + $0x1c] sm:$0xf]
        %v1298 = vld [vmem:[%s1289 + $0x20] sm:$0xf]
        %v1299 = vld [vmem:[%s1289 + $0x24] sm:$0xf]
        %v1300 = vld [vmem:[%s1289 + $0x28] sm:$0xf]
        %v1301 = vld [vmem:[%s1289 + $0x2c] sm:$0xf]
        %v1302 = vld [vmem:[%s1289 + $0x30] sm:$0xf]
        %v1303 = vld [vmem:[%s1289 + $0x34] sm:$0xf]
        %v1304 = vld [vmem:[%s1289 + $0x38] sm:$0xf]
        %v1305 = vld [vmem:[%s1289 + $0x3c] sm:$0xf]
        %v1317 = vunpack.c.l.b16 %v1262
        %v1318 = vunpack.c.l.b16 %v1263
        %v1319 = vunpack.c.l.b16 %v1264
        %v1320 = vunpack.c.l.b16 %v1265
        %v1321 = vunpack.c.l.b16 %v1266
        %v1322 = vunpack.c.l.b16 %v1267
        %v1323 = vunpack.c.l.b16 %v1268
        %v1324 = vunpack.c.l.b16 %v1269
        %v1325 = vunpack.c.l.b16 %v1270
        %v1326 = vunpack.c.l.b16 %v1271
        %v1327 = vunpack.c.l.b16 %v1288
        %v1328 = vpack.c.b16 %v1318, %v1317
        %v1329 = vpack.c.b16 %v1320, %v1319
        %v1330 = vpack.c.b16 %v1322, %v1321
        %v1331 = vpack.c.b16 %v1324, %v1323
        %v1332 = vpack.c.b16 %v1326, %v1325
        %v1333 = vpack.c.b16 %v1327, %v1327
        %vm1334 = vsmask.f32 7424
        %v1336 = vshrl.u32 %v1328, 16
        %v1338 = vshll.u32 %v1328, 16
        %v1340 = vrot.slane %v1338, 1
        %v1341 = vor.u32 %v1336, %v1340
        %v1343 = vshll.u32 %v1329, 16
        %v1345 = vrot.slane %v1343, 1
        %v1346 = vsel %vm1334, %v1341, %v1345
        %v1347 = vshrl.u32 %v1329, 16
        %v1349 = vor.u32 %v1347, %v1345
        %v1351 = vshll.u32 %v1330, 16
        %v1353 = vrot.slane %v1351, 1
        %v1354 = vsel %vm1334, %v1349, %v1353
        %v1355 = vshrl.u32 %v1330, 16
        %v1357 = vor.u32 %v1355, %v1353
        %v1359 = vshll.u32 %v1331, 16
        %v1361 = vrot.slane %v1359, 1
        %v1362 = vsel %vm1334, %v1357, %v1361
        %v1363 = vshrl.u32 %v1331, 16
        %v1365 = vor.u32 %v1363, %v1361
        %v1367 = vshll.u32 %v1332, 16
        %v1369 = vrot.slane %v1367, 1
        %v1370 = vsel %vm1334, %v1365, %v1369
        %v1371 = vshrl.u32 %v1332, 16
        %v1373 = vor.u32 %v1371, %v1369
        %v1375 = vshll.u32 %v1333, 16
        %v1377 = vrot.slane %v1375, 1
        %v1378 = vsel %vm1334, %v1373, %v1377
        %v1400 = vunpack.c.l.b16 %v1290
        %v1401 = vunpack.c.l.b16 %v1291
        %v1402 = vunpack.c.l.b16 %v1292
        %v1403 = vunpack.c.l.b16 %v1293
        %v1404 = vunpack.c.l.b16 %v1294
        %v1405 = vunpack.c.l.b16 %v1295
        %v1406 = vunpack.c.l.b16 %v1296
        %v1407 = vunpack.c.l.b16 %v1297
        %v1408 = vunpack.c.l.b16 %v1298
        %v1409 = vunpack.c.l.b16 %v1299
        %v1410 = vunpack.c.l.b16 %v1300
        %v1411 = vunpack.c.l.b16 %v1301
        %v1412 = vunpack.c.l.b16 %v1302
        %v1413 = vunpack.c.l.b16 %v1303
        %v1414 = vunpack.c.l.b16 %v1304
        %v1415 = vunpack.c.l.b16 %v1305
        %v1416 = vpack.c.b16 %v1401, %v1400
        %v1417 = vpack.c.b16 %v1403, %v1402
        %v1418 = vpack.c.b16 %v1405, %v1404
        %v1419 = vpack.c.b16 %v1407, %v1406
        %v1420 = vpack.c.b16 %v1409, %v1408
        %v1421 = vpack.c.b16 %v1411, %v1410
        %v1422 = vpack.c.b16 %v1413, %v1412
        %v1423 = vpack.c.b16 %v1415, %v1414
        %1432 = vmatprep.subr.bf16.mxu0 0
        %1433 = vmatpush1.bf16.msra.mxu0 %v1416
        %1434 = vmatprep.subr.bf16.mxu0 0
        %1435 = vmatpush1.bf16.msra.mxu0 %v1417
        %1436 = vmatprep.subr.bf16.mxu0 0
        %1437 = vmatpush1.bf16.msra.mxu0 %v1418
        %1438 = vmatprep.subr.bf16.mxu0 0
        %1439 = vmatpush1.bf16.msra.mxu0 %v1419
        %1440 = vmatprep.subr.bf16.mxu0 0
        %1441 = vmatpush1.bf16.msra.mxu0 %v1420
        %1442 = vmatprep.subr.bf16.mxu0 0
        %1443 = vmatpush1.bf16.msra.mxu0 %v1421
        %1444 = vmatprep.subr.bf16.mxu0 0
        %1445 = vmatpush1.bf16.msra.mxu0 %v1422
        %1446 = vmatprep.subr.bf16.mxu0 0
        %1447 = vmatpush1.bf16.msra.mxu0 %v1423
        %1448 = vmatprep.subr.bf16.mxu0 0
        %1449 = vmatpush1.bf16.msra.mxu0 0
        %1450 = vmatprep.subr.bf16.mxu0 0
        %1451 = vmatpush1.bf16.msra.mxu0 0
        %1452 = vmatprep.subr.bf16.mxu0 0
        %1453 = vmatpush1.bf16.msra.mxu0 0
        %1454 = vmatprep.subr.bf16.mxu0 0
        %1455 = vmatpush1.bf16.msra.mxu0 0
        %1456 = vmatprep.subr.bf16.mxu0 0
        %1457 = vmatpush1.bf16.msra.mxu0 0
        %1458 = vmatprep.subr.bf16.mxu0 0
        %1459 = vmatpush1.bf16.msra.mxu0 0
        %1460 = vmatprep.subr.bf16.mxu0 0
        %1461 = vmatpush1.bf16.msra.mxu0 0
        %1462 = vmatprep.subr.bf16.mxu0 0
        %1463 = vmatpush1.bf16.msra.mxu0 0
        %1464 = vmatprep.mubr.bf16.mxu0 0
        %1465 = vmatmul.mubr.bf16.gmra.mrb[0].mxu0 %v1346
        %v1466 = vpop.f32.mrb[0].mxu0
        %v1467 = vadd.f32 0.0, %v1466
        %v1468 = vpop.f32.mrb[0].mxu0
        %v1469 = vpop.f32.mrb[0].mxu0
        %v1470 = vadd.f32 0.0, %v1469
        %v1471 = vpop.f32.mrb[0].mxu0
        %1472 = vmatprep.mubr.bf16.mxu0 0
        %1473 = vmatmul.mubr.bf16.gmra.mrb[0].mxu0 %v1354
        %v1474 = vpop.f32.mrb[0].mxu0
        %v1475 = vadd.f32 0.0, %v1474
        %v1476 = vpop.f32.mrb[0].mxu0
        %v1477 = vpop.f32.mrb[0].mxu0
        %v1478 = vadd.f32 0.0, %v1477
        %v1479 = vpop.f32.mrb[0].mxu0
        %1480 = vmatprep.mubr.bf16.mxu0 0
        %1481 = vmatmul.mubr.bf16.gmra.mrb[0].mxu0 %v1362
        %v1482 = vpop.f32.mrb[0].mxu0
        %v1483 = vadd.f32 0.0, %v1482
        %v1484 = vpop.f32.mrb[0].mxu0
        %v1485 = vpop.f32.mrb[0].mxu0
        %v1486 = vadd.f32 0.0, %v1485
        %v1487 = vpop.f32.mrb[0].mxu0
        %1488 = vmatprep.mubr.bf16.mxu0 0
        %1489 = vmatmul.mubr.bf16.gmra.mrb[0].mxu0 %v1370
        %v1490 = vpop.f32.mrb[0].mxu0
        %v1491 = vadd.f32 0.0, %v1490
        %v1492 = vpop.f32.mrb[0].mxu0
        %v1493 = vpop.f32.mrb[0].mxu0
        %v1494 = vadd.f32 0.0, %v1493
        %v1495 = vpop.f32.mrb[0].mxu0
        %1496 = vmatprep.mubr.bf16.mxu0 0
        %1497 = vmatmul.mubr.bf16.gmra.mrb[0].mxu0 %v1378
        %v1498 = vpop.f32.mrb[0].mxu0
        %v1499 = vadd.f32 0.0, %v1498
        %v1500 = vpop.f32.mrb[0].mxu0
        %v1501 = vpop.f32.mrb[0].mxu0
        %v1502 = vadd.f32 0.0, %v1501
        %v1503 = vpop.f32.mrb[0].mxu0
        %1504 = vdwg.mxu0
        %v1526 = vunpack.c.l.b16 %v1272
        %v1527 = vunpack.c.l.b16 %v1273
        %v1528 = vunpack.c.l.b16 %v1274
        %v1529 = vunpack.c.l.b16 %v1275
        %v1530 = vunpack.c.l.b16 %v1276
        %v1531 = vunpack.c.l.b16 %v1277
        %v1532 = vunpack.c.l.b16 %v1278
        %v1533 = vunpack.c.l.b16 %v1279
        %v1534 = vunpack.c.l.b16 %v1280
        %v1535 = vunpack.c.l.b16 %v1281
        %v1536 = vunpack.c.l.b16 %v1282
        %v1537 = vunpack.c.l.b16 %v1283
        %v1538 = vunpack.c.l.b16 %v1284
        %v1539 = vunpack.c.l.b16 %v1285
        %v1540 = vunpack.c.l.b16 %v1286
        %v1541 = vunpack.c.l.b16 %v1287
        %v1542 = vpack.c.b16 %v1527, %v1526
        %v1543 = vpack.c.b16 %v1529, %v1528
        %v1544 = vpack.c.b16 %v1531, %v1530
        %v1545 = vpack.c.b16 %v1533, %v1532
        %v1546 = vpack.c.b16 %v1535, %v1534
        %v1547 = vpack.c.b16 %v1537, %v1536
        %v1548 = vpack.c.b16 %v1539, %v1538
        %v1549 = vpack.c.b16 %v1541, %v1540
        %1558 = vmatprep.subr.bf16.mxu0 0
        %1559 = vmatpush1.bf16.msra.mxu0 %v1542
        %1560 = vmatprep.subr.bf16.mxu0 0
        %1561 = vmatpush1.bf16.msra.mxu0 %v1543
        %1562 = vmatprep.subr.bf16.mxu0 0
        %1563 = vmatpush1.bf16.msra.mxu0 %v1544
        %1564 = vmatprep.subr.bf16.mxu0 0
        %1565 = vmatpush1.bf16.msra.mxu0 %v1545
        %1566 = vmatprep.subr.bf16.mxu0 0
        %1567 = vmatpush1.bf16.msra.mxu0 %v1546
        %1568 = vmatprep.subr.bf16.mxu0 0
        %1569 = vmatpush1.bf16.msra.mxu0 %v1547
        %1570 = vmatprep.subr.bf16.mxu0 0
        %1571 = vmatpush1.bf16.msra.mxu0 %v1548
        %1572 = vmatprep.subr.bf16.mxu0 0
        %1573 = vmatpush1.bf16.msra.mxu0 %v1549
        %1574 = vmatprep.subr.bf16.mxu0 0
        %1575 = vmatpush1.bf16.msra.mxu0 0
        %1576 = vmatprep.subr.bf16.mxu0 0
        %1577 = vmatpush1.bf16.msra.mxu0 0
        %1578 = vmatprep.subr.bf16.mxu0 0
        %1579 = vmatpush1.bf16.msra.mxu0 0
        %1580 = vmatprep.subr.bf16.mxu0 0
        %1581 = vmatpush1.bf16.msra.mxu0 0
        %1582 = vmatprep.subr.bf16.mxu0 0
        %1583 = vmatpush1.bf16.msra.mxu0 0
        %1584 = vmatprep.subr.bf16.mxu0 0
        %1585 = vmatpush1.bf16.msra.mxu0 0
        %1586 = vmatprep.subr.bf16.mxu0 0
        %1587 = vmatpush1.bf16.msra.mxu0 0
        %1588 = vmatprep.subr.bf16.mxu0 0
        %1589 = vmatpush1.bf16.msra.mxu0 0
        %1590 = vmatprep.mubr.bf16.mxu0 0
        %1591 = vmatmul.mubr.bf16.gmra.mrb[0].mxu0 %v1328
        %v1592 = vpop.f32.mrb[0].mxu0
        %v1593 = vadd.f32 %v1467, %v1592
        %v1594 = vpop.f32.mrb[0].mxu0
        %v1595 = vpop.f32.mrb[0].mxu0
        %v1596 = vadd.f32 %v1470, %v1595
        %v1597 = vpop.f32.mrb[0].mxu0
        %1598 = vmatprep.mubr.bf16.mxu0 0
        %1599 = vmatmul.mubr.bf16.gmra.mrb[0].mxu0 %v1329
        %v1600 = vpop.f32.mrb[0].mxu0
        %v1601 = vadd.f32 %v1475, %v1600
        %v1602 = vpop.f32.mrb[0].mxu0
        %v1603 = vpop.f32.mrb[0].mxu0
        %v1604 = vadd.f32 %v1478, %v1603
        %v1605 = vpop.f32.mrb[0].mxu0
        %1606 = vmatprep.mubr.bf16.mxu0 0
        %1607 = vmatmul.mubr.bf16.gmra.mrb[0].mxu0 %v1330
        %v1608 = vpop.f32.mrb[0].mxu0
        %v1609 = vadd.f32 %v1483, %v1608
        %v1610 = vpop.f32.mrb[0].mxu0
        %v1611 = vpop.f32.mrb[0].mxu0
        %v1612 = vadd.f32 %v1486, %v1611
        %v1613 = vpop.f32.mrb[0].mxu0
        %1614 = vmatprep.mubr.bf16.mxu0 0
        %1615 = vmatmul.mubr.bf16.gmra.mrb[0].mxu0 %v1331
        %v1616 = vpop.f32.mrb[0].mxu0
        %v1617 = vadd.f32 %v1491, %v1616
        %v1618 = vpop.f32.mrb[0].mxu0
        %v1619 = vpop.f32.mrb[0].mxu0
        %v1620 = vadd.f32 %v1494, %v1619
        %v1621 = vpop.f32.mrb[0].mxu0
        %1622 = vmatprep.mubr.bf16.mxu0 0
        %1623 = vmatmul.mubr.bf16.gmra.mrb[0].mxu0 %v1332
        %v1624 = vpop.f32.mrb[0].mxu0
        %v1625 = vadd.f32 %v1499, %v1624
        %v1626 = vpop.f32.mrb[0].mxu0
        %v1627 = vpop.f32.mrb[0].mxu0
        %v1628 = vadd.f32 %v1502, %v1627
        %v1629 = vpop.f32.mrb[0].mxu0
        %1630 = vdwg.mxu0
        %v1631 = vld [vmem:[#allocation3] sm:$0xe]
        %s1632 = scalar_lea.vmem %s2, 128
        %v1633 = vld [vmem:[%s1632] sm:$0xf]
        %v1634 = vld [vmem:[%s1632 + $0x4] sm:$0xf]
        %v1635 = vld [vmem:[%s1632 + $0x8] sm:$0xf]
        %v1636 = vld [vmem:[%s1632 + $0xc] sm:$0xf]
        %v1637 = vld [vmem:[%s1632 + $0x10] sm:$0xf]
        %v1638 = vld [vmem:[%s1632 + $0x14] sm:$0xf]
        %v1639 = vld [vmem:[%s1632 + $0x18] sm:$0xf]
        %v1640 = vld [vmem:[%s1632 + $0x1c] sm:$0xf]
        %v1641 = vld [vmem:[%s1632 + $0x20] sm:$0xf]
        %v1642 = vld [vmem:[%s1632 + $0x24] sm:$0xf]
        %v1643 = vld [vmem:[%s1632 + $0x28] sm:$0xf]
        %v1644 = vld [vmem:[%s1632 + $0x2c] sm:$0xf]
        %v1645 = vld [vmem:[%s1632 + $0x30] sm:$0xf]
        %v1646 = vld [vmem:[%s1632 + $0x34] sm:$0xf]
        %v1647 = vld [vmem:[%s1632 + $0x38] sm:$0xf]
        %v1648 = vld [vmem:[%s1632 + $0x3c] sm:$0xf]
        %v1650 = vunpack.c.l.b16 %v1631
        %v1651 = vpack.c.b16 %v1318, %v1650
        %vm1652 = vcmask 1046528
        %v1653 = vrot.slane %v1651, 1
        %v1654 = vrot.slane %v1329, 1
        %v1655 = vsel %vm1652, %v1653, %v1654
        %v1656 = vrot.slane %v1330, 1
        %v1657 = vsel %vm1652, %v1654, %v1656
        %v1658 = vrot.slane %v1331, 1
        %v1659 = vsel %vm1652, %v1656, %v1658
        %v1660 = vrot.slane %v1332, 1
        %v1661 = vsel %vm1652, %v1658, %v1660
        %v1662 = vrot.slane %v1333, 1
        %v1663 = vsel %vm1652, %v1660, %v1662
        %v1685 = vunpack.c.l.b16 %v1633
        %v1686 = vunpack.c.l.b16 %v1634
        %v1687 = vunpack.c.l.b16 %v1635
        %v1688 = vunpack.c.l.b16 %v1636
        %v1689 = vunpack.c.l.b16 %v1637
        %v1690 = vunpack.c.l.b16 %v1638
        %v1691 = vunpack.c.l.b16 %v1639
        %v1692 = vunpack.c.l.b16 %v1640
        %v1693 = vunpack.c.l.b16 %v1641
        %v1694 = vunpack.c.l.b16 %v1642
        %v1695 = vunpack.c.l.b16 %v1643
        %v1696 = vunpack.c.l.b16 %v1644
        %v1697 = vunpack.c.l.b16 %v1645
        %v1698 = vunpack.c.l.b16 %v1646
        %v1699 = vunpack.c.l.b16 %v1647
        %v1700 = vunpack.c.l.b16 %v1648
        %v1701 = vpack.c.b16 %v1686, %v1685
        %v1702 = vpack.c.b16 %v1688, %v1687
        %v1703 = vpack.c.b16 %v1690, %v1689
        %v1704 = vpack.c.b16 %v1692, %v1691
        %v1705 = vpack.c.b16 %v1694, %v1693
        %v1706 = vpack.c.b16 %v1696, %v1695
        %v1707 = vpack.c.b16 %v1698, %v1697
        %v1708 = vpack.c.b16 %v1700, %v1699
        %1717 = vmatprep.subr.bf16.mxu0 0
        %1718 = vmatpush1.bf16.msra.mxu0 %v1701
        %1719 = vmatprep.subr.bf16.mxu0 0
        %1720 = vmatpush1.bf16.msra.mxu0 %v1702
        %1721 = vmatprep.subr.bf16.mxu0 0
        %1722 = vmatpush1.bf16.msra.mxu0 %v1703
        %1723 = vmatprep.subr.bf16.mxu0 0
        %1724 = vmatpush1.bf16.msra.mxu0 %v1704
        %1725 = vmatprep.subr.bf16.mxu0 0
        %1726 = vmatpush1.bf16.msra.mxu0 %v1705
        %1727 = vmatprep.subr.bf16.mxu0 0
        %1728 = vmatpush1.bf16.msra.mxu0 %v1706
        %1729 = vmatprep.subr.bf16.mxu0 0
        %1730 = vmatpush1.bf16.msra.mxu0 %v1707
        %1731 = vmatprep.subr.bf16.mxu0 0
        %1732 = vmatpush1.bf16.msra.mxu0 %v1708
        %1733 = vmatprep.subr.bf16.mxu0 0
        %1734 = vmatpush1.bf16.msra.mxu0 0
        %1735 = vmatprep.subr.bf16.mxu0 0
        %1736 = vmatpush1.bf16.msra.mxu0 0
        %1737 = vmatprep.subr.bf16.mxu0 0
        %1738 = vmatpush1.bf16.msra.mxu0 0
        %1739 = vmatprep.subr.bf16.mxu0 0
        %1740 = vmatpush1.bf16.msra.mxu0 0
        %1741 = vmatprep.subr.bf16.mxu0 0
        %1742 = vmatpush1.bf16.msra.mxu0 0
        %1743 = vmatprep.subr.bf16.mxu0 0
        %1744 = vmatpush1.bf16.msra.mxu0 0
        %1745 = vmatprep.subr.bf16.mxu0 0
        %1746 = vmatpush1.bf16.msra.mxu0 0
        %1747 = vmatprep.subr.bf16.mxu0 0
        %1748 = vmatpush1.bf16.msra.mxu0 0
        %1749 = vmatprep.mubr.bf16.mxu0 0
        %1750 = vmatmul.mubr.bf16.gmra.mrb[0].mxu0 %v1655
        %v1751 = vpop.f32.mrb[0].mxu0
        %v1752 = vadd.f32 0.0, %v1751
        %v1753 = vpop.f32.mrb[0].mxu0
        %v1754 = vpop.f32.mrb[0].mxu0
        %v1755 = vadd.f32 0.0, %v1754
        %v1756 = vpop.f32.mrb[0].mxu0
        %1757 = vmatprep.mubr.bf16.mxu0 0
        %1758 = vmatmul.mubr.bf16.gmra.mrb[0].mxu0 %v1657
        %v1759 = vpop.f32.mrb[0].mxu0
        %v1760 = vadd.f32 0.0, %v1759
        %v1761 = vpop.f32.mrb[0].mxu0
        %v1762 = vpop.f32.mrb[0].mxu0
        %v1763 = vadd.f32 0.0, %v1762
        %v1764 = vpop.f32.mrb[0].mxu0
        %1765 = vmatprep.mubr.bf16.mxu0 0
        %1766 = vmatmul.mubr.bf16.gmra.mrb[0].mxu0 %v1659
        %v1767 = vpop.f32.mrb[0].mxu0
        %v1768 = vadd.f32 0.0, %v1767
        %v1769 = vpop.f32.mrb[0].mxu0
        %v1770 = vpop.f32.mrb[0].mxu0
        %v1771 = vadd.f32 0.0, %v1770
        %v1772 = vpop.f32.mrb[0].mxu0
        %1773 = vmatprep.mubr.bf16.mxu0 0
        %1774 = vmatmul.mubr.bf16.gmra.mrb[0].mxu0 %v1661
        %v1775 = vpop.f32.mrb[0].mxu0
        %v1776 = vadd.f32 0.0, %v1775
        %v1777 = vpop.f32.mrb[0].mxu0
        %v1778 = vpop.f32.mrb[0].mxu0
        %v1779 = vadd.f32 0.0, %v1778
        %v1780 = vpop.f32.mrb[0].mxu0
        %1781 = vmatprep.mubr.bf16.mxu0 0
        %1782 = vmatmul.mubr.bf16.gmra.mrb[0].mxu0 %v1663
        %v1783 = vpop.f32.mrb[0].mxu0
        %v1784 = vadd.f32 0.0, %v1783
        %v1785 = vpop.f32.mrb[0].mxu0
        %v1786 = vpop.f32.mrb[0].mxu0
        %v1787 = vadd.f32 0.0, %v1786
        %v1788 = vpop.f32.mrb[0].mxu0
        %1789 = vdwg.mxu0
        %v1790 = vadd.f32 %v1593, %v1752
        %v1791 = vadd.f32 %v1596, %v1755
        %v1792 = vadd.f32 %v1601, %v1760
        %v1793 = vadd.f32 %v1604, %v1763
        %v1794 = vadd.f32 %v1609, %v1768
        %v1795 = vadd.f32 %v1612, %v1771
        %v1796 = vadd.f32 %v1617, %v1776
        %v1797 = vadd.f32 %v1620, %v1779
        %v1798 = vadd.f32 %v1625, %v1784
        %v1799 = vadd.f32 %v1628, %v1787
        %v1800 = vld [vmem:[#allocation3 + $0x4] sm:$0xe]
        %v1801 = vld [vmem:[#allocation3 + $0x8] sm:$0xf]
        %v1802 = vld [vmem:[#allocation3 + $0xc] sm:$0xf]
        %v1803 = vld [vmem:[#allocation3 + $0x10] sm:$0xf]
        %v1804 = vld [vmem:[#allocation3 + $0x14] sm:$0xf]
        %v1805 = vld [vmem:[#allocation3 + $0x18] sm:$0xf]
        %v1806 = vld [vmem:[#allocation3 + $0x1c] sm:$0xf]
        %v1807 = vld [vmem:[#allocation3 + $0x20] sm:$0xf]
        %v1808 = vld [vmem:[#allocation3 + $0x24] sm:$0xf]
        %v1809 = vld [vmem:[#allocation3 + $0x28] sm:$0xf]
        %v1810 = vld [vmem:[#allocation3 + $0x2c] sm:$0x1]
        %s1811 = scalar_lea.vmem %s2, 192
        %v1812 = vld [vmem:[%s1811] sm:$0xf]
        %v1813 = vld [vmem:[%s1811 + $0x4] sm:$0xf]
        %v1814 = vld [vmem:[%s1811 + $0x8] sm:$0xf]
        %v1815 = vld [vmem:[%s1811 + $0xc] sm:$0xf]
        %v1816 = vld [vmem:[%s1811 + $0x10] sm:$0xf]
        %v1817 = vld [vmem:[%s1811 + $0x14] sm:$0xf]
        %v1818 = vld [vmem:[%s1811 + $0x18] sm:$0xf]
        %v1819 = vld [vmem:[%s1811 + $0x1c] sm:$0xf]
        %v1820 = vld [vmem:[%s1811 + $0x20] sm:$0xf]
        %v1821 = vld [vmem:[%s1811 + $0x24] sm:$0xf]
        %v1822 = vld [vmem:[%s1811 + $0x28] sm:$0xf]
        %v1823 = vld [vmem:[%s1811 + $0x2c] sm:$0xf]
        %v1824 = vld [vmem:[%s1811 + $0x30] sm:$0xf]
        %v1825 = vld [vmem:[%s1811 + $0x34] sm:$0xf]
        %v1826 = vld [vmem:[%s1811 + $0x38] sm:$0xf]
        %v1827 = vld [vmem:[%s1811 + $0x3c] sm:$0xf]
        %v1839 = vunpack.c.l.b16 %v1800
        %v1840 = vunpack.c.l.b16 %v1801
        %v1841 = vunpack.c.l.b16 %v1802
        %v1842 = vunpack.c.l.b16 %v1803
        %v1843 = vunpack.c.l.b16 %v1804
        %v1844 = vunpack.c.l.b16 %v1805
        %v1845 = vunpack.c.l.b16 %v1806
        %v1846 = vunpack.c.l.b16 %v1807
        %v1847 = vunpack.c.l.b16 %v1808
        %v1848 = vunpack.c.l.b16 %v1809
        %v1849 = vunpack.c.l.b16 %v1810
        %v1850 = vpack.c.b16 %v1840, %v1839
        %v1851 = vpack.c.b16 %v1842, %v1841
        %v1852 = vpack.c.b16 %v1844, %v1843
        %v1853 = vpack.c.b16 %v1846, %v1845
        %v1854 = vpack.c.b16 %v1848, %v1847
        %v1855 = vpack.c.b16 %v1849, %v1849
        %v1856 = vrot.slane %v1850, 1
        %v1857 = vrot.slane %v1851, 1
        %v1858 = vsel %vm1652, %v1856, %v1857
        %v1859 = vrot.slane %v1852, 1
        %v1860 = vsel %vm1652, %v1857, %v1859
        %v1861 = vrot.slane %v1853, 1
        %v1862 = vsel %vm1652, %v1859, %v1861
        %v1863 = vrot.slane %v1854, 1
        %v1864 = vsel %vm1652, %v1861, %v1863
        %v1865 = vrot.slane %v1855, 1
        %v1866 = vsel %vm1652, %v1863, %v1865
        %v1888 = vunpack.c.l.b16 %v1812
        %v1889 = vunpack.c.l.b16 %v1813
        %v1890 = vunpack.c.l.b16 %v1814
        %v1891 = vunpack.c.l.b16 %v1815
        %v1892 = vunpack.c.l.b16 %v1816
        %v1893 = vunpack.c.l.b16 %v1817
        %v1894 = vunpack.c.l.b16 %v1818
        %v1895 = vunpack.c.l.b16 %v1819
        %v1896 = vunpack.c.l.b16 %v1820
        %v1897 = vunpack.c.l.b16 %v1821
        %v1898 = vunpack.c.l.b16 %v1822
        %v1899 = vunpack.c.l.b16 %v1823
        %v1900 = vunpack.c.l.b16 %v1824
        %v1901 = vunpack.c.l.b16 %v1825
        %v1902 = vunpack.c.l.b16 %v1826
        %v1903 = vunpack.c.l.b16 %v1827
        %v1904 = vpack.c.b16 %v1889, %v1888
        %v1905 = vpack.c.b16 %v1891, %v1890
        %v1906 = vpack.c.b16 %v1893, %v1892
        %v1907 = vpack.c.b16 %v1895, %v1894
        %v1908 = vpack.c.b16 %v1897, %v1896
        %v1909 = vpack.c.b16 %v1899, %v1898
        %v1910 = vpack.c.b16 %v1901, %v1900
        %v1911 = vpack.c.b16 %v1903, %v1902
        %1920 = vmatprep.subr.bf16.mxu0 0
        %1921 = vmatpush1.bf16.msra.mxu0 %v1904
        %1922 = vmatprep.subr.bf16.mxu0 0
        %1923 = vmatpush1.bf16.msra.mxu0 %v1905
        %1924 = vmatprep.subr.bf16.mxu0 0
        %1925 = vmatpush1.bf16.msra.mxu0 %v1906
        %1926 = vmatprep.subr.bf16.mxu0 0
        %1927 = vmatpush1.bf16.msra.mxu0 %v1907
        %1928 = vmatprep.subr.bf16.mxu0 0
        %1929 = vmatpush1.bf16.msra.mxu0 %v1908
        %1930 = vmatprep.subr.bf16.mxu0 0
        %1931 = vmatpush1.bf16.msra.mxu0 %v1909
        %1932 = vmatprep.subr.bf16.mxu0 0
        %1933 = vmatpush1.bf16.msra.mxu0 %v1910
        %1934 = vmatprep.subr.bf16.mxu0 0
        %1935 = vmatpush1.bf16.msra.mxu0 %v1911
        %1936 = vmatprep.subr.bf16.mxu0 0
        %1937 = vmatpush1.bf16.msra.mxu0 0
        %1938 = vmatprep.subr.bf16.mxu0 0
        %1939 = vmatpush1.bf16.msra.mxu0 0
        %1940 = vmatprep.subr.bf16.mxu0 0
        %1941 = vmatpush1.bf16.msra.mxu0 0
        %1942 = vmatprep.subr.bf16.mxu0 0
        %1943 = vmatpush1.bf16.msra.mxu0 0
        %1944 = vmatprep.subr.bf16.mxu0 0
        %1945 = vmatpush1.bf16.msra.mxu0 0
        %1946 = vmatprep.subr.bf16.mxu0 0
        %1947 = vmatpush1.bf16.msra.mxu0 0
        %1948 = vmatprep.subr.bf16.mxu0 0
        %1949 = vmatpush1.bf16.msra.mxu0 0
        %1950 = vmatprep.subr.bf16.mxu0 0
        %1951 = vmatpush1.bf16.msra.mxu0 0
        %1952 = vmatprep.mubr.bf16.mxu0 0
        %1953 = vmatmul.mubr.bf16.gmra.mrb[0].mxu0 %v1858
        %v1954 = vpop.f32.mrb[0].mxu0
        %v1955 = vadd.f32 0.0, %v1954
        %v1956 = vpop.f32.mrb[0].mxu0
        %v1957 = vpop.f32.mrb[0].mxu0
        %v1958 = vadd.f32 0.0, %v1957
        %v1959 = vpop.f32.mrb[0].mxu0
        %1960 = vmatprep.mubr.bf16.mxu0 0
        %1961 = vmatmul.mubr.bf16.gmra.mrb[0].mxu0 %v1860
        %v1962 = vpop.f32.mrb[0].mxu0
        %v1963 = vadd.f32 0.0, %v1962
        %v1964 = vpop.f32.mrb[0].mxu0
        %v1965 = vpop.f32.mrb[0].mxu0
        %v1966 = vadd.f32 0.0, %v1965
        %v1967 = vpop.f32.mrb[0].mxu0
        %1968 = vmatprep.mubr.bf16.mxu0 0
        %1969 = vmatmul.mubr.bf16.gmra.mrb[0].mxu0 %v1862
        %v1970 = vpop.f32.mrb[0].mxu0
        %v1971 = vadd.f32 0.0, %v1970
        %v1972 = vpop.f32.mrb[0].mxu0
        %v1973 = vpop.f32.mrb[0].mxu0
        %v1974 = vadd.f32 0.0, %v1973
        %v1975 = vpop.f32.mrb[0].mxu0
        %1976 = vmatprep.mubr.bf16.mxu0 0
        %1977 = vmatmul.mubr.bf16.gmra.mrb[0].mxu0 %v1864
        %v1978 = vpop.f32.mrb[0].mxu0
        %v1979 = vadd.f32 0.0, %v1978
        %v1980 = vpop.f32.mrb[0].mxu0
        %v1981 = vpop.f32.mrb[0].mxu0
        %v1982 = vadd.f32 0.0, %v1981
        %v1983 = vpop.f32.mrb[0].mxu0
        %1984 = vmatprep.mubr.bf16.mxu0 0
        %1985 = vmatmul.mubr.bf16.gmra.mrb[0].mxu0 %v1866
        %v1986 = vpop.f32.mrb[0].mxu0
        %v1987 = vadd.f32 0.0, %v1986
        %v1988 = vpop.f32.mrb[0].mxu0
        %v1989 = vpop.f32.mrb[0].mxu0
        %v1990 = vadd.f32 0.0, %v1989
        %v1991 = vpop.f32.mrb[0].mxu0
        %1992 = vdwg.mxu0
        %v1993 = vadd.f32 %v1790, %v1955
        %v1994 = vadd.f32 %v1791, %v1958
        %v1995 = vadd.f32 %v1792, %v1963
        %v1996 = vadd.f32 %v1793, %v1966
        %v1997 = vadd.f32 %v1794, %v1971
        %v1998 = vadd.f32 %v1795, %v1974
        %v1999 = vadd.f32 %v1796, %v1979
        %v2000 = vadd.f32 %v1797, %v1982
        %v2001 = vadd.f32 %v1798, %v1987
        %v2002 = vadd.f32 %v1799, %v1990
        %v2003 = vld [vmem:[#allocation3 + $0x2c] sm:$0x3]
        %s2004 = scalar_lea.vmem %s2, 256
        %v2005 = vld [vmem:[%s2004] sm:$0xf]
        %v2006 = vld [vmem:[%s2004 + $0x4] sm:$0xf]
        %v2007 = vld [vmem:[%s2004 + $0x8] sm:$0xf]
        %v2008 = vld [vmem:[%s2004 + $0xc] sm:$0xf]
        %v2009 = vld [vmem:[%s2004 + $0x10] sm:$0xf]
        %v2010 = vld [vmem:[%s2004 + $0x14] sm:$0xf]
        %v2011 = vld [vmem:[%s2004 + $0x18] sm:$0xf]
        %v2012 = vld [vmem:[%s2004 + $0x1c] sm:$0xf]
        %v2013 = vld [vmem:[%s2004 + $0x20] sm:$0xf]
        %v2014 = vld [vmem:[%s2004 + $0x24] sm:$0xf]
        %v2015 = vld [vmem:[%s2004 + $0x28] sm:$0xf]
        %v2016 = vld [vmem:[%s2004 + $0x2c] sm:$0xf]
        %v2017 = vld [vmem:[%s2004 + $0x30] sm:$0xf]
        %v2018 = vld [vmem:[%s2004 + $0x34] sm:$0xf]
        %v2019 = vld [vmem:[%s2004 + $0x38] sm:$0xf]
        %v2020 = vld [vmem:[%s2004 + $0x3c] sm:$0xf]
        %v2022 = vunpack.c.l.b16 %v2003
        %v2023 = vpack.c.b16 %v2022, %v2022
        %vm2024 = vsmask.f32 6400
        %v2026 = vshrl.u32 %v1850, 16
        %v2028 = vrot.slane %v2026, 1
        %v2029 = vshll.u32 %v1850, 16
        %v2031 = vrot.slane %v2029, 2
        %v2032 = vor.u32 %v2028, %v2031
        %v2034 = vshrl.u32 %v1851, 16
        %v2036 = vrot.slane %v2034, 1
        %v2037 = vshll.u32 %v1851, 16
        %v2039 = vrot.slane %v2037, 2
        %v2040 = vor.u32 %v2036, %v2039
        %v2041 = vsel %vm2024, %v2032, %v2040
        %v2043 = vshrl.u32 %v1852, 16
        %v2045 = vrot.slane %v2043, 1
        %v2046 = vshll.u32 %v1852, 16
        %v2048 = vrot.slane %v2046, 2
        %v2049 = vor.u32 %v2045, %v2048
        %v2050 = vsel %vm2024, %v2040, %v2049
        %v2052 = vshrl.u32 %v1853, 16
        %v2054 = vrot.slane %v2052, 1
        %v2055 = vshll.u32 %v1853, 16
        %v2057 = vrot.slane %v2055, 2
        %v2058 = vor.u32 %v2054, %v2057
        %v2059 = vsel %vm2024, %v2049, %v2058
        %v2061 = vshrl.u32 %v1854, 16
        %v2063 = vrot.slane %v2061, 1
        %v2064 = vshll.u32 %v1854, 16
        %v2066 = vrot.slane %v2064, 2
        %v2067 = vor.u32 %v2063, %v2066
        %v2068 = vsel %vm2024, %v2058, %v2067
        %v2070 = vshrl.u32 %v2023, 16
        %v2072 = vrot.slane %v2070, 1
        %v2073 = vshll.u32 %v2023, 16
        %v2075 = vrot.slane %v2073, 2
        %v2076 = vor.u32 %v2072, %v2075
        %v2077 = vsel %vm2024, %v2067, %v2076
        %v2099 = vunpack.c.l.b16 %v2005
        %v2100 = vunpack.c.l.b16 %v2006
        %v2101 = vunpack.c.l.b16 %v2007
        %v2102 = vunpack.c.l.b16 %v2008
        %v2103 = vunpack.c.l.b16 %v2009
        %v2104 = vunpack.c.l.b16 %v2010
        %v2105 = vunpack.c.l.b16 %v2011
        %v2106 = vunpack.c.l.b16 %v2012
        %v2107 = vunpack.c.l.b16 %v2013
        %v2108 = vunpack.c.l.b16 %v2014
        %v2109 = vunpack.c.l.b16 %v2015
        %v2110 = vunpack.c.l.b16 %v2016
        %v2111 = vunpack.c.l.b16 %v2017
        %v2112 = vunpack.c.l.b16 %v2018
        %v2113 = vunpack.c.l.b16 %v2019
        %v2114 = vunpack.c.l.b16 %v2020
        %v2115 = vpack.c.b16 %v2100, %v2099
        %v2116 = vpack.c.b16 %v2102, %v2101
        %v2117 = vpack.c.b16 %v2104, %v2103
        %v2118 = vpack.c.b16 %v2106, %v2105
        %v2119 = vpack.c.b16 %v2108, %v2107
        %v2120 = vpack.c.b16 %v2110, %v2109
        %v2121 = vpack.c.b16 %v2112, %v2111
        %v2122 = vpack.c.b16 %v2114, %v2113
        %2131 = vmatprep.subr.bf16.mxu0 0
        %2132 = vmatpush1.bf16.msra.mxu0 %v2115
        %2133 = vmatprep.subr.bf16.mxu0 0
        %2134 = vmatpush1.bf16.msra.mxu0 %v2116
        %2135 = vmatprep.subr.bf16.mxu0 0
        %2136 = vmatpush1.bf16.msra.mxu0 %v2117
        %2137 = vmatprep.subr.bf16.mxu0 0
        %2138 = vmatpush1.bf16.msra.mxu0 %v2118
        %2139 = vmatprep.subr.bf16.mxu0 0
        %2140 = vmatpush1.bf16.msra.mxu0 %v2119
        %2141 = vmatprep.subr.bf16.mxu0 0
        %2142 = vmatpush1.bf16.msra.mxu0 %v2120
        %2143 = vmatprep.subr.bf16.mxu0 0
        %2144 = vmatpush1.bf16.msra.mxu0 %v2121
        %2145 = vmatprep.subr.bf16.mxu0 0
        %2146 = vmatpush1.bf16.msra.mxu0 %v2122
        %2147 = vmatprep.subr.bf16.mxu0 0
        %2148 = vmatpush1.bf16.msra.mxu0 0
        %2149 = vmatprep.subr.bf16.mxu0 0
        %2150 = vmatpush1.bf16.msra.mxu0 0
        %2151 = vmatprep.subr.bf16.mxu0 0
        %2152 = vmatpush1.bf16.msra.mxu0 0
        %2153 = vmatprep.subr.bf16.mxu0 0
        %2154 = vmatpush1.bf16.msra.mxu0 0
        %2155 = vmatprep.subr.bf16.mxu0 0
        %2156 = vmatpush1.bf16.msra.mxu0 0
        %2157 = vmatprep.subr.bf16.mxu0 0
        %2158 = vmatpush1.bf16.msra.mxu0 0
        %2159 = vmatprep.subr.bf16.mxu0 0
        %2160 = vmatpush1.bf16.msra.mxu0 0
        %2161 = vmatprep.subr.bf16.mxu0 0
        %2162 = vmatpush1.bf16.msra.mxu0 0
        %2163 = vmatprep.mubr.bf16.mxu0 0
        %2164 = vmatmul.mubr.bf16.gmra.mrb[0].mxu0 %v2041
        %v2165 = vpop.f32.mrb[0].mxu0
        %v2166 = vadd.f32 0.0, %v2165
        %v2167 = vpop.f32.mrb[0].mxu0
        %v2168 = vpop.f32.mrb[0].mxu0
        %v2169 = vadd.f32 0.0, %v2168
        %v2170 = vpop.f32.mrb[0].mxu0
        %2171 = vmatprep.mubr.bf16.mxu0 0
        %2172 = vmatmul.mubr.bf16.gmra.mrb[0].mxu0 %v2050
        %v2173 = vpop.f32.mrb[0].mxu0
        %v2174 = vadd.f32 0.0, %v2173
        %v2175 = vpop.f32.mrb[0].mxu0
        %v2176 = vpop.f32.mrb[0].mxu0
        %v2177 = vadd.f32 0.0, %v2176
        %v2178 = vpop.f32.mrb[0].mxu0
        %2179 = vmatprep.mubr.bf16.mxu0 0
        %2180 = vmatmul.mubr.bf16.gmra.mrb[0].mxu0 %v2059
        %v2181 = vpop.f32.mrb[0].mxu0
        %v2182 = vadd.f32 0.0, %v2181
        %v2183 = vpop.f32.mrb[0].mxu0
        %v2184 = vpop.f32.mrb[0].mxu0
        %v2185 = vadd.f32 0.0, %v2184
        %v2186 = vpop.f32.mrb[0].mxu0
        %2187 = vmatprep.mubr.bf16.mxu0 0
        %2188 = vmatmul.mubr.bf16.gmra.mrb[0].mxu0 %v2068
        %v2189 = vpop.f32.mrb[0].mxu0
        %v2190 = vadd.f32 0.0, %v2189
        %v2191 = vpop.f32.mrb[0].mxu0
        %v2192 = vpop.f32.mrb[0].mxu0
        %v2193 = vadd.f32 0.0, %v2192
        %v2194 = vpop.f32.mrb[0].mxu0
        %2195 = vmatprep.mubr.bf16.mxu0 0
        %2196 = vmatmul.mubr.bf16.gmra.mrb[0].mxu0 %v2077
        %v2197 = vpop.f32.mrb[0].mxu0
        %v2198 = vadd.f32 0.0, %v2197
        %v2199 = vpop.f32.mrb[0].mxu0
        %v2200 = vpop.f32.mrb[0].mxu0
        %v2201 = vadd.f32 0.0, %v2200
        %v2202 = vpop.f32.mrb[0].mxu0
        %2203 = vdwg.mxu0
        %v2204 = vadd.f32 %v1993, %v2166
        %v2205 = vadd.f32 %v1994, %v2169
        %v2206 = vadd.f32 %v1995, %v2174
        %v2207 = vadd.f32 %v1996, %v2177
        %v2208 = vadd.f32 %v1997, %v2182
        %v2209 = vadd.f32 %v1998, %v2185
        %v2210 = vadd.f32 %v1999, %v2190
        %v2211 = vadd.f32 %v2000, %v2193
        %v2212 = vadd.f32 %v2001, %v2198
        %v2213 = vadd.f32 %v2002, %v2201
        %v2214 = vld [vmem:[#allocation3 + $0x4] sm:$0xc]
        %s2215 = scalar_lea.vmem %s2, 320
        %v2216 = vld [vmem:[%s2215] sm:$0xf]
        %v2217 = vld [vmem:[%s2215 + $0x4] sm:$0xf]
        %v2218 = vld [vmem:[%s2215 + $0x8] sm:$0xf]
        %v2219 = vld [vmem:[%s2215 + $0xc] sm:$0xf]
        %v2220 = vld [vmem:[%s2215 + $0x10] sm:$0xf]
        %v2221 = vld [vmem:[%s2215 + $0x14] sm:$0xf]
        %v2222 = vld [vmem:[%s2215 + $0x18] sm:$0xf]
        %v2223 = vld [vmem:[%s2215 + $0x1c] sm:$0xf]
        %v2224 = vld [vmem:[%s2215 + $0x20] sm:$0xf]
        %v2225 = vld [vmem:[%s2215 + $0x24] sm:$0xf]
        %v2226 = vld [vmem:[%s2215 + $0x28] sm:$0xf]
        %v2227 = vld [vmem:[%s2215 + $0x2c] sm:$0xf]
        %v2228 = vld [vmem:[%s2215 + $0x30] sm:$0xf]
        %v2229 = vld [vmem:[%s2215 + $0x34] sm:$0xf]
        %v2230 = vld [vmem:[%s2215 + $0x38] sm:$0xf]
        %v2231 = vld [vmem:[%s2215 + $0x3c] sm:$0xf]
        %v2233 = vunpack.c.l.b16 %v2214
        %v2234 = vpack.c.b16 %v1840, %v2233
        %vm2235 = vcmask 1045504
        %v2236 = vrot.slane %v2234, 2
        %v2237 = vrot.slane %v1851, 2
        %v2238 = vsel %vm2235, %v2236, %v2237
        %v2239 = vrot.slane %v1852, 2
        %v2240 = vsel %vm2235, %v2237, %v2239
        %v2241 = vrot.slane %v1853, 2
        %v2242 = vsel %vm2235, %v2239, %v2241
        %v2243 = vrot.slane %v1854, 2
        %v2244 = vsel %vm2235, %v2241, %v2243
        %v2245 = vrot.slane %v2023, 2
        %v2246 = vsel %vm2235, %v2243, %v2245
        %v2268 = vunpack.c.l.b16 %v2216
        %v2269 = vunpack.c.l.b16 %v2217
        %v2270 = vunpack.c.l.b16 %v2218
        %v2271 = vunpack.c.l.b16 %v2219
        %v2272 = vunpack.c.l.b16 %v2220
        %v2273 = vunpack.c.l.b16 %v2221
        %v2274 = vunpack.c.l.b16 %v2222
        %v2275 = vunpack.c.l.b16 %v2223
        %v2276 = vunpack.c.l.b16 %v2224
        %v2277 = vunpack.c.l.b16 %v2225
        %v2278 = vunpack.c.l.b16 %v2226
        %v2279 = vunpack.c.l.b16 %v2227
        %v2280 = vunpack.c.l.b16 %v2228
        %v2281 = vunpack.c.l.b16 %v2229
        %v2282 = vunpack.c.l.b16 %v2230
        %v2283 = vunpack.c.l.b16 %v2231
        %v2284 = vpack.c.b16 %v2269, %v2268
        %v2285 = vpack.c.b16 %v2271, %v2270
        %v2286 = vpack.c.b16 %v2273, %v2272
        %v2287 = vpack.c.b16 %v2275, %v2274
        %v2288 = vpack.c.b16 %v2277, %v2276
        %v2289 = vpack.c.b16 %v2279, %v2278
        %v2290 = vpack.c.b16 %v2281, %v2280
        %v2291 = vpack.c.b16 %v2283, %v2282
        %2300 = vmatprep.subr.bf16.mxu0 0
        %2301 = vmatpush1.bf16.msra.mxu0 %v2284
        %2302 = vmatprep.subr.bf16.mxu0 0
        %2303 = vmatpush1.bf16.msra.mxu0 %v2285
        %2304 = vmatprep.subr.bf16.mxu0 0
        %2305 = vmatpush1.bf16.msra.mxu0 %v2286
        %2306 = vmatprep.subr.bf16.mxu0 0
        %2307 = vmatpush1.bf16.msra.mxu0 %v2287
        %2308 = vmatprep.subr.bf16.mxu0 0
        %2309 = vmatpush1.bf16.msra.mxu0 %v2288
        %2310 = vmatprep.subr.bf16.mxu0 0
        %2311 = vmatpush1.bf16.msra.mxu0 %v2289
        %2312 = vmatprep.subr.bf16.mxu0 0
        %2313 = vmatpush1.bf16.msra.mxu0 %v2290
        %2314 = vmatprep.subr.bf16.mxu0 0
        %2315 = vmatpush1.bf16.msra.mxu0 %v2291
        %2316 = vmatprep.subr.bf16.mxu0 0
        %2317 = vmatpush1.bf16.msra.mxu0 0
        %2318 = vmatprep.subr.bf16.mxu0 0
        %2319 = vmatpush1.bf16.msra.mxu0 0
        %2320 = vmatprep.subr.bf16.mxu0 0
        %2321 = vmatpush1.bf16.msra.mxu0 0
        %2322 = vmatprep.subr.bf16.mxu0 0
        %2323 = vmatpush1.bf16.msra.mxu0 0
        %2324 = vmatprep.subr.bf16.mxu0 0
        %2325 = vmatpush1.bf16.msra.mxu0 0
        %2326 = vmatprep.subr.bf16.mxu0 0
        %2327 = vmatpush1.bf16.msra.mxu0 0
        %2328 = vmatprep.subr.bf16.mxu0 0
        %2329 = vmatpush1.bf16.msra.mxu0 0
        %2330 = vmatprep.subr.bf16.mxu0 0
        %2331 = vmatpush1.bf16.msra.mxu0 0
        %2332 = vmatprep.mubr.bf16.mxu0 0
        %2333 = vmatmul.mubr.bf16.gmra.mrb[0].mxu0 %v2238
        %v2334 = vpop.f32.mrb[0].mxu0
        %v2335 = vadd.f32 0.0, %v2334
        %v2336 = vpop.f32.mrb[0].mxu0
        %v2337 = vpop.f32.mrb[0].mxu0
        %v2338 = vadd.f32 0.0, %v2337
        %v2339 = vpop.f32.mrb[0].mxu0
        %2340 = vmatprep.mubr.bf16.mxu0 0
        %2341 = vmatmul.mubr.bf16.gmra.mrb[0].mxu0 %v2240
        %v2342 = vpop.f32.mrb[0].mxu0
        %v2343 = vadd.f32 0.0, %v2342
        %v2344 = vpop.f32.mrb[0].mxu0
        %v2345 = vpop.f32.mrb[0].mxu0
        %v2346 = vadd.f32 0.0, %v2345
        %v2347 = vpop.f32.mrb[0].mxu0
        %2348 = vmatprep.mubr.bf16.mxu0 0
        %2349 = vmatmul.mubr.bf16.gmra.mrb[0].mxu0 %v2242
        %v2350 = vpop.f32.mrb[0].mxu0
        %v2351 = vadd.f32 0.0, %v2350
        %v2352 = vpop.f32.mrb[0].mxu0
        %v2353 = vpop.f32.mrb[0].mxu0
        %v2354 = vadd.f32 0.0, %v2353
        %v2355 = vpop.f32.mrb[0].mxu0
        %2356 = vmatprep.mubr.bf16.mxu0 0
        %2357 = vmatmul.mubr.bf16.gmra.mrb[0].mxu0 %v2244
        %v2358 = vpop.f32.mrb[0].mxu0
        %v2359 = vadd.f32 0.0, %v2358
        %v2360 = vpop.f32.mrb[0].mxu0
        %v2361 = vpop.f32.mrb[0].mxu0
        %v2362 = vadd.f32 0.0, %v2361
        %v2363 = vpop.f32.mrb[0].mxu0
        %2364 = vmatprep.mubr.bf16.mxu0 0
        %2365 = vmatmul.mubr.bf16.gmra.mrb[0].mxu0 %v2246
        %v2366 = vpop.f32.mrb[0].mxu0
        %v2367 = vadd.f32 0.0, %v2366
        %v2368 = vpop.f32.mrb[0].mxu0
        %v2369 = vpop.f32.mrb[0].mxu0
        %v2370 = vadd.f32 0.0, %v2369
        %v2371 = vpop.f32.mrb[0].mxu0
        %2372 = vdwg.mxu0
        %v2373 = vadd.f32 %v2204, %v2335
        %v2374 = vadd.f32 %v2205, %v2338
        %v2375 = vadd.f32 %v2206, %v2343
        %v2376 = vadd.f32 %v2207, %v2346
        %v2377 = vadd.f32 %v2208, %v2351
        %v2378 = vadd.f32 %v2209, %v2354
        %v2379 = vadd.f32 %v2210, %v2359
        %v2380 = vadd.f32 %v2211, %v2362
        %v2381 = vadd.f32 %v2212, %v2367
        %v2382 = vadd.f32 %v2213, %v2370
        %v2383 = vld [vmem:[#allocation3 + $0x8] sm:$0xc]
        %v2384 = vld [vmem:[#allocation3 + $0xc] sm:$0xf]
        %v2385 = vld [vmem:[#allocation3 + $0x10] sm:$0xf]
        %v2386 = vld [vmem:[#allocation3 + $0x14] sm:$0xf]
        %v2387 = vld [vmem:[#allocation3 + $0x18] sm:$0xf]
        %v2388 = vld [vmem:[#allocation3 + $0x1c] sm:$0xf]
        %v2389 = vld [vmem:[#allocation3 + $0x20] sm:$0xf]
        %v2390 = vld [vmem:[#allocation3 + $0x24] sm:$0xf]
        %v2391 = vld [vmem:[#allocation3 + $0x28] sm:$0xf]
        %v2392 = vld [vmem:[#allocation3 + $0x2c] sm:$0xf]
        %v2393 = vld [vmem:[#allocation3 + $0x30] sm:$0x3]
        %s2394 = scalar_lea.vmem %s2, 384
        %v2395 = vld [vmem:[%s2394] sm:$0xf]
        %v2396 = vld [vmem:[%s2394 + $0x4] sm:$0xf]
        %v2397 = vld [vmem:[%s2394 + $0x8] sm:$0xf]
        %v2398 = vld [vmem:[%s2394 + $0xc] sm:$0xf]
        %v2399 = vld [vmem:[%s2394 + $0x10] sm:$0xf]
        %v2400 = vld [vmem:[%s2394 + $0x14] sm:$0xf]
        %v2401 = vld [vmem:[%s2394 + $0x18] sm:$0xf]
        %v2402 = vld [vmem:[%s2394 + $0x1c] sm:$0xf]
        %v2403 = vld [vmem:[%s2394 + $0x20] sm:$0xf]
        %v2404 = vld [vmem:[%s2394 + $0x24] sm:$0xf]
        %v2405 = vld [vmem:[%s2394 + $0x28] sm:$0xf]
        %v2406 = vld [vmem:[%s2394 + $0x2c] sm:$0xf]
        %v2407 = vld [vmem:[%s2394 + $0x30] sm:$0xf]
        %v2408 = vld [vmem:[%s2394 + $0x34] sm:$0xf]
        %v2409 = vld [vmem:[%s2394 + $0x38] sm:$0xf]
        %v2410 = vld [vmem:[%s2394 + $0x3c] sm:$0xf]
        %v2422 = vunpack.c.l.b16 %v2383
        %v2423 = vunpack.c.l.b16 %v2384
        %v2424 = vunpack.c.l.b16 %v2385
        %v2425 = vunpack.c.l.b16 %v2386
        %v2426 = vunpack.c.l.b16 %v2387
        %v2427 = vunpack.c.l.b16 %v2388
        %v2428 = vunpack.c.l.b16 %v2389
        %v2429 = vunpack.c.l.b16 %v2390
        %v2430 = vunpack.c.l.b16 %v2391
        %v2431 = vunpack.c.l.b16 %v2392
        %v2432 = vunpack.c.l.b16 %v2393
        %v2433 = vpack.c.b16 %v2423, %v2422
        %v2434 = vpack.c.b16 %v2425, %v2424
        %v2435 = vpack.c.b16 %v2427, %v2426
        %v2436 = vpack.c.b16 %v2429, %v2428
        %v2437 = vpack.c.b16 %v2431, %v2430
        %v2438 = vpack.c.b16 %v2432, %v2432
        %v2439 = vrot.slane %v2433, 2
        %v2440 = vrot.slane %v2434, 2
        %v2441 = vsel %vm2235, %v2439, %v2440
        %v2442 = vrot.slane %v2435, 2
        %v2443 = vsel %vm2235, %v2440, %v2442
        %v2444 = vrot.slane %v2436, 2
        %v2445 = vsel %vm2235, %v2442, %v2444
        %v2446 = vrot.slane %v2437, 2
        %v2447 = vsel %vm2235, %v2444, %v2446
        %v2448 = vrot.slane %v2438, 2
        %v2449 = vsel %vm2235, %v2446, %v2448
        %v2471 = vunpack.c.l.b16 %v2395
        %v2472 = vunpack.c.l.b16 %v2396
        %v2473 = vunpack.c.l.b16 %v2397
        %v2474 = vunpack.c.l.b16 %v2398
        %v2475 = vunpack.c.l.b16 %v2399
        %v2476 = vunpack.c.l.b16 %v2400
        %v2477 = vunpack.c.l.b16 %v2401
        %v2478 = vunpack.c.l.b16 %v2402
        %v2479 = vunpack.c.l.b16 %v2403
        %v2480 = vunpack.c.l.b16 %v2404
        %v2481 = vunpack.c.l.b16 %v2405
        %v2482 = vunpack.c.l.b16 %v2406
        %v2483 = vunpack.c.l.b16 %v2407
        %v2484 = vunpack.c.l.b16 %v2408
        %v2485 = vunpack.c.l.b16 %v2409
        %v2486 = vunpack.c.l.b16 %v2410
        %v2487 = vpack.c.b16 %v2472, %v2471
        %v2488 = vpack.c.b16 %v2474, %v2473
        %v2489 = vpack.c.b16 %v2476, %v2475
        %v2490 = vpack.c.b16 %v2478, %v2477
        %v2491 = vpack.c.b16 %v2480, %v2479
        %v2492 = vpack.c.b16 %v2482, %v2481
        %v2493 = vpack.c.b16 %v2484, %v2483
        %v2494 = vpack.c.b16 %v2486, %v2485
        %2503 = vmatprep.subr.bf16.mxu0 0
        %2504 = vmatpush1.bf16.msra.mxu0 %v2487
        %2505 = vmatprep.subr.bf16.mxu0 0
        %2506 = vmatpush1.bf16.msra.mxu0 %v2488
        %2507 = vmatprep.subr.bf16.mxu0 0
        %2508 = vmatpush1.bf16.msra.mxu0 %v2489
        %2509 = vmatprep.subr.bf16.mxu0 0
        %2510 = vmatpush1.bf16.msra.mxu0 %v2490
        %2511 = vmatprep.subr.bf16.mxu0 0
        %2512 = vmatpush1.bf16.msra.mxu0 %v2491
        %2513 = vmatprep.subr.bf16.mxu0 0
        %2514 = vmatpush1.bf16.msra.mxu0 %v2492
        %2515 = vmatprep.subr.bf16.mxu0 0
        %2516 = vmatpush1.bf16.msra.mxu0 %v2493
        %2517 = vmatprep.subr.bf16.mxu0 0
        %2518 = vmatpush1.bf16.msra.mxu0 %v2494
        %2519 = vmatprep.subr.bf16.mxu0 0
        %2520 = vmatpush1.bf16.msra.mxu0 0
        %2521 = vmatprep.subr.bf16.mxu0 0
        %2522 = vmatpush1.bf16.msra.mxu0 0
        %2523 = vmatprep.subr.bf16.mxu0 0
        %2524 = vmatpush1.bf16.msra.mxu0 0
        %2525 = vmatprep.subr.bf16.mxu0 0
        %2526 = vmatpush1.bf16.msra.mxu0 0
        %2527 = vmatprep.subr.bf16.mxu0 0
        %2528 = vmatpush1.bf16.msra.mxu0 0
        %2529 = vmatprep.subr.bf16.mxu0 0
        %2530 = vmatpush1.bf16.msra.mxu0 0
        %2531 = vmatprep.subr.bf16.mxu0 0
        %2532 = vmatpush1.bf16.msra.mxu0 0
        %2533 = vmatprep.subr.bf16.mxu0 0
        %2534 = vmatpush1.bf16.msra.mxu0 0
        %2535 = vmatprep.mubr.bf16.mxu0 0
        %2536 = vmatmul.mubr.bf16.gmra.mrb[0].mxu0 %v2441
        %v2537 = vpop.f32.mrb[0].mxu0
        %v2538 = vadd.f32 0.0, %v2537
        %v2539 = vpop.f32.mrb[0].mxu0
        %v2540 = vpop.f32.mrb[0].mxu0
        %v2541 = vadd.f32 0.0, %v2540
        %v2542 = vpop.f32.mrb[0].mxu0
        %2543 = vmatprep.mubr.bf16.mxu0 0
        %2544 = vmatmul.mubr.bf16.gmra.mrb[0].mxu0 %v2443
        %v2545 = vpop.f32.mrb[0].mxu0
        %v2546 = vadd.f32 0.0, %v2545
        %v2547 = vpop.f32.mrb[0].mxu0
        %v2548 = vpop.f32.mrb[0].mxu0
        %v2549 = vadd.f32 0.0, %v2548
        %v2550 = vpop.f32.mrb[0].mxu0
        %2551 = vmatprep.mubr.bf16.mxu0 0
        %2552 = vmatmul.mubr.bf16.gmra.mrb[0].mxu0 %v2445
        %v2553 = vpop.f32.mrb[0].mxu0
        %v2554 = vadd.f32 0.0, %v2553
        %v2555 = vpop.f32.mrb[0].mxu0
        %v2556 = vpop.f32.mrb[0].mxu0
        %v2557 = vadd.f32 0.0, %v2556
        %v2558 = vpop.f32.mrb[0].mxu0
        %2559 = vmatprep.mubr.bf16.mxu0 0
        %2560 = vmatmul.mubr.bf16.gmra.mrb[0].mxu0 %v2447
        %v2561 = vpop.f32.mrb[0].mxu0
        %v2562 = vadd.f32 0.0, %v2561
        %v2563 = vpop.f32.mrb[0].mxu0
        %v2564 = vpop.f32.mrb[0].mxu0
        %v2565 = vadd.f32 0.0, %v2564
        %v2566 = vpop.f32.mrb[0].mxu0
        %2567 = vmatprep.mubr.bf16.mxu0 0
        %2568 = vmatmul.mubr.bf16.gmra.mrb[0].mxu0 %v2449
        %v2569 = vpop.f32.mrb[0].mxu0
        %v2570 = vadd.f32 0.0, %v2569
        %v2571 = vpop.f32.mrb[0].mxu0
        %v2572 = vpop.f32.mrb[0].mxu0
        %v2573 = vadd.f32 0.0, %v2572
        %v2574 = vpop.f32.mrb[0].mxu0
        %2575 = vdwg.mxu0
        %v2576 = vadd.f32 %v2373, %v2538
        %v2577 = vadd.f32 %v2374, %v2541
        %v2578 = vadd.f32 %v2375, %v2546
        %v2579 = vadd.f32 %v2376, %v2549
        %v2580 = vadd.f32 %v2377, %v2554
        %v2581 = vadd.f32 %v2378, %v2557
        %v2582 = vadd.f32 %v2379, %v2562
        %v2583 = vadd.f32 %v2380, %v2565
        %v2584 = vadd.f32 %v2381, %v2570
        %v2585 = vadd.f32 %v2382, %v2573
        %v2586 = vld [vmem:[#allocation3 + $0x30] sm:$0x7]
        %s2587 = scalar_lea.vmem %s2, 448
        %v2588 = vld [vmem:[%s2587] sm:$0xf]
        %v2589 = vld [vmem:[%s2587 + $0x4] sm:$0xf]
        %v2590 = vld [vmem:[%s2587 + $0x8] sm:$0xf]
        %v2591 = vld [vmem:[%s2587 + $0xc] sm:$0xf]
        %v2592 = vld [vmem:[%s2587 + $0x10] sm:$0xf]
        %v2593 = vld [vmem:[%s2587 + $0x14] sm:$0xf]
        %v2594 = vld [vmem:[%s2587 + $0x18] sm:$0xf]
        %v2595 = vld [vmem:[%s2587 + $0x1c] sm:$0xf]
        %v2596 = vld [vmem:[%s2587 + $0x20] sm:$0xf]
        %v2597 = vld [vmem:[%s2587 + $0x24] sm:$0xf]
        %v2598 = vld [vmem:[%s2587 + $0x28] sm:$0xf]
        %v2599 = vld [vmem:[%s2587 + $0x2c] sm:$0xf]
        %v2600 = vld [vmem:[%s2587 + $0x30] sm:$0xf]
        %v2601 = vld [vmem:[%s2587 + $0x34] sm:$0xf]
        %v2602 = vld [vmem:[%s2587 + $0x38] sm:$0xf]
        %v2603 = vld [vmem:[%s2587 + $0x3c] sm:$0xf]
        %v2605 = vunpack.c.l.b16 %v2586
        %v2606 = vpack.c.b16 %v2605, %v2605
        %vm2607 = vsmask.f32 5376
        %v2609 = vshrl.u32 %v2433, 16
        %v2611 = vrot.slane %v2609, 2
        %v2612 = vshll.u32 %v2433, 16
        %v2614 = vrot.slane %v2612, 3
        %v2615 = vor.u32 %v2611, %v2614
        %v2617 = vshrl.u32 %v2434, 16
        %v2619 = vrot.slane %v2617, 2
        %v2620 = vshll.u32 %v2434, 16
        %v2622 = vrot.slane %v2620, 3
        %v2623 = vor.u32 %v2619, %v2622
        %v2624 = vsel %vm2607, %v2615, %v2623
        %v2626 = vshrl.u32 %v2435, 16
        %v2628 = vrot.slane %v2626, 2
        %v2629 = vshll.u32 %v2435, 16
        %v2631 = vrot.slane %v2629, 3
        %v2632 = vor.u32 %v2628, %v2631
        %v2633 = vsel %vm2607, %v2623, %v2632
        %v2635 = vshrl.u32 %v2436, 16
        %v2637 = vrot.slane %v2635, 2
        %v2638 = vshll.u32 %v2436, 16
        %v2640 = vrot.slane %v2638, 3
        %v2641 = vor.u32 %v2637, %v2640
        %v2642 = vsel %vm2607, %v2632, %v2641
        %v2644 = vshrl.u32 %v2437, 16
        %v2646 = vrot.slane %v2644, 2
        %v2647 = vshll.u32 %v2437, 16
        %v2649 = vrot.slane %v2647, 3
        %v2650 = vor.u32 %v2646, %v2649
        %v2651 = vsel %vm2607, %v2641, %v2650
        %v2653 = vshrl.u32 %v2606, 16
        %v2655 = vrot.slane %v2653, 2
        %v2656 = vshll.u32 %v2606, 16
        %v2658 = vrot.slane %v2656, 3
        %v2659 = vor.u32 %v2655, %v2658
        %v2660 = vsel %vm2607, %v2650, %v2659
        %v2682 = vunpack.c.l.b16 %v2588
        %v2683 = vunpack.c.l.b16 %v2589
        %v2684 = vunpack.c.l.b16 %v2590
        %v2685 = vunpack.c.l.b16 %v2591
        %v2686 = vunpack.c.l.b16 %v2592
        %v2687 = vunpack.c.l.b16 %v2593
        %v2688 = vunpack.c.l.b16 %v2594
        %v2689 = vunpack.c.l.b16 %v2595
        %v2690 = vunpack.c.l.b16 %v2596
        %v2691 = vunpack.c.l.b16 %v2597
        %v2692 = vunpack.c.l.b16 %v2598
        %v2693 = vunpack.c.l.b16 %v2599
        %v2694 = vunpack.c.l.b16 %v2600
        %v2695 = vunpack.c.l.b16 %v2601
        %v2696 = vunpack.c.l.b16 %v2602
        %v2697 = vunpack.c.l.b16 %v2603
        %v2698 = vpack.c.b16 %v2683, %v2682
        %v2699 = vpack.c.b16 %v2685, %v2684
        %v2700 = vpack.c.b16 %v2687, %v2686
        %v2701 = vpack.c.b16 %v2689, %v2688
        %v2702 = vpack.c.b16 %v2691, %v2690
        %v2703 = vpack.c.b16 %v2693, %v2692
        %v2704 = vpack.c.b16 %v2695, %v2694
        %v2705 = vpack.c.b16 %v2697, %v2696
        %2714 = vmatprep.subr.bf16.mxu0 0
        %2715 = vmatpush1.bf16.msra.mxu0 %v2698
        %2716 = vmatprep.subr.bf16.mxu0 0
        %2717 = vmatpush1.bf16.msra.mxu0 %v2699
        %2718 = vmatprep.subr.bf16.mxu0 0
        %2719 = vmatpush1.bf16.msra.mxu0 %v2700
        %2720 = vmatprep.subr.bf16.mxu0 0
        %2721 = vmatpush1.bf16.msra.mxu0 %v2701
        %2722 = vmatprep.subr.bf16.mxu0 0
        %2723 = vmatpush1.bf16.msra.mxu0 %v2702
        %2724 = vmatprep.subr.bf16.mxu0 0
        %2725 = vmatpush1.bf16.msra.mxu0 %v2703
        %2726 = vmatprep.subr.bf16.mxu0 0
        %2727 = vmatpush1.bf16.msra.mxu0 %v2704
        %2728 = vmatprep.subr.bf16.mxu0 0
        %2729 = vmatpush1.bf16.msra.mxu0 %v2705
        %2730 = vmatprep.subr.bf16.mxu0 0
        %2731 = vmatpush1.bf16.msra.mxu0 0
        %2732 = vmatprep.subr.bf16.mxu0 0
        %2733 = vmatpush1.bf16.msra.mxu0 0
        %2734 = vmatprep.subr.bf16.mxu0 0
        %2735 = vmatpush1.bf16.msra.mxu0 0
        %2736 = vmatprep.subr.bf16.mxu0 0
        %2737 = vmatpush1.bf16.msra.mxu0 0
        %2738 = vmatprep.subr.bf16.mxu0 0
        %2739 = vmatpush1.bf16.msra.mxu0 0
        %2740 = vmatprep.subr.bf16.mxu0 0
        %2741 = vmatpush1.bf16.msra.mxu0 0
        %2742 = vmatprep.subr.bf16.mxu0 0
        %2743 = vmatpush1.bf16.msra.mxu0 0
        %2744 = vmatprep.subr.bf16.mxu0 0
        %2745 = vmatpush1.bf16.msra.mxu0 0
        %2746 = vmatprep.mubr.bf16.mxu0 0
        %2747 = vmatmul.mubr.bf16.gmra.mrb[0].mxu0 %v2624
        %v2748 = vpop.f32.mrb[0].mxu0
        %v2749 = vadd.f32 0.0, %v2748
        %v2750 = vpop.f32.mrb[0].mxu0
        %v2751 = vpop.f32.mrb[0].mxu0
        %v2752 = vadd.f32 0.0, %v2751
        %v2753 = vpop.f32.mrb[0].mxu0
        %2754 = vmatprep.mubr.bf16.mxu0 0
        %2755 = vmatmul.mubr.bf16.gmra.mrb[0].mxu0 %v2633
        %v2756 = vpop.f32.mrb[0].mxu0
        %v2757 = vadd.f32 0.0, %v2756
        %v2758 = vpop.f32.mrb[0].mxu0
        %v2759 = vpop.f32.mrb[0].mxu0
        %v2760 = vadd.f32 0.0, %v2759
        %v2761 = vpop.f32.mrb[0].mxu0
        %2762 = vmatprep.mubr.bf16.mxu0 0
        %2763 = vmatmul.mubr.bf16.gmra.mrb[0].mxu0 %v2642
        %v2764 = vpop.f32.mrb[0].mxu0
        %v2765 = vadd.f32 0.0, %v2764
        %v2766 = vpop.f32.mrb[0].mxu0
        %v2767 = vpop.f32.mrb[0].mxu0
        %v2768 = vadd.f32 0.0, %v2767
        %v2769 = vpop.f32.mrb[0].mxu0
        %2770 = vmatprep.mubr.bf16.mxu0 0
        %2771 = vmatmul.mubr.bf16.gmra.mrb[0].mxu0 %v2651
        %v2772 = vpop.f32.mrb[0].mxu0
        %v2773 = vadd.f32 0.0, %v2772
        %v2774 = vpop.f32.mrb[0].mxu0
        %v2775 = vpop.f32.mrb[0].mxu0
        %v2776 = vadd.f32 0.0, %v2775
        %v2777 = vpop.f32.mrb[0].mxu0
        %2778 = vmatprep.mubr.bf16.mxu0 0
        %2779 = vmatmul.mubr.bf16.gmra.mrb[0].mxu0 %v2660
        %v2780 = vpop.f32.mrb[0].mxu0
        %v2781 = vadd.f32 0.0, %v2780
        %v2782 = vpop.f32.mrb[0].mxu0
        %v2783 = vpop.f32.mrb[0].mxu0
        %v2784 = vadd.f32 0.0, %v2783
        %v2785 = vpop.f32.mrb[0].mxu0
        %2786 = vdwg.mxu0
        %v2787 = vadd.f32 %v2576, %v2749
        %v2788 = vadd.f32 %v2577, %v2752
        %v2789 = vadd.f32 %v2578, %v2757
        %v2790 = vadd.f32 %v2579, %v2760
        %v2791 = vadd.f32 %v2580, %v2765
        %v2792 = vadd.f32 %v2581, %v2768
        %v2793 = vadd.f32 %v2582, %v2773
        %v2794 = vadd.f32 %v2583, %v2776
        %v2795 = vadd.f32 %v2584, %v2781
        %v2796 = vadd.f32 %v2585, %v2784
        %v2797 = vld [vmem:[#allocation3 + $0x8] sm:$0x8]
        %s2798 = scalar_lea.vmem %s2, 512
        %v2799 = vld [vmem:[%s2798] sm:$0xf]
        %v2800 = vld [vmem:[%s2798 + $0x4] sm:$0xf]
        %v2801 = vld [vmem:[%s2798 + $0x8] sm:$0xf]
        %v2802 = vld [vmem:[%s2798 + $0xc] sm:$0xf]
        %v2803 = vld [vmem:[%s2798 + $0x10] sm:$0xf]
        %v2804 = vld [vmem:[%s2798 + $0x14] sm:$0xf]
        %v2805 = vld [vmem:[%s2798 + $0x18] sm:$0xf]
        %v2806 = vld [vmem:[%s2798 + $0x1c] sm:$0xf]
        %v2807 = vld [vmem:[%s2798 + $0x20] sm:$0xf]
        %v2808 = vld [vmem:[%s2798 + $0x24] sm:$0xf]
        %v2809 = vld [vmem:[%s2798 + $0x28] sm:$0xf]
        %v2810 = vld [vmem:[%s2798 + $0x2c] sm:$0xf]
        %v2811 = vld [vmem:[%s2798 + $0x30] sm:$0xf]
        %v2812 = vld [vmem:[%s2798 + $0x34] sm:$0xf]
        %v2813 = vld [vmem:[%s2798 + $0x38] sm:$0xf]
        %v2814 = vld [vmem:[%s2798 + $0x3c] sm:$0xf]
        %v2816 = vunpack.c.l.b16 %v2797
        %v2817 = vpack.c.b16 %v2423, %v2816
        %vm2818 = vcmask 1044480
        %v2819 = vrot.slane %v2817, 3
        %v2820 = vrot.slane %v2434, 3
        %v2821 = vsel %vm2818, %v2819, %v2820
        %v2822 = vrot.slane %v2435, 3
        %v2823 = vsel %vm2818, %v2820, %v2822
        %v2824 = vrot.slane %v2436, 3
        %v2825 = vsel %vm2818, %v2822, %v2824
        %v2826 = vrot.slane %v2437, 3
        %v2827 = vsel %vm2818, %v2824, %v2826
        %v2828 = vrot.slane %v2606, 3
        %v2829 = vsel %vm2818, %v2826, %v2828
        %v2851 = vunpack.c.l.b16 %v2799
        %v2852 = vunpack.c.l.b16 %v2800
        %v2853 = vunpack.c.l.b16 %v2801
        %v2854 = vunpack.c.l.b16 %v2802
        %v2855 = vunpack.c.l.b16 %v2803
        %v2856 = vunpack.c.l.b16 %v2804
        %v2857 = vunpack.c.l.b16 %v2805
        %v2858 = vunpack.c.l.b16 %v2806
        %v2859 = vunpack.c.l.b16 %v2807
        %v2860 = vunpack.c.l.b16 %v2808
        %v2861 = vunpack.c.l.b16 %v2809
        %v2862 = vunpack.c.l.b16 %v2810
        %v2863 = vunpack.c.l.b16 %v2811
        %v2864 = vunpack.c.l.b16 %v2812
        %v2865 = vunpack.c.l.b16 %v2813
        %v2866 = vunpack.c.l.b16 %v2814
        %v2867 = vpack.c.b16 %v2852, %v2851
        %v2868 = vpack.c.b16 %v2854, %v2853
        %v2869 = vpack.c.b16 %v2856, %v2855
        %v2870 = vpack.c.b16 %v2858, %v2857
        %v2871 = vpack.c.b16 %v2860, %v2859
        %v2872 = vpack.c.b16 %v2862, %v2861
        %v2873 = vpack.c.b16 %v2864, %v2863
        %v2874 = vpack.c.b16 %v2866, %v2865
        %2883 = vmatprep.subr.bf16.mxu0 0
        %2884 = vmatpush1.bf16.msra.mxu0 %v2867
        %2885 = vmatprep.subr.bf16.mxu0 0
        %2886 = vmatpush1.bf16.msra.mxu0 %v2868
        %2887 = vmatprep.subr.bf16.mxu0 0
        %2888 = vmatpush1.bf16.msra.mxu0 %v2869
        %2889 = vmatprep.subr.bf16.mxu0 0
        %2890 = vmatpush1.bf16.msra.mxu0 %v2870
        %2891 = vmatprep.subr.bf16.mxu0 0
        %2892 = vmatpush1.bf16.msra.mxu0 %v2871
        %2893 = vmatprep.subr.bf16.mxu0 0
        %2894 = vmatpush1.bf16.msra.mxu0 %v2872
        %2895 = vmatprep.subr.bf16.mxu0 0
        %2896 = vmatpush1.bf16.msra.mxu0 %v2873
        %2897 = vmatprep.subr.bf16.mxu0 0
        %2898 = vmatpush1.bf16.msra.mxu0 %v2874
        %2899 = vmatprep.subr.bf16.mxu0 0
        %2900 = vmatpush1.bf16.msra.mxu0 0
        %2901 = vmatprep.subr.bf16.mxu0 0
        %2902 = vmatpush1.bf16.msra.mxu0 0
        %2903 = vmatprep.subr.bf16.mxu0 0
        %2904 = vmatpush1.bf16.msra.mxu0 0
        %2905 = vmatprep.subr.bf16.mxu0 0
        %2906 = vmatpush1.bf16.msra.mxu0 0
        %2907 = vmatprep.subr.bf16.mxu0 0
        %2908 = vmatpush1.bf16.msra.mxu0 0
        %2909 = vmatprep.subr.bf16.mxu0 0
        %2910 = vmatpush1.bf16.msra.mxu0 0
        %2911 = vmatprep.subr.bf16.mxu0 0
        %2912 = vmatpush1.bf16.msra.mxu0 0
        %2913 = vmatprep.subr.bf16.mxu0 0
        %2914 = vmatpush1.bf16.msra.mxu0 0
        %2915 = vmatprep.mubr.bf16.mxu0 0
        %2916 = vmatmul.mubr.bf16.gmra.mrb[0].mxu0 %v2821
        %v2917 = vpop.f32.mrb[0].mxu0
        %v2918 = vadd.f32 0.0, %v2917
        %v2919 = vpop.f32.mrb[0].mxu0
        %v2920 = vpop.f32.mrb[0].mxu0
        %v2921 = vadd.f32 0.0, %v2920
        %v2922 = vpop.f32.mrb[0].mxu0
        %2923 = vmatprep.mubr.bf16.mxu0 0
        %2924 = vmatmul.mubr.bf16.gmra.mrb[0].mxu0 %v2823
        %v2925 = vpop.f32.mrb[0].mxu0
        %v2926 = vadd.f32 0.0, %v2925
        %v2927 = vpop.f32.mrb[0].mxu0
        %v2928 = vpop.f32.mrb[0].mxu0
        %v2929 = vadd.f32 0.0, %v2928
        %v2930 = vpop.f32.mrb[0].mxu0
        %2931 = vmatprep.mubr.bf16.mxu0 0
        %2932 = vmatmul.mubr.bf16.gmra.mrb[0].mxu0 %v2825
        %v2933 = vpop.f32.mrb[0].mxu0
        %v2934 = vadd.f32 0.0, %v2933
        %v2935 = vpop.f32.mrb[0].mxu0
        %v2936 = vpop.f32.mrb[0].mxu0
        %v2937 = vadd.f32 0.0, %v2936
        %v2938 = vpop.f32.mrb[0].mxu0
        %2939 = vmatprep.mubr.bf16.mxu0 0
        %2940 = vmatmul.mubr.bf16.gmra.mrb[0].mxu0 %v2827
        %v2941 = vpop.f32.mrb[0].mxu0
        %v2942 = vadd.f32 0.0, %v2941
        %v2943 = vpop.f32.mrb[0].mxu0
        %v2944 = vpop.f32.mrb[0].mxu0
        %v2945 = vadd.f32 0.0, %v2944
        %v2946 = vpop.f32.mrb[0].mxu0
        %2947 = vmatprep.mubr.bf16.mxu0 0
        %2948 = vmatmul.mubr.bf16.gmra.mrb[0].mxu0 %v2829
        %v2949 = vpop.f32.mrb[0].mxu0
        %v2950 = vadd.f32 0.0, %v2949
        %v2951 = vpop.f32.mrb[0].mxu0
        %v2952 = vpop.f32.mrb[0].mxu0
        %v2953 = vadd.f32 0.0, %v2952
        %v2954 = vpop.f32.mrb[0].mxu0
        %2955 = vdwg.mxu0
        %v2956 = vadd.f32 %v2787, %v2918
        %v2957 = vadd.f32 %v2788, %v2921
        %v2958 = vadd.f32 %v2789, %v2926
        %v2959 = vadd.f32 %v2790, %v2929
        %v2960 = vadd.f32 %v2791, %v2934
        %v2961 = vadd.f32 %v2792, %v2937
        %v2962 = vadd.f32 %v2793, %v2942
        %v2963 = vadd.f32 %v2794, %v2945
        %v2964 = vadd.f32 %v2795, %v2950
        %v2965 = vadd.f32 %v2796, %v2953
        %v2966 = vmax.f32 %v2956, 0.0
        %v2967 = vmax.f32 %v2957, 0.0
        %v2968 = vmax.f32 %v2958, 0.0
        %v2969 = vmax.f32 %v2959, 0.0
        %v2970 = vmax.f32 %v2960, 0.0
        %v2971 = vmax.f32 %v2961, 0.0
        %v2972 = vmax.f32 %v2962, 0.0
        %v2973 = vmax.f32 %v2963, 0.0
        %v2974 = vmax.f32 %v2964, 0.0
        %v2975 = vmax.f32 %v2965, 0.0
        %v2976 = vmax.f32 %v2966, -1.0
        %v2977 = vmax.f32 %v2967, -1.0
        %v2978 = vmax.f32 %v2968, -1.0
        %v2979 = vmax.f32 %v2969, -1.0
        %v2980 = vmax.f32 %v2970, -1.0
        %v2981 = vmax.f32 %v2971, -1.0
        %v2982 = vmax.f32 %v2972, -1.0
        %v2983 = vmax.f32 %v2973, -1.0
        %v2984 = vmax.f32 %v2974, -1.0
        %v2985 = vmax.f32 %v2975, -1.0
        %v2986 = vmin.f32 %v2976, 1.0
        %v2987 = vmin.f32 %v2977, 1.0
        %v2988 = vmin.f32 %v2978, 1.0
        %v2989 = vmin.f32 %v2979, 1.0
        %v2990 = vmin.f32 %v2980, 1.0
        %v2991 = vmin.f32 %v2981, 1.0
        %v2992 = vmin.f32 %v2982, 1.0
        %v2993 = vmin.f32 %v2983, 1.0
        %v2994 = vmin.f32 %v2984, 1.0
        %v2995 = vmin.f32 %v2985, 1.0
        %2996 = vst [vmem:[#allocation4] sm:$0xff] %v2986
        %2997 = vst [vmem:[#allocation4 + $0x8] sm:$0xff] %v2987
        %2998 = vst [vmem:[#allocation4 + $0x10] sm:$0xff] %v2988
        %2999 = vst [vmem:[#allocation4 + $0x18] sm:$0xff] %v2989
        %3000 = vst [vmem:[#allocation4 + $0x20] sm:$0xff] %v2990
        %3001 = vst [vmem:[#allocation4 + $0x28] sm:$0xff] %v2991
        %3002 = vst [vmem:[#allocation4 + $0x30] sm:$0xff] %v2992
        %3003 = vst [vmem:[#allocation4 + $0x38] sm:$0xff] %v2993
        %3004 = vst [vmem:[#allocation4 + $0x40] sm:$0xff] %v2994
        %3005 = vst [vmem:[#allocation4 + $0x48] sm:$0xff] %v2995
        %v3006 = vld [vmem:[#allocation4] sm:$0xff]
        %v3007 = vld [vmem:[#allocation4 + $0x8] sm:$0xff]
        %v3008 = vld [vmem:[#allocation4 + $0x10] sm:$0xff]
        %v3009 = vld [vmem:[#allocation4 + $0x18] sm:$0xff]
        %v3010 = vld [vmem:[#allocation4 + $0x20] sm:$0xff]
        %v3011 = vld [vmem:[#allocation4 + $0x28] sm:$0xff]
        %v3012 = vld [vmem:[#allocation4 + $0x30] sm:$0xff]
        %v3013 = vld [vmem:[#allocation4 + $0x38] sm:$0xff]
        %v3014 = vld [vmem:[#allocation4 + $0x40] sm:$0xff]
        %v3015 = vld [vmem:[#allocation4 + $0x48] sm:$0xff]
        %v3016 = vld [vmem:[#allocation4 + $0x1] sm:$0xff]
        %v3017 = vld [vmem:[#allocation4 + $0x9] sm:$0xff]
        %v3018 = vld [vmem:[#allocation4 + $0x11] sm:$0xff]
        %v3019 = vld [vmem:[#allocation4 + $0x19] sm:$0xff]
        %v3020 = vld [vmem:[#allocation4 + $0x21] sm:$0xff]
        %v3021 = vld [vmem:[#allocation4 + $0x29] sm:$0xff]
        %v3022 = vld [vmem:[#allocation4 + $0x31] sm:$0xff]
        %v3023 = vld [vmem:[#allocation4 + $0x39] sm:$0xff]
        %v3024 = vld [vmem:[#allocation4 + $0x41] sm:$0xff]
        %v3025 = vld [vmem:[#allocation4 + $0x49] sm:$0xff]
        %v3026 = vld [vmem:[#allocation4 + $0xa] sm:$0xff]
        %v3027 = vld [vmem:[#allocation4 + $0x12] sm:$0xff]
        %v3028 = vld [vmem:[#allocation4 + $0x1a] sm:$0xff]
        %v3029 = vld [vmem:[#allocation4 + $0x22] sm:$0xff]
        %v3030 = vld [vmem:[#allocation4 + $0x2a] sm:$0xff]
        %v3031 = vld [vmem:[#allocation4 + $0x32] sm:$0xff]
        %v3032 = vld [vmem:[#allocation4 + $0x3a] sm:$0xff]
        %v3033 = vld [vmem:[#allocation4 + $0x42] sm:$0xff]
        %v3034 = vld [vmem:[#allocation4 + $0x4a] sm:$0xff]
        %v3035 = vld [vmem:[#allocation4 + $0x52] sm:$0xff]
        %v3036 = vld [vmem:[#allocation4 + $0xb] sm:$0xff]
        %v3037 = vld [vmem:[#allocation4 + $0x13] sm:$0xff]
        %v3038 = vld [vmem:[#allocation4 + $0x1b] sm:$0xff]
        %v3039 = vld [vmem:[#allocation4 + $0x23] sm:$0xff]
        %v3040 = vld [vmem:[#allocation4 + $0x2b] sm:$0xff]
        %v3041 = vld [vmem:[#allocation4 + $0x33] sm:$0xff]
        %v3042 = vld [vmem:[#allocation4 + $0x3b] sm:$0xff]
        %v3043 = vld [vmem:[#allocation4 + $0x43] sm:$0xff]
        %v3044 = vld [vmem:[#allocation4 + $0x4b] sm:$0xff]
        %v3045 = vld [vmem:[#allocation4 + $0x53] sm:$0xff]
        %v3046 = vmax.f32 %v3006, %v3016
        %v3047 = vmax.f32 %v3007, %v3017
        %v3048 = vmax.f32 %v3008, %v3018
        %v3049 = vmax.f32 %v3009, %v3019
        %v3050 = vmax.f32 %v3010, %v3020
        %v3051 = vmax.f32 %v3011, %v3021
        %v3052 = vmax.f32 %v3012, %v3022
        %v3053 = vmax.f32 %v3013, %v3023
        %v3054 = vmax.f32 %v3014, %v3024
        %v3055 = vmax.f32 %v3015, %v3025
        %v3056 = vmax.f32 %v3026, %v3036
        %v3057 = vmax.f32 %v3027, %v3037
        %v3058 = vmax.f32 %v3028, %v3038
        %v3059 = vmax.f32 %v3029, %v3039
        %v3060 = vmax.f32 %v3030, %v3040
        %v3061 = vmax.f32 %v3031, %v3041
        %v3062 = vmax.f32 %v3032, %v3042
        %v3063 = vmax.f32 %v3033, %v3043
        %v3064 = vmax.f32 %v3034, %v3044
        %v3065 = vmax.f32 %v3035, %v3045
        %v3066 = vmax.f32 %v3046, %v3056
        %v3067 = vmax.f32 %v3047, %v3057
        %v3068 = vmax.f32 %v3048, %v3058
        %v3069 = vmax.f32 %v3049, %v3059
        %v3070 = vmax.f32 %v3050, %v3060
        %v3071 = vmax.f32 %v3051, %v3061
        %v3072 = vmax.f32 %v3052, %v3062
        %v3073 = vmax.f32 %v3053, %v3063
        %v3074 = vmax.f32 %v3054, %v3064
        %v3075 = vmax.f32 %v3055, %v3065
        %v3076 = vld [vmem:[%s7] sm:$0xf]
        %v3077 = vld [vmem:[%s7 + $0x4] sm:$0xf]
        %v3078 = vld [vmem:[%s7 + $0x8] sm:$0xf]
        %v3079 = vld [vmem:[%s7 + $0xc] sm:$0xf]
        %v3080 = vld [vmem:[%s7 + $0x10] sm:$0xf]
        %v3081 = vpack.c.bf16 %v3067, %v3066
        %v3082 = vpack.c.bf16 %v3069, %v3068
        %v3083 = vpack.c.bf16 %v3071, %v3070
        %v3084 = vpack.c.bf16 %v3073, %v3072
        %v3085 = vpack.c.bf16 %v3075, %v3074
        %v3091 = vunpack.c.l.b16 %v3076
        %v3092 = vunpack.c.l.b16 %v3077
        %v3093 = vunpack.c.l.b16 %v3078
        %v3094 = vunpack.c.l.b16 %v3079
        %v3095 = vunpack.c.l.b16 %v3080
        %v3096 = vpack.c.b16 %v3092, %v3091
        %v3097 = vpack.c.b16 %v3094, %v3093
        %v3098 = vpack.c.b16 %v3095, %v3095
        %vm3099 = vcmask 654336
        %v3101 = vsel %vm3099, %v3096, 0
        %v3104 = vsel %vm3099, %v3097, 0
        %v3107 = vsel %vm3099, %v3098, 0
        %3109 = vmatprep.subr.bf16.mxu0 0
        %3110 = vmatpush1.bf16.msra.mxu0 %v3081
        %3111 = vmatprep.subr.bf16.mxu0 0
        %3112 = vmatpush1.bf16.msra.mxu0 %v3082
        %3113 = vmatprep.subr.bf16.mxu0 0
        %3114 = vmatpush1.bf16.msra.mxu0 %v3083
        %3115 = vmatprep.subr.bf16.mxu0 0
        %3116 = vmatpush1.bf16.msra.mxu0 %v3084
        %3117 = vmatprep.subr.bf16.mxu0 0
        %3118 = vmatpush1.bf16.msra.mxu0 %v3085
        %3119 = vmatprep.subr.bf16.mxu0 0
        %3120 = vmatpush1.bf16.msra.mxu0 0
        %3121 = vmatprep.subr.bf16.mxu0 0
        %3122 = vmatpush1.bf16.msra.mxu0 0
        %3123 = vmatprep.subr.bf16.mxu0 0
        %3124 = vmatpush1.bf16.msra.mxu0 0
        %3125 = vmatprep.subr.bf16.mxu0 0
        %3126 = vmatpush1.bf16.msra.mxu0 0
        %3127 = vmatprep.subr.bf16.mxu0 0
        %3128 = vmatpush1.bf16.msra.mxu0 0
        %3129 = vmatprep.subr.bf16.mxu0 0
        %3130 = vmatpush1.bf16.msra.mxu0 0
        %3131 = vmatprep.subr.bf16.mxu0 0
        %3132 = vmatpush1.bf16.msra.mxu0 0
        %3133 = vmatprep.subr.bf16.mxu0 0
        %3134 = vmatpush1.bf16.msra.mxu0 0
        %3135 = vmatprep.subr.bf16.mxu0 0
        %3136 = vmatpush1.bf16.msra.mxu0 0
        %3137 = vmatprep.subr.bf16.mxu0 0
        %3138 = vmatpush1.bf16.msra.mxu0 0
        %3139 = vmatprep.subr.bf16.mxu0 0
        %3140 = vmatpush1.bf16.msra.mxu0 0
        %3141 = vmatprep.mubr.bf16.mxu0 0
        %3142 = vmatmul.mubr.bf16.gmra.mrb[0].mxu0 %v3101
        %v3143 = vpop.f32.mrb[0].mxu0
        %v3144 = vadd.f32 0.0, %v3143
        %v3145 = vpop.f32.mrb[0].mxu0
        %v3146 = vpop.f32.mrb[0].mxu0
        %v3147 = vadd.f32 0.0, %v3146
        %v3148 = vpop.f32.mrb[0].mxu0
        %3149 = vmatprep.mubr.bf16.mxu0 0
        %3150 = vmatmul.mubr.bf16.gmra.mrb[0].mxu0 %v3104
        %v3151 = vpop.f32.mrb[0].mxu0
        %v3152 = vadd.f32 0.0, %v3151
        %v3153 = vpop.f32.mrb[0].mxu0
        %v3154 = vpop.f32.mrb[0].mxu0
        %v3155 = vadd.f32 0.0, %v3154
        %v3156 = vpop.f32.mrb[0].mxu0
        %3157 = vmatprep.mubr.bf16.mxu0 0
        %3158 = vmatmul.mubr.bf16.gmra.mrb[0].mxu0 %v3107
        %v3159 = vpop.f32.mrb[0].mxu0
        %v3160 = vadd.f32 0.0, %v3159
        %v3161 = vpop.f32.mrb[0].mxu0
        %v3162 = vpop.f32.mrb[0].mxu0
        %v3163 = vpop.f32.mrb[0].mxu0
        %3164 = vdwg.mxu0
        %v3165 = vmax.f32 %v3144, -1.0
        %v3166 = vmax.f32 %v3147, -1.0
        %v3167 = vmax.f32 %v3152, -1.0
        %v3168 = vmax.f32 %v3155, -1.0
        %v3169 = vmax.f32 %v3160, -1.0
        %v3170 = vmin.f32 %v3165, 1.0
        %v3171 = vmin.f32 %v3166, 1.0
        %v3172 = vmin.f32 %v3167, 1.0
        %v3173 = vmin.f32 %v3168, 1.0
        %v3174 = vmin.f32 %v3169, 1.0
        %v3175 = vpack.c.bf16 %v3171, %v3170
        %v3176 = vpack.c.bf16 %v3173, %v3172
        %v3177 = vpack.c.bf16 %v3174, %v3174
        %v3181 = vunpack.c.l.b16 %v3175
        %v3182 = vunpack.c.h.b16 %v3175
        %v3183 = vunpack.c.l.b16 %v3176
        %v3184 = vunpack.c.h.b16 %v3176
        %v3185 = vunpack.c.l.b16 %v3177
        %v3186 = vpack.c.b16 %v3181, %v3181
        %v3187 = vpack.c.b16 %v3182, %v3182
        %v3188 = vpack.c.b16 %v3183, %v3183
        %v3189 = vpack.c.b16 %v3184, %v3184
        %v3190 = vpack.c.b16 %v3185, %v3185
        %3196 = vst [vmem:[#allocation5] sm:$0xf] %v3186
        %3197 = vst [vmem:[#allocation5 + $0x4] sm:$0xf] %v3187
        %3198 = vst [vmem:[#allocation5 + $0x8] sm:$0xf] %v3188
        %3199 = vst [vmem:[#allocation5 + $0xc] sm:$0xf] %v3189
        %3200 = vst [vmem:[#allocation5 + $0x10] sm:$0xf] %v3190
        %v3201 = vld [vmem:[#allocation5] sm:$0xf]
        %v3202 = vld [vmem:[#allocation5 + $0x4] sm:$0xf]
        %v3203 = vld [vmem:[#allocation5 + $0x8] sm:$0xf]
        %v3204 = vld [vmem:[%s3] sm:$0xf]
        %v3205 = vld [vmem:[%s3 + $0x4] sm:$0xf]
        %v3206 = vld [vmem:[%s3 + $0x8] sm:$0xf]
        %v3207 = vld [vmem:[%s3 + $0xc] sm:$0xf]
        %v3208 = vld [vmem:[%s3 + $0x10] sm:$0xf]
        %v3209 = vld [vmem:[%s3 + $0x14] sm:$0xf]
        %v3210 = vld [vmem:[%s3 + $0x18] sm:$0xf]
        %v3211 = vld [vmem:[%s3 + $0x1c] sm:$0xf]
        %v3212 = vld [vmem:[%s3 + $0x20] sm:$0xf]
        %v3213 = vld [vmem:[%s3 + $0x24] sm:$0xf]
        %v3214 = vld [vmem:[%s3 + $0x28] sm:$0xf]
        %v3215 = vld [vmem:[%s3 + $0x2c] sm:$0xf]
        %v3216 = vld [vmem:[%s3 + $0x30] sm:$0xf]
        %v3217 = vld [vmem:[%s3 + $0x34] sm:$0xf]
        %v3218 = vld [vmem:[%s3 + $0x38] sm:$0xf]
        %v3219 = vld [vmem:[%s3 + $0x3c] sm:$0xf]
        %v3220 = vld [vmem:[#allocation5 + $0xc] sm:$0x1]
        %s3221 = scalar_lea.vmem %s3, 64
        %v3222 = vld [vmem:[%s3221] sm:$0xf]
        %v3223 = vld [vmem:[%s3221 + $0x4] sm:$0xf]
        %v3224 = vld [vmem:[%s3221 + $0x8] sm:$0xf]
        %v3225 = vld [vmem:[%s3221 + $0xc] sm:$0xf]
        %v3226 = vld [vmem:[%s3221 + $0x10] sm:$0xf]
        %v3227 = vld [vmem:[%s3221 + $0x14] sm:$0xf]
        %v3228 = vld [vmem:[%s3221 + $0x18] sm:$0xf]
        %v3229 = vld [vmem:[%s3221 + $0x1c] sm:$0xf]
        %v3230 = vld [vmem:[%s3221 + $0x20] sm:$0xf]
        %v3231 = vld [vmem:[%s3221 + $0x24] sm:$0xf]
        %v3232 = vld [vmem:[%s3221 + $0x28] sm:$0xf]
        %v3233 = vld [vmem:[%s3221 + $0x2c] sm:$0xf]
        %v3234 = vld [vmem:[%s3221 + $0x30] sm:$0xf]
        %v3235 = vld [vmem:[%s3221 + $0x34] sm:$0xf]
        %v3236 = vld [vmem:[%s3221 + $0x38] sm:$0xf]
        %v3237 = vld [vmem:[%s3221 + $0x3c] sm:$0xf]
        %v3242 = vunpack.c.l.b16 %v3201
        %v3243 = vunpack.c.l.b16 %v3202
        %v3244 = vunpack.c.l.b16 %v3203
        %v3245 = vunpack.c.l.b16 %v3220
        %v3246 = vpack.c.b16 %v3243, %v3242
        %v3247 = vpack.c.b16 %v3245, %v3244
        %v3249 = vshrl.u32 %v3246, 16
        %v3251 = vshll.u32 %v3246, 16
        %v3253 = vrot.slane %v3251, 1
        %v3254 = vor.u32 %v3249, %v3253
        %v3256 = vshll.u32 %v3247, 16
        %v3258 = vrot.slane %v3256, 1
        %v3259 = vsel %vm1334, %v3254, %v3258
        %v3260 = vshrl.u32 %v3247, 16
        %v3262 = vor.u32 %v3260, %v3258
        %v3281 = vunpack.c.l.b16 %v3222
        %v3282 = vunpack.c.l.b16 %v3223
        %v3283 = vunpack.c.l.b16 %v3224
        %v3284 = vunpack.c.l.b16 %v3225
        %v3285 = vunpack.c.l.b16 %v3226
        %v3286 = vunpack.c.l.b16 %v3227
        %v3287 = vunpack.c.l.b16 %v3228
        %v3288 = vunpack.c.l.b16 %v3229
        %v3289 = vunpack.c.l.b16 %v3230
        %v3290 = vunpack.c.l.b16 %v3231
        %v3291 = vunpack.c.l.b16 %v3232
        %v3292 = vunpack.c.l.b16 %v3233
        %v3293 = vunpack.c.l.b16 %v3234
        %v3294 = vunpack.c.l.b16 %v3235
        %v3295 = vunpack.c.l.b16 %v3236
        %v3296 = vunpack.c.l.b16 %v3237
        %v3297 = vpack.c.b16 %v3282, %v3281
        %v3298 = vpack.c.b16 %v3284, %v3283
        %v3299 = vpack.c.b16 %v3286, %v3285
        %v3300 = vpack.c.b16 %v3288, %v3287
        %v3301 = vpack.c.b16 %v3290, %v3289
        %v3302 = vpack.c.b16 %v3292, %v3291
        %v3303 = vpack.c.b16 %v3294, %v3293
        %v3304 = vpack.c.b16 %v3296, %v3295
        %3313 = vmatprep.subr.bf16.mxu0 0
        %3314 = vmatpush1.bf16.msra.mxu0 %v3297
        %3315 = vmatprep.subr.bf16.mxu0 0
        %3316 = vmatpush1.bf16.msra.mxu0 %v3298
        %3317 = vmatprep.subr.bf16.mxu0 0
        %3318 = vmatpush1.bf16.msra.mxu0 %v3299
        %3319 = vmatprep.subr.bf16.mxu0 0
        %3320 = vmatpush1.bf16.msra.mxu0 %v3300
        %3321 = vmatprep.subr.bf16.mxu0 0
        %3322 = vmatpush1.bf16.msra.mxu0 %v3301
        %3323 = vmatprep.subr.bf16.mxu0 0
        %3324 = vmatpush1.bf16.msra.mxu0 %v3302
        %3325 = vmatprep.subr.bf16.mxu0 0
        %3326 = vmatpush1.bf16.msra.mxu0 %v3303
        %3327 = vmatprep.subr.bf16.mxu0 0
        %3328 = vmatpush1.bf16.msra.mxu0 %v3304
        %3329 = vmatprep.subr.bf16.mxu0 0
        %3330 = vmatpush1.bf16.msra.mxu0 0
        %3331 = vmatprep.subr.bf16.mxu0 0
        %3332 = vmatpush1.bf16.msra.mxu0 0
        %3333 = vmatprep.subr.bf16.mxu0 0
        %3334 = vmatpush1.bf16.msra.mxu0 0
        %3335 = vmatprep.subr.bf16.mxu0 0
        %3336 = vmatpush1.bf16.msra.mxu0 0
        %3337 = vmatprep.subr.bf16.mxu0 0
        %3338 = vmatpush1.bf16.msra.mxu0 0
        %3339 = vmatprep.subr.bf16.mxu0 0
        %3340 = vmatpush1.bf16.msra.mxu0 0
        %3341 = vmatprep.subr.bf16.mxu0 0
        %3342 = vmatpush1.bf16.msra.mxu0 0
        %3343 = vmatprep.subr.bf16.mxu0 0
        %3344 = vmatpush1.bf16.msra.mxu0 0
        %3345 = vmatprep.mubr.bf16.mxu0 0
        %3346 = vmatmul.mubr.bf16.gmra.mrb[0].mxu0 %v3259
        %v3347 = vpop.f32.mrb[0].mxu0
        %v3348 = vadd.f32 0.0, %v3347
        %v3349 = vpop.f32.mrb[0].mxu0
        %v3350 = vpop.f32.mrb[0].mxu0
        %v3351 = vadd.f32 0.0, %v3350
        %v3352 = vpop.f32.mrb[0].mxu0
        %3353 = vmatprep.mubr.bf16.mxu0 0
        %3354 = vmatmul.mubr.bf16.gmra.mrb[0].mxu0 %v3262
        %v3355 = vpop.f32.mrb[0].mxu0
        %v3356 = vadd.f32 0.0, %v3355
        %v3357 = vpop.f32.mrb[0].mxu0
        %v3358 = vpop.f32.mrb[0].mxu0
        %v3359 = vpop.f32.mrb[0].mxu0
        %3360 = vdwg.mxu0
        %v3361 = vpack.c.b16 %v3244, %v3244
        %v3380 = vunpack.c.l.b16 %v3204
        %v3381 = vunpack.c.l.b16 %v3205
        %v3382 = vunpack.c.l.b16 %v3206
        %v3383 = vunpack.c.l.b16 %v3207
        %v3384 = vunpack.c.l.b16 %v3208
        %v3385 = vunpack.c.l.b16 %v3209
        %v3386 = vunpack.c.l.b16 %v3210
        %v3387 = vunpack.c.l.b16 %v3211
        %v3388 = vunpack.c.l.b16 %v3212
        %v3389 = vunpack.c.l.b16 %v3213
        %v3390 = vunpack.c.l.b16 %v3214
        %v3391 = vunpack.c.l.b16 %v3215
        %v3392 = vunpack.c.l.b16 %v3216
        %v3393 = vunpack.c.l.b16 %v3217
        %v3394 = vunpack.c.l.b16 %v3218
        %v3395 = vunpack.c.l.b16 %v3219
        %v3396 = vpack.c.b16 %v3381, %v3380
        %v3397 = vpack.c.b16 %v3383, %v3382
        %v3398 = vpack.c.b16 %v3385, %v3384
        %v3399 = vpack.c.b16 %v3387, %v3386
        %v3400 = vpack.c.b16 %v3389, %v3388
        %v3401 = vpack.c.b16 %v3391, %v3390
        %v3402 = vpack.c.b16 %v3393, %v3392
        %v3403 = vpack.c.b16 %v3395, %v3394
        %3412 = vmatprep.subr.bf16.mxu0 0
        %3413 = vmatpush1.bf16.msra.mxu0 %v3396
        %3414 = vmatprep.subr.bf16.mxu0 0
        %3415 = vmatpush1.bf16.msra.mxu0 %v3397
        %3416 = vmatprep.subr.bf16.mxu0 0
        %3417 = vmatpush1.bf16.msra.mxu0 %v3398
        %3418 = vmatprep.subr.bf16.mxu0 0
        %3419 = vmatpush1.bf16.msra.mxu0 %v3399
        %3420 = vmatprep.subr.bf16.mxu0 0
        %3421 = vmatpush1.bf16.msra.mxu0 %v3400
        %3422 = vmatprep.subr.bf16.mxu0 0
        %3423 = vmatpush1.bf16.msra.mxu0 %v3401
        %3424 = vmatprep.subr.bf16.mxu0 0
        %3425 = vmatpush1.bf16.msra.mxu0 %v3402
        %3426 = vmatprep.subr.bf16.mxu0 0
        %3427 = vmatpush1.bf16.msra.mxu0 %v3403
        %3428 = vmatprep.subr.bf16.mxu0 0
        %3429 = vmatpush1.bf16.msra.mxu0 0
        %3430 = vmatprep.subr.bf16.mxu0 0
        %3431 = vmatpush1.bf16.msra.mxu0 0
        %3432 = vmatprep.subr.bf16.mxu0 0
        %3433 = vmatpush1.bf16.msra.mxu0 0
        %3434 = vmatprep.subr.bf16.mxu0 0
        %3435 = vmatpush1.bf16.msra.mxu0 0
        %3436 = vmatprep.subr.bf16.mxu0 0
        %3437 = vmatpush1.bf16.msra.mxu0 0
        %3438 = vmatprep.subr.bf16.mxu0 0
        %3439 = vmatpush1.bf16.msra.mxu0 0
        %3440 = vmatprep.subr.bf16.mxu0 0
        %3441 = vmatpush1.bf16.msra.mxu0 0
        %3442 = vmatprep.subr.bf16.mxu0 0
        %3443 = vmatpush1.bf16.msra.mxu0 0
        %3444 = vmatprep.mubr.bf16.mxu0 0
        %3445 = vmatmul.mubr.bf16.gmra.mrb[0].mxu0 %v3246
        %v3446 = vpop.f32.mrb[0].mxu0
        %v3447 = vadd.f32 %v3348, %v3446
        %v3448 = vpop.f32.mrb[0].mxu0
        %v3449 = vpop.f32.mrb[0].mxu0
        %v3450 = vadd.f32 %v3351, %v3449
        %v3451 = vpop.f32.mrb[0].mxu0
        %3452 = vmatprep.mubr.bf16.mxu0 0
        %3453 = vmatmul.mubr.bf16.gmra.mrb[0].mxu0 %v3361
        %v3454 = vpop.f32.mrb[0].mxu0
        %v3455 = vadd.f32 %v3356, %v3454
        %v3456 = vpop.f32.mrb[0].mxu0
        %v3457 = vpop.f32.mrb[0].mxu0
        %v3458 = vpop.f32.mrb[0].mxu0
        %3459 = vdwg.mxu0
        %v3460 = vld [vmem:[#allocation5] sm:$0xe]
        %s3461 = scalar_lea.vmem %s3, 128
        %v3462 = vld [vmem:[%s3461] sm:$0xf]
        %v3463 = vld [vmem:[%s3461 + $0x4] sm:$0xf]
        %v3464 = vld [vmem:[%s3461 + $0x8] sm:$0xf]
        %v3465 = vld [vmem:[%s3461 + $0xc] sm:$0xf]
        %v3466 = vld [vmem:[%s3461 + $0x10] sm:$0xf]
        %v3467 = vld [vmem:[%s3461 + $0x14] sm:$0xf]
        %v3468 = vld [vmem:[%s3461 + $0x18] sm:$0xf]
        %v3469 = vld [vmem:[%s3461 + $0x1c] sm:$0xf]
        %v3470 = vld [vmem:[%s3461 + $0x20] sm:$0xf]
        %v3471 = vld [vmem:[%s3461 + $0x24] sm:$0xf]
        %v3472 = vld [vmem:[%s3461 + $0x28] sm:$0xf]
        %v3473 = vld [vmem:[%s3461 + $0x2c] sm:$0xf]
        %v3474 = vld [vmem:[%s3461 + $0x30] sm:$0xf]
        %v3475 = vld [vmem:[%s3461 + $0x34] sm:$0xf]
        %v3476 = vld [vmem:[%s3461 + $0x38] sm:$0xf]
        %v3477 = vld [vmem:[%s3461 + $0x3c] sm:$0xf]
        %v3479 = vunpack.c.l.b16 %v3460
        %v3480 = vpack.c.b16 %v3243, %v3479
        %v3481 = vrot.slane %v3480, 1
        %v3482 = vrot.slane %v3247, 1
        %v3483 = vsel %vm1652, %v3481, %v3482
        %v3502 = vunpack.c.l.b16 %v3462
        %v3503 = vunpack.c.l.b16 %v3463
        %v3504 = vunpack.c.l.b16 %v3464
        %v3505 = vunpack.c.l.b16 %v3465
        %v3506 = vunpack.c.l.b16 %v3466
        %v3507 = vunpack.c.l.b16 %v3467
        %v3508 = vunpack.c.l.b16 %v3468
        %v3509 = vunpack.c.l.b16 %v3469
        %v3510 = vunpack.c.l.b16 %v3470
        %v3511 = vunpack.c.l.b16 %v3471
        %v3512 = vunpack.c.l.b16 %v3472
        %v3513 = vunpack.c.l.b16 %v3473
        %v3514 = vunpack.c.l.b16 %v3474
        %v3515 = vunpack.c.l.b16 %v3475
        %v3516 = vunpack.c.l.b16 %v3476
        %v3517 = vunpack.c.l.b16 %v3477
        %v3518 = vpack.c.b16 %v3503, %v3502
        %v3519 = vpack.c.b16 %v3505, %v3504
        %v3520 = vpack.c.b16 %v3507, %v3506
        %v3521 = vpack.c.b16 %v3509, %v3508
        %v3522 = vpack.c.b16 %v3511, %v3510
        %v3523 = vpack.c.b16 %v3513, %v3512
        %v3524 = vpack.c.b16 %v3515, %v3514
        %v3525 = vpack.c.b16 %v3517, %v3516
        %3534 = vmatprep.subr.bf16.mxu0 0
        %3535 = vmatpush1.bf16.msra.mxu0 %v3518
        %3536 = vmatprep.subr.bf16.mxu0 0
        %3537 = vmatpush1.bf16.msra.mxu0 %v3519
        %3538 = vmatprep.subr.bf16.mxu0 0
        %3539 = vmatpush1.bf16.msra.mxu0 %v3520
        %3540 = vmatprep.subr.bf16.mxu0 0
        %3541 = vmatpush1.bf16.msra.mxu0 %v3521
        %3542 = vmatprep.subr.bf16.mxu0 0
        %3543 = vmatpush1.bf16.msra.mxu0 %v3522
        %3544 = vmatprep.subr.bf16.mxu0 0
        %3545 = vmatpush1.bf16.msra.mxu0 %v3523
        %3546 = vmatprep.subr.bf16.mxu0 0
        %3547 = vmatpush1.bf16.msra.mxu0 %v3524
        %3548 = vmatprep.subr.bf16.mxu0 0
        %3549 = vmatpush1.bf16.msra.mxu0 %v3525
        %3550 = vmatprep.subr.bf16.mxu0 0
        %3551 = vmatpush1.bf16.msra.mxu0 0
        %3552 = vmatprep.subr.bf16.mxu0 0
        %3553 = vmatpush1.bf16.msra.mxu0 0
        %3554 = vmatprep.subr.bf16.mxu0 0
        %3555 = vmatpush1.bf16.msra.mxu0 0
        %3556 = vmatprep.subr.bf16.mxu0 0
        %3557 = vmatpush1.bf16.msra.mxu0 0
        %3558 = vmatprep.subr.bf16.mxu0 0
        %3559 = vmatpush1.bf16.msra.mxu0 0
        %3560 = vmatprep.subr.bf16.mxu0 0
        %3561 = vmatpush1.bf16.msra.mxu0 0
        %3562 = vmatprep.subr.bf16.mxu0 0
        %3563 = vmatpush1.bf16.msra.mxu0 0
        %3564 = vmatprep.subr.bf16.mxu0 0
        %3565 = vmatpush1.bf16.msra.mxu0 0
        %3566 = vmatprep.mubr.bf16.mxu0 0
        %3567 = vmatmul.mubr.bf16.gmra.mrb[0].mxu0 %v3483
        %v3568 = vpop.f32.mrb[0].mxu0
        %v3569 = vadd.f32 0.0, %v3568
        %v3570 = vpop.f32.mrb[0].mxu0
        %v3571 = vpop.f32.mrb[0].mxu0
        %v3572 = vadd.f32 0.0, %v3571
        %v3573 = vpop.f32.mrb[0].mxu0
        %3574 = vmatprep.mubr.bf16.mxu0 0
        %3575 = vmatmul.mubr.bf16.gmra.mrb[0].mxu0 %v3482
        %v3576 = vpop.f32.mrb[0].mxu0
        %v3577 = vadd.f32 0.0, %v3576
        %v3578 = vpop.f32.mrb[0].mxu0
        %v3579 = vpop.f32.mrb[0].mxu0
        %v3580 = vpop.f32.mrb[0].mxu0
        %3581 = vdwg.mxu0
        %v3582 = vadd.f32 %v3447, %v3569
        %v3583 = vadd.f32 %v3450, %v3572
        %v3584 = vadd.f32 %v3455, %v3577
        %v3585 = vld [vmem:[#allocation5] sm:$0x8]
        %v3586 = vld [vmem:[#allocation5 + $0xc] sm:$0x7]
        %s3587 = scalar_lea.vmem %s3, 192
        %v3588 = vld [vmem:[%s3587] sm:$0xf]
        %v3589 = vld [vmem:[%s3587 + $0x4] sm:$0xf]
        %v3590 = vld [vmem:[%s3587 + $0x8] sm:$0xf]
        %v3591 = vld [vmem:[%s3587 + $0xc] sm:$0xf]
        %v3592 = vld [vmem:[%s3587 + $0x10] sm:$0xf]
        %v3593 = vld [vmem:[%s3587 + $0x14] sm:$0xf]
        %v3594 = vld [vmem:[%s3587 + $0x18] sm:$0xf]
        %v3595 = vld [vmem:[%s3587 + $0x1c] sm:$0xf]
        %v3596 = vld [vmem:[%s3587 + $0x20] sm:$0xf]
        %v3597 = vld [vmem:[%s3587 + $0x24] sm:$0xf]
        %v3598 = vld [vmem:[%s3587 + $0x28] sm:$0xf]
        %v3599 = vld [vmem:[%s3587 + $0x2c] sm:$0xf]
        %v3600 = vld [vmem:[%s3587 + $0x30] sm:$0xf]
        %v3601 = vld [vmem:[%s3587 + $0x34] sm:$0xf]
        %v3602 = vld [vmem:[%s3587 + $0x38] sm:$0xf]
        %v3603 = vld [vmem:[%s3587 + $0x3c] sm:$0xf]
        %v3606 = vunpack.c.l.b16 %v3585
        %v3607 = vunpack.c.l.b16 %v3586
        %v3608 = vpack.c.b16 %v3243, %v3606
        %v3609 = vpack.c.b16 %v3607, %v3244
        %v3610 = vrot.slane %v3608, 3
        %v3611 = vrot.slane %v3609, 3
        %v3612 = vsel %vm2818, %v3610, %v3611
        %v3631 = vunpack.c.l.b16 %v3588
        %v3632 = vunpack.c.l.b16 %v3589
        %v3633 = vunpack.c.l.b16 %v3590
        %v3634 = vunpack.c.l.b16 %v3591
        %v3635 = vunpack.c.l.b16 %v3592
        %v3636 = vunpack.c.l.b16 %v3593
        %v3637 = vunpack.c.l.b16 %v3594
        %v3638 = vunpack.c.l.b16 %v3595
        %v3639 = vunpack.c.l.b16 %v3596
        %v3640 = vunpack.c.l.b16 %v3597
        %v3641 = vunpack.c.l.b16 %v3598
        %v3642 = vunpack.c.l.b16 %v3599
        %v3643 = vunpack.c.l.b16 %v3600
        %v3644 = vunpack.c.l.b16 %v3601
        %v3645 = vunpack.c.l.b16 %v3602
        %v3646 = vunpack.c.l.b16 %v3603
        %v3647 = vpack.c.b16 %v3632, %v3631
        %v3648 = vpack.c.b16 %v3634, %v3633
        %v3649 = vpack.c.b16 %v3636, %v3635
        %v3650 = vpack.c.b16 %v3638, %v3637
        %v3651 = vpack.c.b16 %v3640, %v3639
        %v3652 = vpack.c.b16 %v3642, %v3641
        %v3653 = vpack.c.b16 %v3644, %v3643
        %v3654 = vpack.c.b16 %v3646, %v3645
        %3663 = vmatprep.subr.bf16.mxu0 0
        %3664 = vmatpush1.bf16.msra.mxu0 %v3647
        %3665 = vmatprep.subr.bf16.mxu0 0
        %3666 = vmatpush1.bf16.msra.mxu0 %v3648
        %3667 = vmatprep.subr.bf16.mxu0 0
        %3668 = vmatpush1.bf16.msra.mxu0 %v3649
        %3669 = vmatprep.subr.bf16.mxu0 0
        %3670 = vmatpush1.bf16.msra.mxu0 %v3650
        %3671 = vmatprep.subr.bf16.mxu0 0
        %3672 = vmatpush1.bf16.msra.mxu0 %v3651
        %3673 = vmatprep.subr.bf16.mxu0 0
        %3674 = vmatpush1.bf16.msra.mxu0 %v3652
        %3675 = vmatprep.subr.bf16.mxu0 0
        %3676 = vmatpush1.bf16.msra.mxu0 %v3653
        %3677 = vmatprep.subr.bf16.mxu0 0
        %3678 = vmatpush1.bf16.msra.mxu0 %v3654
        %3679 = vmatprep.subr.bf16.mxu0 0
        %3680 = vmatpush1.bf16.msra.mxu0 0
        %3681 = vmatprep.subr.bf16.mxu0 0
        %3682 = vmatpush1.bf16.msra.mxu0 0
        %3683 = vmatprep.subr.bf16.mxu0 0
        %3684 = vmatpush1.bf16.msra.mxu0 0
        %3685 = vmatprep.subr.bf16.mxu0 0
        %3686 = vmatpush1.bf16.msra.mxu0 0
        %3687 = vmatprep.subr.bf16.mxu0 0
        %3688 = vmatpush1.bf16.msra.mxu0 0
        %3689 = vmatprep.subr.bf16.mxu0 0
        %3690 = vmatpush1.bf16.msra.mxu0 0
        %3691 = vmatprep.subr.bf16.mxu0 0
        %3692 = vmatpush1.bf16.msra.mxu0 0
        %3693 = vmatprep.subr.bf16.mxu0 0
        %3694 = vmatpush1.bf16.msra.mxu0 0
        %3695 = vmatprep.mubr.bf16.mxu0 0
        %3696 = vmatmul.mubr.bf16.gmra.mrb[0].mxu0 %v3612
        %v3697 = vpop.f32.mrb[0].mxu0
        %v3698 = vadd.f32 0.0, %v3697
        %v3699 = vpop.f32.mrb[0].mxu0
        %v3700 = vpop.f32.mrb[0].mxu0
        %v3701 = vadd.f32 0.0, %v3700
        %v3702 = vpop.f32.mrb[0].mxu0
        %3703 = vmatprep.mubr.bf16.mxu0 0
        %3704 = vmatmul.mubr.bf16.gmra.mrb[0].mxu0 %v3611
        %v3705 = vpop.f32.mrb[0].mxu0
        %v3706 = vadd.f32 0.0, %v3705
        %v3707 = vpop.f32.mrb[0].mxu0
        %v3708 = vpop.f32.mrb[0].mxu0
        %v3709 = vpop.f32.mrb[0].mxu0
        %3710 = vdwg.mxu0
        %v3711 = vadd.f32 %v3582, %v3698
        %v3712 = vadd.f32 %v3583, %v3701
        %v3713 = vadd.f32 %v3584, %v3706
        %v3714 = vld [vmem:[#allocation5 + $0xc] sm:$0xf]
        %s3715 = scalar_lea.vmem %s3, 256
        %v3716 = vld [vmem:[%s3715] sm:$0xf]
        %v3717 = vld [vmem:[%s3715 + $0x4] sm:$0xf]
        %v3718 = vld [vmem:[%s3715 + $0x8] sm:$0xf]
        %v3719 = vld [vmem:[%s3715 + $0xc] sm:$0xf]
        %v3720 = vld [vmem:[%s3715 + $0x10] sm:$0xf]
        %v3721 = vld [vmem:[%s3715 + $0x14] sm:$0xf]
        %v3722 = vld [vmem:[%s3715 + $0x18] sm:$0xf]
        %v3723 = vld [vmem:[%s3715 + $0x1c] sm:$0xf]
        %v3724 = vld [vmem:[%s3715 + $0x20] sm:$0xf]
        %v3725 = vld [vmem:[%s3715 + $0x24] sm:$0xf]
        %v3726 = vld [vmem:[%s3715 + $0x28] sm:$0xf]
        %v3727 = vld [vmem:[%s3715 + $0x2c] sm:$0xf]
        %v3728 = vld [vmem:[%s3715 + $0x30] sm:$0xf]
        %v3729 = vld [vmem:[%s3715 + $0x34] sm:$0xf]
        %v3730 = vld [vmem:[%s3715 + $0x38] sm:$0xf]
        %v3731 = vld [vmem:[%s3715 + $0x3c] sm:$0xf]
        %v3733 = vunpack.c.l.b16 %v3714
        %v3734 = vpack.c.b16 %v3733, %v3244
        %vm3735 = vsmask.f32 4352
        %v3737 = vshrl.u32 %v3608, 16
        %v3739 = vrot.slane %v3737, 3
        %v3740 = vshll.u32 %v3608, 16
        %v3742 = vrot.slane %v3740, 4
        %v3743 = vor.u32 %v3739, %v3742
        %v3745 = vshrl.u32 %v3734, 16
        %v3747 = vrot.slane %v3745, 3
        %v3748 = vshll.u32 %v3734, 16
        %v3750 = vrot.slane %v3748, 4
        %v3751 = vor.u32 %v3747, %v3750
        %v3752 = vsel %vm3735, %v3743, %v3751
        %v3771 = vunpack.c.l.b16 %v3716
        %v3772 = vunpack.c.l.b16 %v3717
        %v3773 = vunpack.c.l.b16 %v3718
        %v3774 = vunpack.c.l.b16 %v3719
        %v3775 = vunpack.c.l.b16 %v3720
        %v3776 = vunpack.c.l.b16 %v3721
        %v3777 = vunpack.c.l.b16 %v3722
        %v3778 = vunpack.c.l.b16 %v3723
        %v3779 = vunpack.c.l.b16 %v3724
        %v3780 = vunpack.c.l.b16 %v3725
        %v3781 = vunpack.c.l.b16 %v3726
        %v3782 = vunpack.c.l.b16 %v3727
        %v3783 = vunpack.c.l.b16 %v3728
        %v3784 = vunpack.c.l.b16 %v3729
        %v3785 = vunpack.c.l.b16 %v3730
        %v3786 = vunpack.c.l.b16 %v3731
        %v3787 = vpack.c.b16 %v3772, %v3771
        %v3788 = vpack.c.b16 %v3774, %v3773
        %v3789 = vpack.c.b16 %v3776, %v3775
        %v3790 = vpack.c.b16 %v3778, %v3777
        %v3791 = vpack.c.b16 %v3780, %v3779
        %v3792 = vpack.c.b16 %v3782, %v3781
        %v3793 = vpack.c.b16 %v3784, %v3783
        %v3794 = vpack.c.b16 %v3786, %v3785
        %3803 = vmatprep.subr.bf16.mxu0 0
        %3804 = vmatpush1.bf16.msra.mxu0 %v3787
        %3805 = vmatprep.subr.bf16.mxu0 0
        %3806 = vmatpush1.bf16.msra.mxu0 %v3788
        %3807 = vmatprep.subr.bf16.mxu0 0
        %3808 = vmatpush1.bf16.msra.mxu0 %v3789
        %3809 = vmatprep.subr.bf16.mxu0 0
        %3810 = vmatpush1.bf16.msra.mxu0 %v3790
        %3811 = vmatprep.subr.bf16.mxu0 0
        %3812 = vmatpush1.bf16.msra.mxu0 %v3791
        %3813 = vmatprep.subr.bf16.mxu0 0
        %3814 = vmatpush1.bf16.msra.mxu0 %v3792
        %3815 = vmatprep.subr.bf16.mxu0 0
        %3816 = vmatpush1.bf16.msra.mxu0 %v3793
        %3817 = vmatprep.subr.bf16.mxu0 0
        %3818 = vmatpush1.bf16.msra.mxu0 %v3794
        %3819 = vmatprep.subr.bf16.mxu0 0
        %3820 = vmatpush1.bf16.msra.mxu0 0
        %3821 = vmatprep.subr.bf16.mxu0 0
        %3822 = vmatpush1.bf16.msra.mxu0 0
        %3823 = vmatprep.subr.bf16.mxu0 0
        %3824 = vmatpush1.bf16.msra.mxu0 0
        %3825 = vmatprep.subr.bf16.mxu0 0
        %3826 = vmatpush1.bf16.msra.mxu0 0
        %3827 = vmatprep.subr.bf16.mxu0 0
        %3828 = vmatpush1.bf16.msra.mxu0 0
        %3829 = vmatprep.subr.bf16.mxu0 0
        %3830 = vmatpush1.bf16.msra.mxu0 0
        %3831 = vmatprep.subr.bf16.mxu0 0
        %3832 = vmatpush1.bf16.msra.mxu0 0
        %3833 = vmatprep.subr.bf16.mxu0 0
        %3834 = vmatpush1.bf16.msra.mxu0 0
        %3835 = vmatprep.mubr.bf16.mxu0 0
        %3836 = vmatmul.mubr.bf16.gmra.mrb[0].mxu0 %v3752
        %v3837 = vpop.f32.mrb[0].mxu0
        %v3838 = vadd.f32 0.0, %v3837
        %v3839 = vpop.f32.mrb[0].mxu0
        %v3840 = vpop.f32.mrb[0].mxu0
        %v3841 = vadd.f32 0.0, %v3840
        %v3842 = vpop.f32.mrb[0].mxu0
        %3843 = vmatprep.mubr.bf16.mxu0 0
        %3844 = vmatmul.mubr.bf16.gmra.mrb[0].mxu0 %v3751
        %v3845 = vpop.f32.mrb[0].mxu0
        %v3846 = vadd.f32 0.0, %v3845
        %v3847 = vpop.f32.mrb[0].mxu0
        %v3848 = vpop.f32.mrb[0].mxu0
        %v3849 = vpop.f32.mrb[0].mxu0
        %3850 = vdwg.mxu0
        %v3851 = vadd.f32 %v3711, %v3838
        %v3852 = vadd.f32 %v3712, %v3841
        %v3853 = vadd.f32 %v3713, %v3846
        %s3854 = scalar_lea.vmem %s3, 320
        %v3855 = vld [vmem:[%s3854] sm:$0xf]
        %v3856 = vld [vmem:[%s3854 + $0x4] sm:$0xf]
        %v3857 = vld [vmem:[%s3854 + $0x8] sm:$0xf]
        %v3858 = vld [vmem:[%s3854 + $0xc] sm:$0xf]
        %v3859 = vld [vmem:[%s3854 + $0x10] sm:$0xf]
        %v3860 = vld [vmem:[%s3854 + $0x14] sm:$0xf]
        %v3861 = vld [vmem:[%s3854 + $0x18] sm:$0xf]
        %v3862 = vld [vmem:[%s3854 + $0x1c] sm:$0xf]
        %v3863 = vld [vmem:[%s3854 + $0x20] sm:$0xf]
        %v3864 = vld [vmem:[%s3854 + $0x24] sm:$0xf]
        %v3865 = vld [vmem:[%s3854 + $0x28] sm:$0xf]
        %v3866 = vld [vmem:[%s3854 + $0x2c] sm:$0xf]
        %v3867 = vld [vmem:[%s3854 + $0x30] sm:$0xf]
        %v3868 = vld [vmem:[%s3854 + $0x34] sm:$0xf]
        %v3869 = vld [vmem:[%s3854 + $0x38] sm:$0xf]
        %v3870 = vld [vmem:[%s3854 + $0x3c] sm:$0xf]
        %v3871 = vpack.c.b16 %v3244, %v3243
        %v3872 = vpack.c.b16 %v3733, %v3733
        %v3891 = vunpack.c.l.b16 %v3855
        %v3892 = vunpack.c.l.b16 %v3856
        %v3893 = vunpack.c.l.b16 %v3857
        %v3894 = vunpack.c.l.b16 %v3858
        %v3895 = vunpack.c.l.b16 %v3859
        %v3896 = vunpack.c.l.b16 %v3860
        %v3897 = vunpack.c.l.b16 %v3861
        %v3898 = vunpack.c.l.b16 %v3862
        %v3899 = vunpack.c.l.b16 %v3863
        %v3900 = vunpack.c.l.b16 %v3864
        %v3901 = vunpack.c.l.b16 %v3865
        %v3902 = vunpack.c.l.b16 %v3866
        %v3903 = vunpack.c.l.b16 %v3867
        %v3904 = vunpack.c.l.b16 %v3868
        %v3905 = vunpack.c.l.b16 %v3869
        %v3906 = vunpack.c.l.b16 %v3870
        %v3907 = vpack.c.b16 %v3892, %v3891
        %v3908 = vpack.c.b16 %v3894, %v3893
        %v3909 = vpack.c.b16 %v3896, %v3895
        %v3910 = vpack.c.b16 %v3898, %v3897
        %v3911 = vpack.c.b16 %v3900, %v3899
        %v3912 = vpack.c.b16 %v3902, %v3901
        %v3913 = vpack.c.b16 %v3904, %v3903
        %v3914 = vpack.c.b16 %v3906, %v3905
        %3923 = vmatprep.subr.bf16.mxu0 0
        %3924 = vmatpush1.bf16.msra.mxu0 %v3907
        %3925 = vmatprep.subr.bf16.mxu0 0
        %3926 = vmatpush1.bf16.msra.mxu0 %v3908
        %3927 = vmatprep.subr.bf16.mxu0 0
        %3928 = vmatpush1.bf16.msra.mxu0 %v3909
        %3929 = vmatprep.subr.bf16.mxu0 0
        %3930 = vmatpush1.bf16.msra.mxu0 %v3910
        %3931 = vmatprep.subr.bf16.mxu0 0
        %3932 = vmatpush1.bf16.msra.mxu0 %v3911
        %3933 = vmatprep.subr.bf16.mxu0 0
        %3934 = vmatpush1.bf16.msra.mxu0 %v3912
        %3935 = vmatprep.subr.bf16.mxu0 0
        %3936 = vmatpush1.bf16.msra.mxu0 %v3913
        %3937 = vmatprep.subr.bf16.mxu0 0
        %3938 = vmatpush1.bf16.msra.mxu0 %v3914
        %3939 = vmatprep.subr.bf16.mxu0 0
        %3940 = vmatpush1.bf16.msra.mxu0 0
        %3941 = vmatprep.subr.bf16.mxu0 0
        %3942 = vmatpush1.bf16.msra.mxu0 0
        %3943 = vmatprep.subr.bf16.mxu0 0
        %3944 = vmatpush1.bf16.msra.mxu0 0
        %3945 = vmatprep.subr.bf16.mxu0 0
        %3946 = vmatpush1.bf16.msra.mxu0 0
        %3947 = vmatprep.subr.bf16.mxu0 0
        %3948 = vmatpush1.bf16.msra.mxu0 0
        %3949 = vmatprep.subr.bf16.mxu0 0
        %3950 = vmatpush1.bf16.msra.mxu0 0
        %3951 = vmatprep.subr.bf16.mxu0 0
        %3952 = vmatpush1.bf16.msra.mxu0 0
        %3953 = vmatprep.subr.bf16.mxu0 0
        %3954 = vmatpush1.bf16.msra.mxu0 0
        %3955 = vmatprep.mubr.bf16.mxu0 0
        %3956 = vmatmul.mubr.bf16.gmra.mrb[0].mxu0 %v3871
        %v3957 = vpop.f32.mrb[0].mxu0
        %v3958 = vadd.f32 0.0, %v3957
        %v3959 = vpop.f32.mrb[0].mxu0
        %v3960 = vpop.f32.mrb[0].mxu0
        %v3961 = vadd.f32 0.0, %v3960
        %v3962 = vpop.f32.mrb[0].mxu0
        %3963 = vmatprep.mubr.bf16.mxu0 0
        %3964 = vmatmul.mubr.bf16.gmra.mrb[0].mxu0 %v3872
        %v3965 = vpop.f32.mrb[0].mxu0
        %v3966 = vadd.f32 0.0, %v3965
        %v3967 = vpop.f32.mrb[0].mxu0
        %v3968 = vpop.f32.mrb[0].mxu0
        %v3969 = vpop.f32.mrb[0].mxu0
        %3970 = vdwg.mxu0
        %v3971 = vadd.f32 %v3851, %v3958
        %v3972 = vadd.f32 %v3852, %v3961
        %v3973 = vadd.f32 %v3853, %v3966
        %v3974 = vld [vmem:[#allocation5 + $0x4] sm:$0xc]
        %v3975 = vld [vmem:[#allocation5 + $0x8] sm:$0xf]
        %v3976 = vld [vmem:[#allocation5 + $0xc] sm:$0xf]
        %v3977 = vld [vmem:[#allocation5 + $0x10] sm:$0x3]
        %s3978 = scalar_lea.vmem %s3, 384
        %v3979 = vld [vmem:[%s3978] sm:$0xf]
        %v3980 = vld [vmem:[%s3978 + $0x4] sm:$0xf]
        %v3981 = vld [vmem:[%s3978 + $0x8] sm:$0xf]
        %v3982 = vld [vmem:[%s3978 + $0xc] sm:$0xf]
        %v3983 = vld [vmem:[%s3978 + $0x10] sm:$0xf]
        %v3984 = vld [vmem:[%s3978 + $0x14] sm:$0xf]
        %v3985 = vld [vmem:[%s3978 + $0x18] sm:$0xf]
        %v3986 = vld [vmem:[%s3978 + $0x1c] sm:$0xf]
        %v3987 = vld [vmem:[%s3978 + $0x20] sm:$0xf]
        %v3988 = vld [vmem:[%s3978 + $0x24] sm:$0xf]
        %v3989 = vld [vmem:[%s3978 + $0x28] sm:$0xf]
        %v3990 = vld [vmem:[%s3978 + $0x2c] sm:$0xf]
        %v3991 = vld [vmem:[%s3978 + $0x30] sm:$0xf]
        %v3992 = vld [vmem:[%s3978 + $0x34] sm:$0xf]
        %v3993 = vld [vmem:[%s3978 + $0x38] sm:$0xf]
        %v3994 = vld [vmem:[%s3978 + $0x3c] sm:$0xf]
        %v3999 = vunpack.c.l.b16 %v3974
        %v4000 = vunpack.c.l.b16 %v3975
        %v4001 = vunpack.c.l.b16 %v3976
        %v4002 = vunpack.c.l.b16 %v3977
        %v4003 = vpack.c.b16 %v4000, %v3999
        %v4004 = vpack.c.b16 %v4002, %v4001
        %v4005 = vrot.slane %v4003, 2
        %v4006 = vrot.slane %v4004, 2
        %v4007 = vsel %vm2235, %v4005, %v4006
        %v4026 = vunpack.c.l.b16 %v3979
        %v4027 = vunpack.c.l.b16 %v3980
        %v4028 = vunpack.c.l.b16 %v3981
        %v4029 = vunpack.c.l.b16 %v3982
        %v4030 = vunpack.c.l.b16 %v3983
        %v4031 = vunpack.c.l.b16 %v3984
        %v4032 = vunpack.c.l.b16 %v3985
        %v4033 = vunpack.c.l.b16 %v3986
        %v4034 = vunpack.c.l.b16 %v3987
        %v4035 = vunpack.c.l.b16 %v3988
        %v4036 = vunpack.c.l.b16 %v3989
        %v4037 = vunpack.c.l.b16 %v3990
        %v4038 = vunpack.c.l.b16 %v3991
        %v4039 = vunpack.c.l.b16 %v3992
        %v4040 = vunpack.c.l.b16 %v3993
        %v4041 = vunpack.c.l.b16 %v3994
        %v4042 = vpack.c.b16 %v4027, %v4026
        %v4043 = vpack.c.b16 %v4029, %v4028
        %v4044 = vpack.c.b16 %v4031, %v4030
        %v4045 = vpack.c.b16 %v4033, %v4032
        %v4046 = vpack.c.b16 %v4035, %v4034
        %v4047 = vpack.c.b16 %v4037, %v4036
        %v4048 = vpack.c.b16 %v4039, %v4038
        %v4049 = vpack.c.b16 %v4041, %v4040
        %4058 = vmatprep.subr.bf16.mxu0 0
        %4059 = vmatpush1.bf16.msra.mxu0 %v4042
        %4060 = vmatprep.subr.bf16.mxu0 0
        %4061 = vmatpush1.bf16.msra.mxu0 %v4043
        %4062 = vmatprep.subr.bf16.mxu0 0
        %4063 = vmatpush1.bf16.msra.mxu0 %v4044
        %4064 = vmatprep.subr.bf16.mxu0 0
        %4065 = vmatpush1.bf16.msra.mxu0 %v4045
        %4066 = vmatprep.subr.bf16.mxu0 0
        %4067 = vmatpush1.bf16.msra.mxu0 %v4046
        %4068 = vmatprep.subr.bf16.mxu0 0
        %4069 = vmatpush1.bf16.msra.mxu0 %v4047
        %4070 = vmatprep.subr.bf16.mxu0 0
        %4071 = vmatpush1.bf16.msra.mxu0 %v4048
        %4072 = vmatprep.subr.bf16.mxu0 0
        %4073 = vmatpush1.bf16.msra.mxu0 %v4049
        %4074 = vmatprep.subr.bf16.mxu0 0
        %4075 = vmatpush1.bf16.msra.mxu0 0
        %4076 = vmatprep.subr.bf16.mxu0 0
        %4077 = vmatpush1.bf16.msra.mxu0 0
        %4078 = vmatprep.subr.bf16.mxu0 0
        %4079 = vmatpush1.bf16.msra.mxu0 0
        %4080 = vmatprep.subr.bf16.mxu0 0
        %4081 = vmatpush1.bf16.msra.mxu0 0
        %4082 = vmatprep.subr.bf16.mxu0 0
        %4083 = vmatpush1.bf16.msra.mxu0 0
        %4084 = vmatprep.subr.bf16.mxu0 0
        %4085 = vmatpush1.bf16.msra.mxu0 0
        %4086 = vmatprep.subr.bf16.mxu0 0
        %4087 = vmatpush1.bf16.msra.mxu0 0
        %4088 = vmatprep.subr.bf16.mxu0 0
        %4089 = vmatpush1.bf16.msra.mxu0 0
        %4090 = vmatprep.mubr.bf16.mxu0 0
        %4091 = vmatmul.mubr.bf16.gmra.mrb[0].mxu0 %v4007
        %v4092 = vpop.f32.mrb[0].mxu0
        %v4093 = vadd.f32 0.0, %v4092
        %v4094 = vpop.f32.mrb[0].mxu0
        %v4095 = vpop.f32.mrb[0].mxu0
        %v4096 = vadd.f32 0.0, %v4095
        %v4097 = vpop.f32.mrb[0].mxu0
        %4098 = vmatprep.mubr.bf16.mxu0 0
        %4099 = vmatmul.mubr.bf16.gmra.mrb[0].mxu0 %v4006
        %v4100 = vpop.f32.mrb[0].mxu0
        %v4101 = vadd.f32 0.0, %v4100
        %v4102 = vpop.f32.mrb[0].mxu0
        %v4103 = vpop.f32.mrb[0].mxu0
        %v4104 = vpop.f32.mrb[0].mxu0
        %4105 = vdwg.mxu0
        %v4106 = vadd.f32 %v3971, %v4093
        %v4107 = vadd.f32 %v3972, %v4096
        %v4108 = vadd.f32 %v3973, %v4101
        %v4109 = vld [vmem:[#allocation5 + $0x10] sm:$0x7]
        %s4110 = scalar_lea.vmem %s3, 448
        %v4111 = vld [vmem:[%s4110] sm:$0xf]
        %v4112 = vld [vmem:[%s4110 + $0x4] sm:$0xf]
        %v4113 = vld [vmem:[%s4110 + $0x8] sm:$0xf]
        %v4114 = vld [vmem:[%s4110 + $0xc] sm:$0xf]
        %v4115 = vld [vmem:[%s4110 + $0x10] sm:$0xf]
        %v4116 = vld [vmem:[%s4110 + $0x14] sm:$0xf]
        %v4117 = vld [vmem:[%s4110 + $0x18] sm:$0xf]
        %v4118 = vld [vmem:[%s4110 + $0x1c] sm:$0xf]
        %v4119 = vld [vmem:[%s4110 + $0x20] sm:$0xf]
        %v4120 = vld [vmem:[%s4110 + $0x24] sm:$0xf]
        %v4121 = vld [vmem:[%s4110 + $0x28] sm:$0xf]
        %v4122 = vld [vmem:[%s4110 + $0x2c] sm:$0xf]
        %v4123 = vld [vmem:[%s4110 + $0x30] sm:$0xf]
        %v4124 = vld [vmem:[%s4110 + $0x34] sm:$0xf]
        %v4125 = vld [vmem:[%s4110 + $0x38] sm:$0xf]
        %v4126 = vld [vmem:[%s4110 + $0x3c] sm:$0xf]
        %v4128 = vunpack.c.l.b16 %v4109
        %v4129 = vpack.c.b16 %v4128, %v4001
        %v4131 = vshrl.u32 %v4003, 16
        %v4133 = vrot.slane %v4131, 2
        %v4134 = vshll.u32 %v4003, 16
        %v4136 = vrot.slane %v4134, 3
        %v4137 = vor.u32 %v4133, %v4136
        %v4139 = vshrl.u32 %v4129, 16
        %v4141 = vrot.slane %v4139, 2
        %v4142 = vshll.u32 %v4129, 16
        %v4144 = vrot.slane %v4142, 3
        %v4145 = vor.u32 %v4141, %v4144
        %v4146 = vsel %vm2607, %v4137, %v4145
        %v4165 = vunpack.c.l.b16 %v4111
        %v4166 = vunpack.c.l.b16 %v4112
        %v4167 = vunpack.c.l.b16 %v4113
        %v4168 = vunpack.c.l.b16 %v4114
        %v4169 = vunpack.c.l.b16 %v4115
        %v4170 = vunpack.c.l.b16 %v4116
        %v4171 = vunpack.c.l.b16 %v4117
        %v4172 = vunpack.c.l.b16 %v4118
        %v4173 = vunpack.c.l.b16 %v4119
        %v4174 = vunpack.c.l.b16 %v4120
        %v4175 = vunpack.c.l.b16 %v4121
        %v4176 = vunpack.c.l.b16 %v4122
        %v4177 = vunpack.c.l.b16 %v4123
        %v4178 = vunpack.c.l.b16 %v4124
        %v4179 = vunpack.c.l.b16 %v4125
        %v4180 = vunpack.c.l.b16 %v4126
        %v4181 = vpack.c.b16 %v4166, %v4165
        %v4182 = vpack.c.b16 %v4168, %v4167
        %v4183 = vpack.c.b16 %v4170, %v4169
        %v4184 = vpack.c.b16 %v4172, %v4171
        %v4185 = vpack.c.b16 %v4174, %v4173
        %v4186 = vpack.c.b16 %v4176, %v4175
        %v4187 = vpack.c.b16 %v4178, %v4177
        %v4188 = vpack.c.b16 %v4180, %v4179
        %4197 = vmatprep.subr.bf16.mxu0 0
        %4198 = vmatpush1.bf16.msra.mxu0 %v4181
        %4199 = vmatprep.subr.bf16.mxu0 0
        %4200 = vmatpush1.bf16.msra.mxu0 %v4182
        %4201 = vmatprep.subr.bf16.mxu0 0
        %4202 = vmatpush1.bf16.msra.mxu0 %v4183
        %4203 = vmatprep.subr.bf16.mxu0 0
        %4204 = vmatpush1.bf16.msra.mxu0 %v4184
        %4205 = vmatprep.subr.bf16.mxu0 0
        %4206 = vmatpush1.bf16.msra.mxu0 %v4185
        %4207 = vmatprep.subr.bf16.mxu0 0
        %4208 = vmatpush1.bf16.msra.mxu0 %v4186
        %4209 = vmatprep.subr.bf16.mxu0 0
        %4210 = vmatpush1.bf16.msra.mxu0 %v4187
        %4211 = vmatprep.subr.bf16.mxu0 0
        %4212 = vmatpush1.bf16.msra.mxu0 %v4188
        %4213 = vmatprep.subr.bf16.mxu0 0
        %4214 = vmatpush1.bf16.msra.mxu0 0
        %4215 = vmatprep.subr.bf16.mxu0 0
        %4216 = vmatpush1.bf16.msra.mxu0 0
        %4217 = vmatprep.subr.bf16.mxu0 0
        %4218 = vmatpush1.bf16.msra.mxu0 0
        %4219 = vmatprep.subr.bf16.mxu0 0
        %4220 = vmatpush1.bf16.msra.mxu0 0
        %4221 = vmatprep.subr.bf16.mxu0 0
        %4222 = vmatpush1.bf16.msra.mxu0 0
        %4223 = vmatprep.subr.bf16.mxu0 0
        %4224 = vmatpush1.bf16.msra.mxu0 0
        %4225 = vmatprep.subr.bf16.mxu0 0
        %4226 = vmatpush1.bf16.msra.mxu0 0
        %4227 = vmatprep.subr.bf16.mxu0 0
        %4228 = vmatpush1.bf16.msra.mxu0 0
        %4229 = vmatprep.mubr.bf16.mxu0 0
        %4230 = vmatmul.mubr.bf16.gmra.mrb[0].mxu0 %v4146
        %v4231 = vpop.f32.mrb[0].mxu0
        %v4232 = vadd.f32 0.0, %v4231
        %v4233 = vpop.f32.mrb[0].mxu0
        %v4234 = vpop.f32.mrb[0].mxu0
        %v4235 = vadd.f32 0.0, %v4234
        %v4236 = vpop.f32.mrb[0].mxu0
        %4237 = vmatprep.mubr.bf16.mxu0 0
        %4238 = vmatmul.mubr.bf16.gmra.mrb[0].mxu0 %v4145
        %v4239 = vpop.f32.mrb[0].mxu0
        %v4240 = vadd.f32 0.0, %v4239
        %v4241 = vpop.f32.mrb[0].mxu0
        %v4242 = vpop.f32.mrb[0].mxu0
        %v4243 = vpop.f32.mrb[0].mxu0
        %4244 = vdwg.mxu0
        %v4245 = vadd.f32 %v4106, %v4232
        %v4246 = vadd.f32 %v4107, %v4235
        %v4247 = vadd.f32 %v4108, %v4240
        %v4248 = vld [vmem:[#allocation5 + $0x4] sm:$0x8]
        %s4249 = scalar_lea.vmem %s3, 512
        %v4250 = vld [vmem:[%s4249] sm:$0xf]
        %v4251 = vld [vmem:[%s4249 + $0x4] sm:$0xf]
        %v4252 = vld [vmem:[%s4249 + $0x8] sm:$0xf]
        %v4253 = vld [vmem:[%s4249 + $0xc] sm:$0xf]
        %v4254 = vld [vmem:[%s4249 + $0x10] sm:$0xf]
        %v4255 = vld [vmem:[%s4249 + $0x14] sm:$0xf]
        %v4256 = vld [vmem:[%s4249 + $0x18] sm:$0xf]
        %v4257 = vld [vmem:[%s4249 + $0x1c] sm:$0xf]
        %v4258 = vld [vmem:[%s4249 + $0x20] sm:$0xf]
        %v4259 = vld [vmem:[%s4249 + $0x24] sm:$0xf]
        %v4260 = vld [vmem:[%s4249 + $0x28] sm:$0xf]
        %v4261 = vld [vmem:[%s4249 + $0x2c] sm:$0xf]
        %v4262 = vld [vmem:[%s4249 + $0x30] sm:$0xf]
        %v4263 = vld [vmem:[%s4249 + $0x34] sm:$0xf]
        %v4264 = vld [vmem:[%s4249 + $0x38] sm:$0xf]
        %v4265 = vld [vmem:[%s4249 + $0x3c] sm:$0xf]
        %v4267 = vunpack.c.l.b16 %v4248
        %v4268 = vpack.c.b16 %v4000, %v4267
        %v4269 = vrot.slane %v4268, 3
        %v4270 = vrot.slane %v4129, 3
        %v4271 = vsel %vm2818, %v4269, %v4270
        %v4290 = vunpack.c.l.b16 %v4250
        %v4291 = vunpack.c.l.b16 %v4251
        %v4292 = vunpack.c.l.b16 %v4252
        %v4293 = vunpack.c.l.b16 %v4253
        %v4294 = vunpack.c.l.b16 %v4254
        %v4295 = vunpack.c.l.b16 %v4255
        %v4296 = vunpack.c.l.b16 %v4256
        %v4297 = vunpack.c.l.b16 %v4257
        %v4298 = vunpack.c.l.b16 %v4258
        %v4299 = vunpack.c.l.b16 %v4259
        %v4300 = vunpack.c.l.b16 %v4260
        %v4301 = vunpack.c.l.b16 %v4261
        %v4302 = vunpack.c.l.b16 %v4262
        %v4303 = vunpack.c.l.b16 %v4263
        %v4304 = vunpack.c.l.b16 %v4264
        %v4305 = vunpack.c.l.b16 %v4265
        %v4306 = vpack.c.b16 %v4291, %v4290
        %v4307 = vpack.c.b16 %v4293, %v4292
        %v4308 = vpack.c.b16 %v4295, %v4294
        %v4309 = vpack.c.b16 %v4297, %v4296
        %v4310 = vpack.c.b16 %v4299, %v4298
        %v4311 = vpack.c.b16 %v4301, %v4300
        %v4312 = vpack.c.b16 %v4303, %v4302
        %v4313 = vpack.c.b16 %v4305, %v4304
        %4322 = vmatprep.subr.bf16.mxu0 0
        %4323 = vmatpush1.bf16.msra.mxu0 %v4306
        %4324 = vmatprep.subr.bf16.mxu0 0
        %4325 = vmatpush1.bf16.msra.mxu0 %v4307
        %4326 = vmatprep.subr.bf16.mxu0 0
        %4327 = vmatpush1.bf16.msra.mxu0 %v4308
        %4328 = vmatprep.subr.bf16.mxu0 0
        %4329 = vmatpush1.bf16.msra.mxu0 %v4309
        %4330 = vmatprep.subr.bf16.mxu0 0
        %4331 = vmatpush1.bf16.msra.mxu0 %v4310
        %4332 = vmatprep.subr.bf16.mxu0 0
        %4333 = vmatpush1.bf16.msra.mxu0 %v4311
        %4334 = vmatprep.subr.bf16.mxu0 0
        %4335 = vmatpush1.bf16.msra.mxu0 %v4312
        %4336 = vmatprep.subr.bf16.mxu0 0
        %4337 = vmatpush1.bf16.msra.mxu0 %v4313
        %4338 = vmatprep.subr.bf16.mxu0 0
        %4339 = vmatpush1.bf16.msra.mxu0 0
        %4340 = vmatprep.subr.bf16.mxu0 0
        %4341 = vmatpush1.bf16.msra.mxu0 0
        %4342 = vmatprep.subr.bf16.mxu0 0
        %4343 = vmatpush1.bf16.msra.mxu0 0
        %4344 = vmatprep.subr.bf16.mxu0 0
        %4345 = vmatpush1.bf16.msra.mxu0 0
        %4346 = vmatprep.subr.bf16.mxu0 0
        %4347 = vmatpush1.bf16.msra.mxu0 0
        %4348 = vmatprep.subr.bf16.mxu0 0
        %4349 = vmatpush1.bf16.msra.mxu0 0
        %4350 = vmatprep.subr.bf16.mxu0 0
        %4351 = vmatpush1.bf16.msra.mxu0 0
        %4352 = vmatprep.subr.bf16.mxu0 0
        %4353 = vmatpush1.bf16.msra.mxu0 0
        %4354 = vmatprep.mubr.bf16.mxu0 0
        %4355 = vmatmul.mubr.bf16.gmra.mrb[0].mxu0 %v4271
        %v4356 = vpop.f32.mrb[0].mxu0
        %v4357 = vadd.f32 0.0, %v4356
        %v4358 = vpop.f32.mrb[0].mxu0
        %v4359 = vpop.f32.mrb[0].mxu0
        %v4360 = vadd.f32 0.0, %v4359
        %v4361 = vpop.f32.mrb[0].mxu0
        %4362 = vmatprep.mubr.bf16.mxu0 0
        %4363 = vmatmul.mubr.bf16.gmra.mrb[0].mxu0 %v4270
        %v4364 = vpop.f32.mrb[0].mxu0
        %v4365 = vadd.f32 0.0, %v4364
        %v4366 = vpop.f32.mrb[0].mxu0
        %v4367 = vpop.f32.mrb[0].mxu0
        %v4368 = vpop.f32.mrb[0].mxu0
        %4369 = vdwg.mxu0
        %v4370 = vadd.f32 %v4245, %v4357
        %v4371 = vadd.f32 %v4246, %v4360
        %v4372 = vadd.f32 %v4247, %v4365
        %v4373 = vmax.f32 %v4370, 0.0
        %v4374 = vmax.f32 %v4371, 0.0
        %v4375 = vmax.f32 %v4372, 0.0
        %v4376 = vmax.f32 %v4373, -1.0
        %v4377 = vmax.f32 %v4374, -1.0
        %v4378 = vmax.f32 %v4375, -1.0
        %v4379 = vmin.f32 %v4376, 1.0
        %v4380 = vmin.f32 %v4377, 1.0
        %v4381 = vmin.f32 %v4378, 1.0
        %4382 = vst [vmem:[#allocation6] sm:$0xff] %v4379
        %4383 = vst [vmem:[#allocation6 + $0x8] sm:$0xff] %v4380
        %4384 = vst [vmem:[#allocation6 + $0x10] sm:$0xff] %v4381
        %v4385 = vld [vmem:[#allocation6] sm:$0xff]
        %v4386 = vld [vmem:[#allocation6 + $0x8] sm:$0xff]
        %v4387 = vld [vmem:[#allocation6 + $0x10] sm:$0xff]
        %v4388 = vld [vmem:[#allocation6 + $0x1] sm:$0xff]
        %v4389 = vld [vmem:[#allocation6 + $0x9] sm:$0xff]
        %v4390 = vld [vmem:[#allocation6 + $0x11] sm:$0xff]
        %v4391 = vld [vmem:[#allocation6 + $0x6] sm:$0xff]
        %v4392 = vld [vmem:[#allocation6 + $0xe] sm:$0xff]
        %v4393 = vld [vmem:[#allocation6 + $0x16] sm:$0xff]
        %v4394 = vld [vmem:[#allocation6 + $0x7] sm:$0xff]
        %v4395 = vld [vmem:[#allocation6 + $0xf] sm:$0xff]
        %v4396 = vld [vmem:[#allocation6 + $0x17] sm:$0xff]
        %v4397 = vadd.f32 %v4385, %v4388
        %v4398 = vadd.f32 %v4386, %v4389
        %v4399 = vadd.f32 %v4387, %v4390
        %v4400 = vadd.f32 %v4397, %v4391
        %v4401 = vadd.f32 %v4398, %v4392
        %v4402 = vadd.f32 %v4399, %v4393
        %v4403 = vadd.f32 %v4400, %v4394
        %v4404 = vadd.f32 %v4401, %v4395
        %v4405 = vadd.f32 %v4402, %v4396
        %v4406 = vmul.f32 %v4403, 0.25
        %v4407 = vmul.f32 %v4404, 0.25
        %v4408 = vmul.f32 %v4405, 0.25
        %v4409 = vld [vmem:[%s8] sm:$0xf]
        %v4410 = vld [vmem:[%s8 + $0x4] sm:$0xf]
        %v4411 = vld [vmem:[%s8 + $0x8] sm:$0xf]
        %v4412 = vpack.c.bf16 %v4407, %v4406
        %v4413 = vpack.c.bf16 %v4408, %v4408
        %v4417 = vunpack.c.l.b16 %v4409
        %v4418 = vunpack.c.l.b16 %v4410
        %v4419 = vunpack.c.l.b16 %v4411
        %v4420 = vpack.c.b16 %v4418, %v4417
        %v4421 = vpack.c.b16 %v4419, %v4419
        %vm4422 = vcmask 195584
        %v4424 = vsel %vm4422, %v4420, 0
        %v4427 = vsel %vm4422, %v4421, 0
        %vm4429 = vcmask 1043456
        %v4431 = vsel %vm4429, %v4413, 0
        %4433 = vmatprep.subr.bf16.mxu0 0
        %4434 = vmatpush1.bf16.msra.mxu0 %v4412
        %4435 = vmatprep.subr.bf16.mxu0 0
        %4436 = vmatpush1.bf16.msra.mxu0 %v4431
        %4437 = vmatprep.subr.bf16.mxu0 0
        %4438 = vmatpush1.bf16.msra.mxu0 0
        %4439 = vmatprep.subr.bf16.mxu0 0
        %4440 = vmatpush1.bf16.msra.mxu0 0
        %4441 = vmatprep.subr.bf16.mxu0 0
        %4442 = vmatpush1.bf16.msra.mxu0 0
        %4443 = vmatprep.subr.bf16.mxu0 0
        %4444 = vmatpush1.bf16.msra.mxu0 0
        %4445 = vmatprep.subr.bf16.mxu0 0
        %4446 = vmatpush1.bf16.msra.mxu0 0
        %4447 = vmatprep.subr.bf16.mxu0 0
        %4448 = vmatpush1.bf16.msra.mxu0 0
        %4449 = vmatprep.subr.bf16.mxu0 0
        %4450 = vmatpush1.bf16.msra.mxu0 0
        %4451 = vmatprep.subr.bf16.mxu0 0
        %4452 = vmatpush1.bf16.msra.mxu0 0
        %4453 = vmatprep.subr.bf16.mxu0 0
        %4454 = vmatpush1.bf16.msra.mxu0 0
        %4455 = vmatprep.subr.bf16.mxu0 0
        %4456 = vmatpush1.bf16.msra.mxu0 0
        %4457 = vmatprep.subr.bf16.mxu0 0
        %4458 = vmatpush1.bf16.msra.mxu0 0
        %4459 = vmatprep.subr.bf16.mxu0 0
        %4460 = vmatpush1.bf16.msra.mxu0 0
        %4461 = vmatprep.subr.bf16.mxu0 0
        %4462 = vmatpush1.bf16.msra.mxu0 0
        %4463 = vmatprep.subr.bf16.mxu0 0
        %4464 = vmatpush1.bf16.msra.mxu0 0
        %4465 = vmatprep.mubr.bf16.mxu0 0
        %4466 = vmatmul.mubr.bf16.gmra.mrb[0].mxu0 %v4424
        %v4467 = vpop.f32.mrb[0].mxu0
        %v4468 = vadd.f32 0.0, %v4467
        %v4469 = vpop.f32.mrb[0].mxu0
        %v4470 = vpop.f32.mrb[0].mxu0
        %v4471 = vadd.f32 0.0, %v4470
        %v4472 = vpop.f32.mrb[0].mxu0
        %4473 = vmatprep.mubr.bf16.mxu0 0
        %4474 = vmatmul.mubr.bf16.gmra.mrb[0].mxu0 %v4427
        %v4475 = vpop.f32.mrb[0].mxu0
        %v4476 = vadd.f32 0.0, %v4475
        %v4477 = vpop.f32.mrb[0].mxu0
        %v4478 = vpop.f32.mrb[0].mxu0
        %v4479 = vpop.f32.mrb[0].mxu0
        %4480 = vdwg.mxu0
        %v4481 = vmax.f32 %v4468, -1.0
        %v4482 = vmax.f32 %v4471, -1.0
        %v4483 = vmax.f32 %v4476, -1.0
        %v4484 = vmin.f32 %v4481, 1.0
        %v4485 = vmin.f32 %v4482, 1.0
        %v4486 = vmin.f32 %v4483, 1.0
        %v4487 = vpack.c.bf16 %v4485, %v4484
        %v4488 = vpack.c.bf16 %v4486, %v4486
        %v4491 = vunpack.c.l.b16 %v4487
        %v4492 = vunpack.c.h.b16 %v4487
        %v4493 = vunpack.c.l.b16 %v4488
        %v4494 = vpack.c.b16 %v4491, %v4491
        %v4495 = vpack.c.b16 %v4492, %v4492
        %v4496 = vpack.c.b16 %v4493, %v4493
        %4500 = vst [vmem:[#allocation7] sm:$0xf] %v4494
        %4501 = vst [vmem:[#allocation7 + $0x4] sm:$0xf] %v4495
        %4502 = vst [vmem:[#allocation7 + $0x8] sm:$0xf] %v4496
        %v4503 = vld [vmem:[#allocation7] sm:$0xf]
        %v4504 = vld [vmem:[%s4] sm:$0xf]
        %v4505 = vld [vmem:[%s4 + $0x4] sm:$0xf]
        %v4506 = vld [vmem:[%s4 + $0x8] sm:$0xf]
        %v4507 = vld [vmem:[%s4 + $0xc] sm:$0xf]
        %v4508 = vld [vmem:[%s4 + $0x10] sm:$0xf]
        %v4509 = vld [vmem:[%s4 + $0x14] sm:$0xf]
        %v4510 = vld [vmem:[%s4 + $0x18] sm:$0xf]
        %v4511 = vld [vmem:[%s4 + $0x1c] sm:$0xf]
        %v4512 = vld [vmem:[%s4 + $0x20] sm:$0xf]
        %v4513 = vld [vmem:[%s4 + $0x24] sm:$0xf]
        %v4514 = vld [vmem:[%s4 + $0x28] sm:$0xf]
        %v4515 = vld [vmem:[%s4 + $0x2c] sm:$0xf]
        %v4516 = vld [vmem:[%s4 + $0x30] sm:$0xf]
        %v4517 = vld [vmem:[%s4 + $0x34] sm:$0xf]
        %v4518 = vld [vmem:[%s4 + $0x38] sm:$0xf]
        %v4519 = vld [vmem:[%s4 + $0x3c] sm:$0xf]
        %v4520 = vld [vmem:[#allocation7 + $0x4] sm:$0x1]
        %s4521 = scalar_lea.vmem %s4, 64
        %v4522 = vld [vmem:[%s4521] sm:$0xf]
        %v4523 = vld [vmem:[%s4521 + $0x4] sm:$0xf]
        %v4524 = vld [vmem:[%s4521 + $0x8] sm:$0xf]
        %v4525 = vld [vmem:[%s4521 + $0xc] sm:$0xf]
        %v4526 = vld [vmem:[%s4521 + $0x10] sm:$0xf]
        %v4527 = vld [vmem:[%s4521 + $0x14] sm:$0xf]
        %v4528 = vld [vmem:[%s4521 + $0x18] sm:$0xf]
        %v4529 = vld [vmem:[%s4521 + $0x1c] sm:$0xf]
        %v4530 = vld [vmem:[%s4521 + $0x20] sm:$0xf]
        %v4531 = vld [vmem:[%s4521 + $0x24] sm:$0xf]
        %v4532 = vld [vmem:[%s4521 + $0x28] sm:$0xf]
        %v4533 = vld [vmem:[%s4521 + $0x2c] sm:$0xf]
        %v4534 = vld [vmem:[%s4521 + $0x30] sm:$0xf]
        %v4535 = vld [vmem:[%s4521 + $0x34] sm:$0xf]
        %v4536 = vld [vmem:[%s4521 + $0x38] sm:$0xf]
        %v4537 = vld [vmem:[%s4521 + $0x3c] sm:$0xf]
        %v4540 = vunpack.c.l.b16 %v4503
        %v4541 = vunpack.c.l.b16 %v4520
        %v4542 = vpack.c.b16 %v4541, %v4540
        %v4544 = vshrl.u32 %v4542, 16
        %v4546 = vshll.u32 %v4542, 16
        %v4548 = vrot.slane %v4546, 1
        %v4549 = vor.u32 %v4544, %v4548
        %v4567 = vunpack.c.l.b16 %v4522
        %v4568 = vunpack.c.l.b16 %v4523
        %v4569 = vunpack.c.l.b16 %v4524
        %v4570 = vunpack.c.l.b16 %v4525
        %v4571 = vunpack.c.l.b16 %v4526
        %v4572 = vunpack.c.l.b16 %v4527
        %v4573 = vunpack.c.l.b16 %v4528
        %v4574 = vunpack.c.l.b16 %v4529
        %v4575 = vunpack.c.l.b16 %v4530
        %v4576 = vunpack.c.l.b16 %v4531
        %v4577 = vunpack.c.l.b16 %v4532
        %v4578 = vunpack.c.l.b16 %v4533
        %v4579 = vunpack.c.l.b16 %v4534
        %v4580 = vunpack.c.l.b16 %v4535
        %v4581 = vunpack.c.l.b16 %v4536
        %v4582 = vunpack.c.l.b16 %v4537
        %v4583 = vpack.c.b16 %v4568, %v4567
        %v4584 = vpack.c.b16 %v4570, %v4569
        %v4585 = vpack.c.b16 %v4572, %v4571
        %v4586 = vpack.c.b16 %v4574, %v4573
        %v4587 = vpack.c.b16 %v4576, %v4575
        %v4588 = vpack.c.b16 %v4578, %v4577
        %v4589 = vpack.c.b16 %v4580, %v4579
        %v4590 = vpack.c.b16 %v4582, %v4581
        %4599 = vmatprep.subr.bf16.mxu0 0
        %4600 = vmatpush1.bf16.msra.mxu0 %v4583
        %4601 = vmatprep.subr.bf16.mxu0 0
        %4602 = vmatpush1.bf16.msra.mxu0 %v4584
        %4603 = vmatprep.subr.bf16.mxu0 0
        %4604 = vmatpush1.bf16.msra.mxu0 %v4585
        %4605 = vmatprep.subr.bf16.mxu0 0
        %4606 = vmatpush1.bf16.msra.mxu0 %v4586
        %4607 = vmatprep.subr.bf16.mxu0 0
        %4608 = vmatpush1.bf16.msra.mxu0 %v4587
        %4609 = vmatprep.subr.bf16.mxu0 0
        %4610 = vmatpush1.bf16.msra.mxu0 %v4588
        %4611 = vmatprep.subr.bf16.mxu0 0
        %4612 = vmatpush1.bf16.msra.mxu0 %v4589
        %4613 = vmatprep.subr.bf16.mxu0 0
        %4614 = vmatpush1.bf16.msra.mxu0 %v4590
        %4615 = vmatprep.subr.bf16.mxu0 0
        %4616 = vmatpush1.bf16.msra.mxu0 0
        %4617 = vmatprep.subr.bf16.mxu0 0
        %4618 = vmatpush1.bf16.msra.mxu0 0
        %4619 = vmatprep.subr.bf16.mxu0 0
        %4620 = vmatpush1.bf16.msra.mxu0 0
        %4621 = vmatprep.subr.bf16.mxu0 0
        %4622 = vmatpush1.bf16.msra.mxu0 0
        %4623 = vmatprep.subr.bf16.mxu0 0
        %4624 = vmatpush1.bf16.msra.mxu0 0
        %4625 = vmatprep.subr.bf16.mxu0 0
        %4626 = vmatpush1.bf16.msra.mxu0 0
        %4627 = vmatprep.subr.bf16.mxu0 0
        %4628 = vmatpush1.bf16.msra.mxu0 0
        %4629 = vmatprep.subr.bf16.mxu0 0
        %4630 = vmatpush1.bf16.msra.mxu0 0
        %4631 = vmatprep.mubr.bf16.mxu0 0
        %4632 = vmatmul.mubr.bf16.gmra.mrb[0].mxu0 %v4549
        %v4633 = vpop.f32.mrb[0].mxu0
        %v4634 = vadd.f32 0.0, %v4633
        %v4635 = vpop.f32.mrb[0].mxu0
        %v4636 = vpop.f32.mrb[0].mxu0
        %v4637 = vpop.f32.mrb[0].mxu0
        %4638 = vdwg.mxu0
        %v4655 = vunpack.c.l.b16 %v4504
        %v4656 = vunpack.c.l.b16 %v4505
        %v4657 = vunpack.c.l.b16 %v4506
        %v4658 = vunpack.c.l.b16 %v4507
        %v4659 = vunpack.c.l.b16 %v4508
        %v4660 = vunpack.c.l.b16 %v4509
        %v4661 = vunpack.c.l.b16 %v4510
        %v4662 = vunpack.c.l.b16 %v4511
        %v4663 = vunpack.c.l.b16 %v4512
        %v4664 = vunpack.c.l.b16 %v4513
        %v4665 = vunpack.c.l.b16 %v4514
        %v4666 = vunpack.c.l.b16 %v4515
        %v4667 = vunpack.c.l.b16 %v4516
        %v4668 = vunpack.c.l.b16 %v4517
        %v4669 = vunpack.c.l.b16 %v4518
        %v4670 = vunpack.c.l.b16 %v4519
        %v4671 = vpack.c.b16 %v4656, %v4655
        %v4672 = vpack.c.b16 %v4658, %v4657
        %v4673 = vpack.c.b16 %v4660, %v4659
        %v4674 = vpack.c.b16 %v4662, %v4661
        %v4675 = vpack.c.b16 %v4664, %v4663
        %v4676 = vpack.c.b16 %v4666, %v4665
        %v4677 = vpack.c.b16 %v4668, %v4667
        %v4678 = vpack.c.b16 %v4670, %v4669
        %4687 = vmatprep.subr.bf16.mxu0 0
        %4688 = vmatpush1.bf16.msra.mxu0 %v4671
        %4689 = vmatprep.subr.bf16.mxu0 0
        %4690 = vmatpush1.bf16.msra.mxu0 %v4672
        %4691 = vmatprep.subr.bf16.mxu0 0
        %4692 = vmatpush1.bf16.msra.mxu0 %v4673
        %4693 = vmatprep.subr.bf16.mxu0 0
        %4694 = vmatpush1.bf16.msra.mxu0 %v4674
        %4695 = vmatprep.subr.bf16.mxu0 0
        %4696 = vmatpush1.bf16.msra.mxu0 %v4675
        %4697 = vmatprep.subr.bf16.mxu0 0
        %4698 = vmatpush1.bf16.msra.mxu0 %v4676
        %4699 = vmatprep.subr.bf16.mxu0 0
        %4700 = vmatpush1.bf16.msra.mxu0 %v4677
        %4701 = vmatprep.subr.bf16.mxu0 0
        %4702 = vmatpush1.bf16.msra.mxu0 %v4678
        %4703 = vmatprep.subr.bf16.mxu0 0
        %4704 = vmatpush1.bf16.msra.mxu0 0
        %4705 = vmatprep.subr.bf16.mxu0 0
        %4706 = vmatpush1.bf16.msra.mxu0 0
        %4707 = vmatprep.subr.bf16.mxu0 0
        %4708 = vmatpush1.bf16.msra.mxu0 0
        %4709 = vmatprep.subr.bf16.mxu0 0
        %4710 = vmatpush1.bf16.msra.mxu0 0
        %4711 = vmatprep.subr.bf16.mxu0 0
        %4712 = vmatpush1.bf16.msra.mxu0 0
        %4713 = vmatprep.subr.bf16.mxu0 0
        %4714 = vmatpush1.bf16.msra.mxu0 0
        %4715 = vmatprep.subr.bf16.mxu0 0
        %4716 = vmatpush1.bf16.msra.mxu0 0
        %4717 = vmatprep.subr.bf16.mxu0 0
        %4718 = vmatpush1.bf16.msra.mxu0 0
        %4719 = vmatprep.mubr.bf16.mxu0 0
        %4720 = vmatmul.mubr.bf16.gmra.mrb[0].mxu0 %v4503
        %v4721 = vpop.f32.mrb[0].mxu0
        %v4722 = vadd.f32 %v4634, %v4721
        %v4723 = vpop.f32.mrb[0].mxu0
        %v4724 = vpop.f32.mrb[0].mxu0
        %v4725 = vpop.f32.mrb[0].mxu0
        %4726 = vdwg.mxu0
        %v4727 = vld [vmem:[#allocation7] sm:$0xe]
        %s4728 = scalar_lea.vmem %s4, 128
        %v4729 = vld [vmem:[%s4728] sm:$0xf]
        %v4730 = vld [vmem:[%s4728 + $0x4] sm:$0xf]
        %v4731 = vld [vmem:[%s4728 + $0x8] sm:$0xf]
        %v4732 = vld [vmem:[%s4728 + $0xc] sm:$0xf]
        %v4733 = vld [vmem:[%s4728 + $0x10] sm:$0xf]
        %v4734 = vld [vmem:[%s4728 + $0x14] sm:$0xf]
        %v4735 = vld [vmem:[%s4728 + $0x18] sm:$0xf]
        %v4736 = vld [vmem:[%s4728 + $0x1c] sm:$0xf]
        %v4737 = vld [vmem:[%s4728 + $0x20] sm:$0xf]
        %v4738 = vld [vmem:[%s4728 + $0x24] sm:$0xf]
        %v4739 = vld [vmem:[%s4728 + $0x28] sm:$0xf]
        %v4740 = vld [vmem:[%s4728 + $0x2c] sm:$0xf]
        %v4741 = vld [vmem:[%s4728 + $0x30] sm:$0xf]
        %v4742 = vld [vmem:[%s4728 + $0x34] sm:$0xf]
        %v4743 = vld [vmem:[%s4728 + $0x38] sm:$0xf]
        %v4744 = vld [vmem:[%s4728 + $0x3c] sm:$0xf]
        %v4746 = vunpack.c.l.b16 %v4727
        %v4747 = vpack.c.b16 %v4541, %v4746
        %v4748 = vrot.slane %v4747, 1
        %v4766 = vunpack.c.l.b16 %v4729
        %v4767 = vunpack.c.l.b16 %v4730
        %v4768 = vunpack.c.l.b16 %v4731
        %v4769 = vunpack.c.l.b16 %v4732
        %v4770 = vunpack.c.l.b16 %v4733
        %v4771 = vunpack.c.l.b16 %v4734
        %v4772 = vunpack.c.l.b16 %v4735
        %v4773 = vunpack.c.l.b16 %v4736
        %v4774 = vunpack.c.l.b16 %v4737
        %v4775 = vunpack.c.l.b16 %v4738
        %v4776 = vunpack.c.l.b16 %v4739
        %v4777 = vunpack.c.l.b16 %v4740
        %v4778 = vunpack.c.l.b16 %v4741
        %v4779 = vunpack.c.l.b16 %v4742
        %v4780 = vunpack.c.l.b16 %v4743
        %v4781 = vunpack.c.l.b16 %v4744
        %v4782 = vpack.c.b16 %v4767, %v4766
        %v4783 = vpack.c.b16 %v4769, %v4768
        %v4784 = vpack.c.b16 %v4771, %v4770
        %v4785 = vpack.c.b16 %v4773, %v4772
        %v4786 = vpack.c.b16 %v4775, %v4774
        %v4787 = vpack.c.b16 %v4777, %v4776
        %v4788 = vpack.c.b16 %v4779, %v4778
        %v4789 = vpack.c.b16 %v4781, %v4780
        %4798 = vmatprep.subr.bf16.mxu0 0
        %4799 = vmatpush1.bf16.msra.mxu0 %v4782
        %4800 = vmatprep.subr.bf16.mxu0 0
        %4801 = vmatpush1.bf16.msra.mxu0 %v4783
        %4802 = vmatprep.subr.bf16.mxu0 0
        %4803 = vmatpush1.bf16.msra.mxu0 %v4784
        %4804 = vmatprep.subr.bf16.mxu0 0
        %4805 = vmatpush1.bf16.msra.mxu0 %v4785
        %4806 = vmatprep.subr.bf16.mxu0 0
        %4807 = vmatpush1.bf16.msra.mxu0 %v4786
        %4808 = vmatprep.subr.bf16.mxu0 0
        %4809 = vmatpush1.bf16.msra.mxu0 %v4787
        %4810 = vmatprep.subr.bf16.mxu0 0
        %4811 = vmatpush1.bf16.msra.mxu0 %v4788
        %4812 = vmatprep.subr.bf16.mxu0 0
        %4813 = vmatpush1.bf16.msra.mxu0 %v4789
        %4814 = vmatprep.subr.bf16.mxu0 0
        %4815 = vmatpush1.bf16.msra.mxu0 0
        %4816 = vmatprep.subr.bf16.mxu0 0
        %4817 = vmatpush1.bf16.msra.mxu0 0
        %4818 = vmatprep.subr.bf16.mxu0 0
        %4819 = vmatpush1.bf16.msra.mxu0 0
        %4820 = vmatprep.subr.bf16.mxu0 0
        %4821 = vmatpush1.bf16.msra.mxu0 0
        %4822 = vmatprep.subr.bf16.mxu0 0
        %4823 = vmatpush1.bf16.msra.mxu0 0
        %4824 = vmatprep.subr.bf16.mxu0 0
        %4825 = vmatpush1.bf16.msra.mxu0 0
        %4826 = vmatprep.subr.bf16.mxu0 0
        %4827 = vmatpush1.bf16.msra.mxu0 0
        %4828 = vmatprep.subr.bf16.mxu0 0
        %4829 = vmatpush1.bf16.msra.mxu0 0
        %4830 = vmatprep.mubr.bf16.mxu0 0
        %4831 = vmatmul.mubr.bf16.gmra.mrb[0].mxu0 %v4748
        %v4832 = vpop.f32.mrb[0].mxu0
        %v4833 = vadd.f32 0.0, %v4832
        %v4834 = vpop.f32.mrb[0].mxu0
        %v4835 = vpop.f32.mrb[0].mxu0
        %v4836 = vpop.f32.mrb[0].mxu0
        %4837 = vdwg.mxu0
        %v4838 = vadd.f32 %v4722, %v4833
        %v4839 = vld [vmem:[#allocation7] sm:$0xc]
        %v4840 = vld [vmem:[#allocation7 + $0x4] sm:$0x3]
        %s4841 = scalar_lea.vmem %s4, 192
        %v4842 = vld [vmem:[%s4841] sm:$0xf]
        %v4843 = vld [vmem:[%s4841 + $0x4] sm:$0xf]
        %v4844 = vld [vmem:[%s4841 + $0x8] sm:$0xf]
        %v4845 = vld [vmem:[%s4841 + $0xc] sm:$0xf]
        %v4846 = vld [vmem:[%s4841 + $0x10] sm:$0xf]
        %v4847 = vld [vmem:[%s4841 + $0x14] sm:$0xf]
        %v4848 = vld [vmem:[%s4841 + $0x18] sm:$0xf]
        %v4849 = vld [vmem:[%s4841 + $0x1c] sm:$0xf]
        %v4850 = vld [vmem:[%s4841 + $0x20] sm:$0xf]
        %v4851 = vld [vmem:[%s4841 + $0x24] sm:$0xf]
        %v4852 = vld [vmem:[%s4841 + $0x28] sm:$0xf]
        %v4853 = vld [vmem:[%s4841 + $0x2c] sm:$0xf]
        %v4854 = vld [vmem:[%s4841 + $0x30] sm:$0xf]
        %v4855 = vld [vmem:[%s4841 + $0x34] sm:$0xf]
        %v4856 = vld [vmem:[%s4841 + $0x38] sm:$0xf]
        %v4857 = vld [vmem:[%s4841 + $0x3c] sm:$0xf]
        %v4860 = vunpack.c.l.b16 %v4839
        %v4861 = vunpack.c.l.b16 %v4840
        %v4862 = vpack.c.b16 %v4861, %v4860
        %v4863 = vrot.slane %v4862, 2
        %v4881 = vunpack.c.l.b16 %v4842
        %v4882 = vunpack.c.l.b16 %v4843
        %v4883 = vunpack.c.l.b16 %v4844
        %v4884 = vunpack.c.l.b16 %v4845
        %v4885 = vunpack.c.l.b16 %v4846
        %v4886 = vunpack.c.l.b16 %v4847
        %v4887 = vunpack.c.l.b16 %v4848
        %v4888 = vunpack.c.l.b16 %v4849
        %v4889 = vunpack.c.l.b16 %v4850
        %v4890 = vunpack.c.l.b16 %v4851
        %v4891 = vunpack.c.l.b16 %v4852
        %v4892 = vunpack.c.l.b16 %v4853
        %v4893 = vunpack.c.l.b16 %v4854
        %v4894 = vunpack.c.l.b16 %v4855
        %v4895 = vunpack.c.l.b16 %v4856
        %v4896 = vunpack.c.l.b16 %v4857
        %v4897 = vpack.c.b16 %v4882, %v4881
        %v4898 = vpack.c.b16 %v4884, %v4883
        %v4899 = vpack.c.b16 %v4886, %v4885
        %v4900 = vpack.c.b16 %v4888, %v4887
        %v4901 = vpack.c.b16 %v4890, %v4889
        %v4902 = vpack.c.b16 %v4892, %v4891
        %v4903 = vpack.c.b16 %v4894, %v4893
        %v4904 = vpack.c.b16 %v4896, %v4895
        %4913 = vmatprep.subr.bf16.mxu0 0
        %4914 = vmatpush1.bf16.msra.mxu0 %v4897
        %4915 = vmatprep.subr.bf16.mxu0 0
        %4916 = vmatpush1.bf16.msra.mxu0 %v4898
        %4917 = vmatprep.subr.bf16.mxu0 0
        %4918 = vmatpush1.bf16.msra.mxu0 %v4899
        %4919 = vmatprep.subr.bf16.mxu0 0
        %4920 = vmatpush1.bf16.msra.mxu0 %v4900
        %4921 = vmatprep.subr.bf16.mxu0 0
        %4922 = vmatpush1.bf16.msra.mxu0 %v4901
        %4923 = vmatprep.subr.bf16.mxu0 0
        %4924 = vmatpush1.bf16.msra.mxu0 %v4902
        %4925 = vmatprep.subr.bf16.mxu0 0
        %4926 = vmatpush1.bf16.msra.mxu0 %v4903
        %4927 = vmatprep.subr.bf16.mxu0 0
        %4928 = vmatpush1.bf16.msra.mxu0 %v4904
        %4929 = vmatprep.subr.bf16.mxu0 0
        %4930 = vmatpush1.bf16.msra.mxu0 0
        %4931 = vmatprep.subr.bf16.mxu0 0
        %4932 = vmatpush1.bf16.msra.mxu0 0
        %4933 = vmatprep.subr.bf16.mxu0 0
        %4934 = vmatpush1.bf16.msra.mxu0 0
        %4935 = vmatprep.subr.bf16.mxu0 0
        %4936 = vmatpush1.bf16.msra.mxu0 0
        %4937 = vmatprep.subr.bf16.mxu0 0
        %4938 = vmatpush1.bf16.msra.mxu0 0
        %4939 = vmatprep.subr.bf16.mxu0 0
        %4940 = vmatpush1.bf16.msra.mxu0 0
        %4941 = vmatprep.subr.bf16.mxu0 0
        %4942 = vmatpush1.bf16.msra.mxu0 0
        %4943 = vmatprep.subr.bf16.mxu0 0
        %4944 = vmatpush1.bf16.msra.mxu0 0
        %4945 = vmatprep.mubr.bf16.mxu0 0
        %4946 = vmatmul.mubr.bf16.gmra.mrb[0].mxu0 %v4863
        %v4947 = vpop.f32.mrb[0].mxu0
        %v4948 = vadd.f32 0.0, %v4947
        %v4949 = vpop.f32.mrb[0].mxu0
        %v4950 = vpop.f32.mrb[0].mxu0
        %v4951 = vpop.f32.mrb[0].mxu0
        %4952 = vdwg.mxu0
        %v4953 = vadd.f32 %v4838, %v4948
        %v4954 = vld [vmem:[#allocation7 + $0x4] sm:$0x7]
        %s4955 = scalar_lea.vmem %s4, 256
        %v4956 = vld [vmem:[%s4955] sm:$0xf]
        %v4957 = vld [vmem:[%s4955 + $0x4] sm:$0xf]
        %v4958 = vld [vmem:[%s4955 + $0x8] sm:$0xf]
        %v4959 = vld [vmem:[%s4955 + $0xc] sm:$0xf]
        %v4960 = vld [vmem:[%s4955 + $0x10] sm:$0xf]
        %v4961 = vld [vmem:[%s4955 + $0x14] sm:$0xf]
        %v4962 = vld [vmem:[%s4955 + $0x18] sm:$0xf]
        %v4963 = vld [vmem:[%s4955 + $0x1c] sm:$0xf]
        %v4964 = vld [vmem:[%s4955 + $0x20] sm:$0xf]
        %v4965 = vld [vmem:[%s4955 + $0x24] sm:$0xf]
        %v4966 = vld [vmem:[%s4955 + $0x28] sm:$0xf]
        %v4967 = vld [vmem:[%s4955 + $0x2c] sm:$0xf]
        %v4968 = vld [vmem:[%s4955 + $0x30] sm:$0xf]
        %v4969 = vld [vmem:[%s4955 + $0x34] sm:$0xf]
        %v4970 = vld [vmem:[%s4955 + $0x38] sm:$0xf]
        %v4971 = vld [vmem:[%s4955 + $0x3c] sm:$0xf]
        %v4973 = vunpack.c.l.b16 %v4954
        %v4974 = vpack.c.b16 %v4973, %v4860
        %v4976 = vshrl.u32 %v4974, 16
        %v4978 = vrot.slane %v4976, 2
        %v4979 = vshll.u32 %v4974, 16
        %v4981 = vrot.slane %v4979, 3
        %v4982 = vor.u32 %v4978, %v4981
        %v5000 = vunpack.c.l.b16 %v4956
        %v5001 = vunpack.c.l.b16 %v4957
        %v5002 = vunpack.c.l.b16 %v4958
        %v5003 = vunpack.c.l.b16 %v4959
        %v5004 = vunpack.c.l.b16 %v4960
        %v5005 = vunpack.c.l.b16 %v4961
        %v5006 = vunpack.c.l.b16 %v4962
        %v5007 = vunpack.c.l.b16 %v4963
        %v5008 = vunpack.c.l.b16 %v4964
        %v5009 = vunpack.c.l.b16 %v4965
        %v5010 = vunpack.c.l.b16 %v4966
        %v5011 = vunpack.c.l.b16 %v4967
        %v5012 = vunpack.c.l.b16 %v4968
        %v5013 = vunpack.c.l.b16 %v4969
        %v5014 = vunpack.c.l.b16 %v4970
        %v5015 = vunpack.c.l.b16 %v4971
        %v5016 = vpack.c.b16 %v5001, %v5000
        %v5017 = vpack.c.b16 %v5003, %v5002
        %v5018 = vpack.c.b16 %v5005, %v5004
        %v5019 = vpack.c.b16 %v5007, %v5006
        %v5020 = vpack.c.b16 %v5009, %v5008
        %v5021 = vpack.c.b16 %v5011, %v5010
        %v5022 = vpack.c.b16 %v5013, %v5012
        %v5023 = vpack.c.b16 %v5015, %v5014
        %5032 = vmatprep.subr.bf16.mxu0 0
        %5033 = vmatpush1.bf16.msra.mxu0 %v5016
        %5034 = vmatprep.subr.bf16.mxu0 0
        %5035 = vmatpush1.bf16.msra.mxu0 %v5017
        %5036 = vmatprep.subr.bf16.mxu0 0
        %5037 = vmatpush1.bf16.msra.mxu0 %v5018
        %5038 = vmatprep.subr.bf16.mxu0 0
        %5039 = vmatpush1.bf16.msra.mxu0 %v5019
        %5040 = vmatprep.subr.bf16.mxu0 0
        %5041 = vmatpush1.bf16.msra.mxu0 %v5020
        %5042 = vmatprep.subr.bf16.mxu0 0
        %5043 = vmatpush1.bf16.msra.mxu0 %v5021
        %5044 = vmatprep.subr.bf16.mxu0 0
        %5045 = vmatpush1.bf16.msra.mxu0 %v5022
        %5046 = vmatprep.subr.bf16.mxu0 0
        %5047 = vmatpush1.bf16.msra.mxu0 %v5023
        %5048 = vmatprep.subr.bf16.mxu0 0
        %5049 = vmatpush1.bf16.msra.mxu0 0
        %5050 = vmatprep.subr.bf16.mxu0 0
        %5051 = vmatpush1.bf16.msra.mxu0 0
        %5052 = vmatprep.subr.bf16.mxu0 0
        %5053 = vmatpush1.bf16.msra.mxu0 0
        %5054 = vmatprep.subr.bf16.mxu0 0
        %5055 = vmatpush1.bf16.msra.mxu0 0
        %5056 = vmatprep.subr.bf16.mxu0 0
        %5057 = vmatpush1.bf16.msra.mxu0 0
        %5058 = vmatprep.subr.bf16.mxu0 0
        %5059 = vmatpush1.bf16.msra.mxu0 0
        %5060 = vmatprep.subr.bf16.mxu0 0
        %5061 = vmatpush1.bf16.msra.mxu0 0
        %5062 = vmatprep.subr.bf16.mxu0 0
        %5063 = vmatpush1.bf16.msra.mxu0 0
        %5064 = vmatprep.mubr.bf16.mxu0 0
        %5065 = vmatmul.mubr.bf16.gmra.mrb[0].mxu0 %v4982
        %v5066 = vpop.f32.mrb[0].mxu0
        %v5067 = vadd.f32 0.0, %v5066
        %v5068 = vpop.f32.mrb[0].mxu0
        %v5069 = vpop.f32.mrb[0].mxu0
        %v5070 = vpop.f32.mrb[0].mxu0
        %5071 = vdwg.mxu0
        %v5072 = vadd.f32 %v4953, %v5067
        %v5073 = vld [vmem:[#allocation7] sm:$0x8]
        %s5074 = scalar_lea.vmem %s4, 320
        %v5075 = vld [vmem:[%s5074] sm:$0xf]
        %v5076 = vld [vmem:[%s5074 + $0x4] sm:$0xf]
        %v5077 = vld [vmem:[%s5074 + $0x8] sm:$0xf]
        %v5078 = vld [vmem:[%s5074 + $0xc] sm:$0xf]
        %v5079 = vld [vmem:[%s5074 + $0x10] sm:$0xf]
        %v5080 = vld [vmem:[%s5074 + $0x14] sm:$0xf]
        %v5081 = vld [vmem:[%s5074 + $0x18] sm:$0xf]
        %v5082 = vld [vmem:[%s5074 + $0x1c] sm:$0xf]
        %v5083 = vld [vmem:[%s5074 + $0x20] sm:$0xf]
        %v5084 = vld [vmem:[%s5074 + $0x24] sm:$0xf]
        %v5085 = vld [vmem:[%s5074 + $0x28] sm:$0xf]
        %v5086 = vld [vmem:[%s5074 + $0x2c] sm:$0xf]
        %v5087 = vld [vmem:[%s5074 + $0x30] sm:$0xf]
        %v5088 = vld [vmem:[%s5074 + $0x34] sm:$0xf]
        %v5089 = vld [vmem:[%s5074 + $0x38] sm:$0xf]
        %v5090 = vld [vmem:[%s5074 + $0x3c] sm:$0xf]
        %v5092 = vunpack.c.l.b16 %v5073
        %v5093 = vpack.c.b16 %v4973, %v5092
        %v5094 = vrot.slane %v5093, 3
        %v5112 = vunpack.c.l.b16 %v5075
        %v5113 = vunpack.c.l.b16 %v5076
        %v5114 = vunpack.c.l.b16 %v5077
        %v5115 = vunpack.c.l.b16 %v5078
        %v5116 = vunpack.c.l.b16 %v5079
        %v5117 = vunpack.c.l.b16 %v5080
        %v5118 = vunpack.c.l.b16 %v5081
        %v5119 = vunpack.c.l.b16 %v5082
        %v5120 = vunpack.c.l.b16 %v5083
        %v5121 = vunpack.c.l.b16 %v5084
        %v5122 = vunpack.c.l.b16 %v5085
        %v5123 = vunpack.c.l.b16 %v5086
        %v5124 = vunpack.c.l.b16 %v5087
        %v5125 = vunpack.c.l.b16 %v5088
        %v5126 = vunpack.c.l.b16 %v5089
        %v5127 = vunpack.c.l.b16 %v5090
        %v5128 = vpack.c.b16 %v5113, %v5112
        %v5129 = vpack.c.b16 %v5115, %v5114
        %v5130 = vpack.c.b16 %v5117, %v5116
        %v5131 = vpack.c.b16 %v5119, %v5118
        %v5132 = vpack.c.b16 %v5121, %v5120
        %v5133 = vpack.c.b16 %v5123, %v5122
        %v5134 = vpack.c.b16 %v5125, %v5124
        %v5135 = vpack.c.b16 %v5127, %v5126
        %5144 = vmatprep.subr.bf16.mxu0 0
        %5145 = vmatpush1.bf16.msra.mxu0 %v5128
        %5146 = vmatprep.subr.bf16.mxu0 0
        %5147 = vmatpush1.bf16.msra.mxu0 %v5129
        %5148 = vmatprep.subr.bf16.mxu0 0
        %5149 = vmatpush1.bf16.msra.mxu0 %v5130
        %5150 = vmatprep.subr.bf16.mxu0 0
        %5151 = vmatpush1.bf16.msra.mxu0 %v5131
        %5152 = vmatprep.subr.bf16.mxu0 0
        %5153 = vmatpush1.bf16.msra.mxu0 %v5132
        %5154 = vmatprep.subr.bf16.mxu0 0
        %5155 = vmatpush1.bf16.msra.mxu0 %v5133
        %5156 = vmatprep.subr.bf16.mxu0 0
        %5157 = vmatpush1.bf16.msra.mxu0 %v5134
        %5158 = vmatprep.subr.bf16.mxu0 0
        %5159 = vmatpush1.bf16.msra.mxu0 %v5135
        %5160 = vmatprep.subr.bf16.mxu0 0
        %5161 = vmatpush1.bf16.msra.mxu0 0
        %5162 = vmatprep.subr.bf16.mxu0 0
        %5163 = vmatpush1.bf16.msra.mxu0 0
        %5164 = vmatprep.subr.bf16.mxu0 0
        %5165 = vmatpush1.bf16.msra.mxu0 0
        %5166 = vmatprep.subr.bf16.mxu0 0
        %5167 = vmatpush1.bf16.msra.mxu0 0
        %5168 = vmatprep.subr.bf16.mxu0 0
        %5169 = vmatpush1.bf16.msra.mxu0 0
        %5170 = vmatprep.subr.bf16.mxu0 0
        %5171 = vmatpush1.bf16.msra.mxu0 0
        %5172 = vmatprep.subr.bf16.mxu0 0
        %5173 = vmatpush1.bf16.msra.mxu0 0
        %5174 = vmatprep.subr.bf16.mxu0 0
        %5175 = vmatpush1.bf16.msra.mxu0 0
        %5176 = vmatprep.mubr.bf16.mxu0 0
        %5177 = vmatmul.mubr.bf16.gmra.mrb[0].mxu0 %v5094
        %v5178 = vpop.f32.mrb[0].mxu0
        %v5179 = vadd.f32 0.0, %v5178
        %v5180 = vpop.f32.mrb[0].mxu0
        %v5181 = vpop.f32.mrb[0].mxu0
        %v5182 = vpop.f32.mrb[0].mxu0
        %5183 = vdwg.mxu0
        %v5184 = vadd.f32 %v5072, %v5179
        %v5185 = vld [vmem:[#allocation7 + $0x4] sm:$0xf]
        %s5186 = scalar_lea.vmem %s4, 384
        %v5187 = vld [vmem:[%s5186] sm:$0xf]
        %v5188 = vld [vmem:[%s5186 + $0x4] sm:$0xf]
        %v5189 = vld [vmem:[%s5186 + $0x8] sm:$0xf]
        %v5190 = vld [vmem:[%s5186 + $0xc] sm:$0xf]
        %v5191 = vld [vmem:[%s5186 + $0x10] sm:$0xf]
        %v5192 = vld [vmem:[%s5186 + $0x14] sm:$0xf]
        %v5193 = vld [vmem:[%s5186 + $0x18] sm:$0xf]
        %v5194 = vld [vmem:[%s5186 + $0x1c] sm:$0xf]
        %v5195 = vld [vmem:[%s5186 + $0x20] sm:$0xf]
        %v5196 = vld [vmem:[%s5186 + $0x24] sm:$0xf]
        %v5197 = vld [vmem:[%s5186 + $0x28] sm:$0xf]
        %v5198 = vld [vmem:[%s5186 + $0x2c] sm:$0xf]
        %v5199 = vld [vmem:[%s5186 + $0x30] sm:$0xf]
        %v5200 = vld [vmem:[%s5186 + $0x34] sm:$0xf]
        %v5201 = vld [vmem:[%s5186 + $0x38] sm:$0xf]
        %v5202 = vld [vmem:[%s5186 + $0x3c] sm:$0xf]
        %v5219 = vunpack.c.l.b16 %v5187
        %v5220 = vunpack.c.l.b16 %v5188
        %v5221 = vunpack.c.l.b16 %v5189
        %v5222 = vunpack.c.l.b16 %v5190
        %v5223 = vunpack.c.l.b16 %v5191
        %v5224 = vunpack.c.l.b16 %v5192
        %v5225 = vunpack.c.l.b16 %v5193
        %v5226 = vunpack.c.l.b16 %v5194
        %v5227 = vunpack.c.l.b16 %v5195
        %v5228 = vunpack.c.l.b16 %v5196
        %v5229 = vunpack.c.l.b16 %v5197
        %v5230 = vunpack.c.l.b16 %v5198
        %v5231 = vunpack.c.l.b16 %v5199
        %v5232 = vunpack.c.l.b16 %v5200
        %v5233 = vunpack.c.l.b16 %v5201
        %v5234 = vunpack.c.l.b16 %v5202
        %v5235 = vpack.c.b16 %v5220, %v5219
        %v5236 = vpack.c.b16 %v5222, %v5221
        %v5237 = vpack.c.b16 %v5224, %v5223
        %v5238 = vpack.c.b16 %v5226, %v5225
        %v5239 = vpack.c.b16 %v5228, %v5227
        %v5240 = vpack.c.b16 %v5230, %v5229
        %v5241 = vpack.c.b16 %v5232, %v5231
        %v5242 = vpack.c.b16 %v5234, %v5233
        %5251 = vmatprep.subr.bf16.mxu0 0
        %5252 = vmatpush1.bf16.msra.mxu0 %v5235
        %5253 = vmatprep.subr.bf16.mxu0 0
        %5254 = vmatpush1.bf16.msra.mxu0 %v5236
        %5255 = vmatprep.subr.bf16.mxu0 0
        %5256 = vmatpush1.bf16.msra.mxu0 %v5237
        %5257 = vmatprep.subr.bf16.mxu0 0
        %5258 = vmatpush1.bf16.msra.mxu0 %v5238
        %5259 = vmatprep.subr.bf16.mxu0 0
        %5260 = vmatpush1.bf16.msra.mxu0 %v5239
        %5261 = vmatprep.subr.bf16.mxu0 0
        %5262 = vmatpush1.bf16.msra.mxu0 %v5240
        %5263 = vmatprep.subr.bf16.mxu0 0
        %5264 = vmatpush1.bf16.msra.mxu0 %v5241
        %5265 = vmatprep.subr.bf16.mxu0 0
        %5266 = vmatpush1.bf16.msra.mxu0 %v5242
        %5267 = vmatprep.subr.bf16.mxu0 0
        %5268 = vmatpush1.bf16.msra.mxu0 0
        %5269 = vmatprep.subr.bf16.mxu0 0
        %5270 = vmatpush1.bf16.msra.mxu0 0
        %5271 = vmatprep.subr.bf16.mxu0 0
        %5272 = vmatpush1.bf16.msra.mxu0 0
        %5273 = vmatprep.subr.bf16.mxu0 0
        %5274 = vmatpush1.bf16.msra.mxu0 0
        %5275 = vmatprep.subr.bf16.mxu0 0
        %5276 = vmatpush1.bf16.msra.mxu0 0
        %5277 = vmatprep.subr.bf16.mxu0 0
        %5278 = vmatpush1.bf16.msra.mxu0 0
        %5279 = vmatprep.subr.bf16.mxu0 0
        %5280 = vmatpush1.bf16.msra.mxu0 0
        %5281 = vmatprep.subr.bf16.mxu0 0
        %5282 = vmatpush1.bf16.msra.mxu0 0
        %5283 = vmatprep.mubr.bf16.mxu0 0
        %5284 = vmatmul.mubr.bf16.gmra.mrb[0].mxu0 %v5185
        %v5285 = vpop.f32.mrb[0].mxu0
        %v5286 = vadd.f32 0.0, %v5285
        %v5287 = vpop.f32.mrb[0].mxu0
        %v5288 = vpop.f32.mrb[0].mxu0
        %v5289 = vpop.f32.mrb[0].mxu0
        %5290 = vdwg.mxu0
        %v5291 = vadd.f32 %v5184, %v5286
        %v5292 = vld [vmem:[#allocation7 + $0x4] sm:$0xf]
        %v5293 = vld [vmem:[#allocation7 + $0x8] sm:$0x1]
        %s5294 = scalar_lea.vmem %s4, 448
        %v5295 = vld [vmem:[%s5294] sm:$0xf]
        %v5296 = vld [vmem:[%s5294 + $0x4] sm:$0xf]
        %v5297 = vld [vmem:[%s5294 + $0x8] sm:$0xf]
        %v5298 = vld [vmem:[%s5294 + $0xc] sm:$0xf]
        %v5299 = vld [vmem:[%s5294 + $0x10] sm:$0xf]
        %v5300 = vld [vmem:[%s5294 + $0x14] sm:$0xf]
        %v5301 = vld [vmem:[%s5294 + $0x18] sm:$0xf]
        %v5302 = vld [vmem:[%s5294 + $0x1c] sm:$0xf]
        %v5303 = vld [vmem:[%s5294 + $0x20] sm:$0xf]
        %v5304 = vld [vmem:[%s5294 + $0x24] sm:$0xf]
        %v5305 = vld [vmem:[%s5294 + $0x28] sm:$0xf]
        %v5306 = vld [vmem:[%s5294 + $0x2c] sm:$0xf]
        %v5307 = vld [vmem:[%s5294 + $0x30] sm:$0xf]
        %v5308 = vld [vmem:[%s5294 + $0x34] sm:$0xf]
        %v5309 = vld [vmem:[%s5294 + $0x38] sm:$0xf]
        %v5310 = vld [vmem:[%s5294 + $0x3c] sm:$0xf]
        %v5313 = vunpack.c.l.b16 %v5292
        %v5314 = vunpack.c.l.b16 %v5293
        %v5315 = vpack.c.b16 %v5314, %v5313
        %v5317 = vshrl.u32 %v5315, 16
        %v5319 = vshll.u32 %v5315, 16
        %v5321 = vrot.slane %v5319, 1
        %v5322 = vor.u32 %v5317, %v5321
        %v5340 = vunpack.c.l.b16 %v5295
        %v5341 = vunpack.c.l.b16 %v5296
        %v5342 = vunpack.c.l.b16 %v5297
        %v5343 = vunpack.c.l.b16 %v5298
        %v5344 = vunpack.c.l.b16 %v5299
        %v5345 = vunpack.c.l.b16 %v5300
        %v5346 = vunpack.c.l.b16 %v5301
        %v5347 = vunpack.c.l.b16 %v5302
        %v5348 = vunpack.c.l.b16 %v5303
        %v5349 = vunpack.c.l.b16 %v5304
        %v5350 = vunpack.c.l.b16 %v5305
        %v5351 = vunpack.c.l.b16 %v5306
        %v5352 = vunpack.c.l.b16 %v5307
        %v5353 = vunpack.c.l.b16 %v5308
        %v5354 = vunpack.c.l.b16 %v5309
        %v5355 = vunpack.c.l.b16 %v5310
        %v5356 = vpack.c.b16 %v5341, %v5340
        %v5357 = vpack.c.b16 %v5343, %v5342
        %v5358 = vpack.c.b16 %v5345, %v5344
        %v5359 = vpack.c.b16 %v5347, %v5346
        %v5360 = vpack.c.b16 %v5349, %v5348
        %v5361 = vpack.c.b16 %v5351, %v5350
        %v5362 = vpack.c.b16 %v5353, %v5352
        %v5363 = vpack.c.b16 %v5355, %v5354
        %5372 = vmatprep.subr.bf16.mxu0 0
        %5373 = vmatpush1.bf16.msra.mxu0 %v5356
        %5374 = vmatprep.subr.bf16.mxu0 0
        %5375 = vmatpush1.bf16.msra.mxu0 %v5357
        %5376 = vmatprep.subr.bf16.mxu0 0
        %5377 = vmatpush1.bf16.msra.mxu0 %v5358
        %5378 = vmatprep.subr.bf16.mxu0 0
        %5379 = vmatpush1.bf16.msra.mxu0 %v5359
        %5380 = vmatprep.subr.bf16.mxu0 0
        %5381 = vmatpush1.bf16.msra.mxu0 %v5360
        %5382 = vmatprep.subr.bf16.mxu0 0
        %5383 = vmatpush1.bf16.msra.mxu0 %v5361
        %5384 = vmatprep.subr.bf16.mxu0 0
        %5385 = vmatpush1.bf16.msra.mxu0 %v5362
        %5386 = vmatprep.subr.bf16.mxu0 0
        %5387 = vmatpush1.bf16.msra.mxu0 %v5363
        %5388 = vmatprep.subr.bf16.mxu0 0
        %5389 = vmatpush1.bf16.msra.mxu0 0
        %5390 = vmatprep.subr.bf16.mxu0 0
        %5391 = vmatpush1.bf16.msra.mxu0 0
        %5392 = vmatprep.subr.bf16.mxu0 0
        %5393 = vmatpush1.bf16.msra.mxu0 0
        %5394 = vmatprep.subr.bf16.mxu0 0
        %5395 = vmatpush1.bf16.msra.mxu0 0
        %5396 = vmatprep.subr.bf16.mxu0 0
        %5397 = vmatpush1.bf16.msra.mxu0 0
        %5398 = vmatprep.subr.bf16.mxu0 0
        %5399 = vmatpush1.bf16.msra.mxu0 0
        %5400 = vmatprep.subr.bf16.mxu0 0
        %5401 = vmatpush1.bf16.msra.mxu0 0
        %5402 = vmatprep.subr.bf16.mxu0 0
        %5403 = vmatpush1.bf16.msra.mxu0 0
        %5404 = vmatprep.mubr.bf16.mxu0 0
        %5405 = vmatmul.mubr.bf16.gmra.mrb[0].mxu0 %v5322
        %v5406 = vpop.f32.mrb[0].mxu0
        %v5407 = vadd.f32 0.0, %v5406
        %v5408 = vpop.f32.mrb[0].mxu0
        %v5409 = vpop.f32.mrb[0].mxu0
        %v5410 = vpop.f32.mrb[0].mxu0
        %5411 = vdwg.mxu0
        %v5412 = vadd.f32 %v5291, %v5407
        %v5413 = vld [vmem:[#allocation7 + $0x4] sm:$0xe]
        %s5414 = scalar_lea.vmem %s4, 512
        %v5415 = vld [vmem:[%s5414] sm:$0xf]
        %v5416 = vld [vmem:[%s5414 + $0x4] sm:$0xf]
        %v5417 = vld [vmem:[%s5414 + $0x8] sm:$0xf]
        %v5418 = vld [vmem:[%s5414 + $0xc] sm:$0xf]
        %v5419 = vld [vmem:[%s5414 + $0x10] sm:$0xf]
        %v5420 = vld [vmem:[%s5414 + $0x14] sm:$0xf]
        %v5421 = vld [vmem:[%s5414 + $0x18] sm:$0xf]
        %v5422 = vld [vmem:[%s5414 + $0x1c] sm:$0xf]
        %v5423 = vld [vmem:[%s5414 + $0x20] sm:$0xf]
        %v5424 = vld [vmem:[%s5414 + $0x24] sm:$0xf]
        %v5425 = vld [vmem:[%s5414 + $0x28] sm:$0xf]
        %v5426 = vld [vmem:[%s5414 + $0x2c] sm:$0xf]
        %v5427 = vld [vmem:[%s5414 + $0x30] sm:$0xf]
        %v5428 = vld [vmem:[%s5414 + $0x34] sm:$0xf]
        %v5429 = vld [vmem:[%s5414 + $0x38] sm:$0xf]
        %v5430 = vld [vmem:[%s5414 + $0x3c] sm:$0xf]
        %v5432 = vunpack.c.l.b16 %v5413
        %v5433 = vpack.c.b16 %v5314, %v5432
        %v5434 = vrot.slane %v5433, 1
        %v5452 = vunpack.c.l.b16 %v5415
        %v5453 = vunpack.c.l.b16 %v5416
        %v5454 = vunpack.c.l.b16 %v5417
        %v5455 = vunpack.c.l.b16 %v5418
        %v5456 = vunpack.c.l.b16 %v5419
        %v5457 = vunpack.c.l.b16 %v5420
        %v5458 = vunpack.c.l.b16 %v5421
        %v5459 = vunpack.c.l.b16 %v5422
        %v5460 = vunpack.c.l.b16 %v5423
        %v5461 = vunpack.c.l.b16 %v5424
        %v5462 = vunpack.c.l.b16 %v5425
        %v5463 = vunpack.c.l.b16 %v5426
        %v5464 = vunpack.c.l.b16 %v5427
        %v5465 = vunpack.c.l.b16 %v5428
        %v5466 = vunpack.c.l.b16 %v5429
        %v5467 = vunpack.c.l.b16 %v5430
        %v5468 = vpack.c.b16 %v5453, %v5452
        %v5469 = vpack.c.b16 %v5455, %v5454
        %v5470 = vpack.c.b16 %v5457, %v5456
        %v5471 = vpack.c.b16 %v5459, %v5458
        %v5472 = vpack.c.b16 %v5461, %v5460
        %v5473 = vpack.c.b16 %v5463, %v5462
        %v5474 = vpack.c.b16 %v5465, %v5464
        %v5475 = vpack.c.b16 %v5467, %v5466
        %5484 = vmatprep.subr.bf16.mxu0 0
        %5485 = vmatpush1.bf16.msra.mxu0 %v5468
        %5486 = vmatprep.subr.bf16.mxu0 0
        %5487 = vmatpush1.bf16.msra.mxu0 %v5469
        %5488 = vmatprep.subr.bf16.mxu0 0
        %5489 = vmatpush1.bf16.msra.mxu0 %v5470
        %5490 = vmatprep.subr.bf16.mxu0 0
        %5491 = vmatpush1.bf16.msra.mxu0 %v5471
        %5492 = vmatprep.subr.bf16.mxu0 0
        %5493 = vmatpush1.bf16.msra.mxu0 %v5472
        %5494 = vmatprep.subr.bf16.mxu0 0
        %5495 = vmatpush1.bf16.msra.mxu0 %v5473
        %5496 = vmatprep.subr.bf16.mxu0 0
        %5497 = vmatpush1.bf16.msra.mxu0 %v5474
        %5498 = vmatprep.subr.bf16.mxu0 0
        %5499 = vmatpush1.bf16.msra.mxu0 %v5475
        %5500 = vmatprep.subr.bf16.mxu0 0
        %5501 = vmatpush1.bf16.msra.mxu0 0
        %5502 = vmatprep.subr.bf16.mxu0 0
        %5503 = vmatpush1.bf16.msra.mxu0 0
        %5504 = vmatprep.subr.bf16.mxu0 0
        %5505 = vmatpush1.bf16.msra.mxu0 0
        %5506 = vmatprep.subr.bf16.mxu0 0
        %5507 = vmatpush1.bf16.msra.mxu0 0
        %5508 = vmatprep.subr.bf16.mxu0 0
        %5509 = vmatpush1.bf16.msra.mxu0 0
        %5510 = vmatprep.subr.bf16.mxu0 0
        %5511 = vmatpush1.bf16.msra.mxu0 0
        %5512 = vmatprep.subr.bf16.mxu0 0
        %5513 = vmatpush1.bf16.msra.mxu0 0
        %5514 = vmatprep.subr.bf16.mxu0 0
        %5515 = vmatpush1.bf16.msra.mxu0 0
        %5516 = vmatprep.mubr.bf16.mxu0 0
        %5517 = vmatmul.mubr.bf16.gmra.mrb[0].mxu0 %v5434
        %v5518 = vpop.f32.mrb[0].mxu0
        %v5519 = vadd.f32 0.0, %v5518
        %v5520 = vpop.f32.mrb[0].mxu0
        %v5521 = vpop.f32.mrb[0].mxu0
        %v5522 = vpop.f32.mrb[0].mxu0
        %5523 = vdwg.mxu0
        %v5524 = vadd.f32 %v5412, %v5519
        %v5525 = vmax.f32 %v5524, 0.0
        %v5526 = vmax.f32 %v5525, -1.0
        %v5527 = vmin.f32 %v5526, 1.0
        %5528 = vst [vmem:[#allocation8] sm:$0xff] %v5527
        %v5529 = vld [vmem:[#allocation8] sm:$0xff]
        %v5530 = vpack.c.bf16 %v5529, %v5529
        %v5531 = vld [vmem:[%s5] sm:$0xf]
        %v5532 = vld [vmem:[%s5 + $0x4] sm:$0xf]
        %v5533 = vld [vmem:[%s5 + $0x8] sm:$0xf]
        %v5534 = vld [vmem:[%s5 + $0xc] sm:$0xf]
        %v5535 = vld [vmem:[%s5 + $0x10] sm:$0xf]
        %v5536 = vld [vmem:[%s5 + $0x14] sm:$0xf]
        %v5537 = vld [vmem:[%s5 + $0x18] sm:$0xf]
        %v5538 = vld [vmem:[%s5 + $0x1c] sm:$0xf]
        %v5539 = vld [vmem:[%s5 + $0x20] sm:$0xf]
        %v5540 = vld [vmem:[%s5 + $0x24] sm:$0xf]
        %v5541 = vld [vmem:[%s5 + $0x28] sm:$0xf]
        %v5542 = vld [vmem:[%s5 + $0x2c] sm:$0xf]
        %v5543 = vld [vmem:[%s5 + $0x30] sm:$0xf]
        %v5544 = vld [vmem:[%s5 + $0x34] sm:$0xf]
        %v5545 = vld [vmem:[%s5 + $0x38] sm:$0xf]
        %v5546 = vld [vmem:[%s5 + $0x3c] sm:$0xf]
        %s5547 = scalar_lea.vmem %s5, 64
        %v5548 = vld [vmem:[%s5547] sm:$0xf]
        %v5549 = vld [vmem:[%s5547 + $0x4] sm:$0xf]
        %v5550 = vld [vmem:[%s5547 + $0x8] sm:$0xf]
        %v5551 = vld [vmem:[%s5547 + $0xc] sm:$0xf]
        %v5552 = vld [vmem:[%s5547 + $0x10] sm:$0xf]
        %v5553 = vld [vmem:[%s5547 + $0x14] sm:$0xf]
        %v5554 = vld [vmem:[%s5547 + $0x18] sm:$0xf]
        %v5555 = vld [vmem:[%s5547 + $0x1c] sm:$0xf]
        %v5556 = vld [vmem:[%s5547 + $0x20] sm:$0xf]
        %v5557 = vld [vmem:[%s5547 + $0x24] sm:$0xf]
        %v5558 = vld [vmem:[%s5547 + $0x28] sm:$0xf]
        %v5559 = vld [vmem:[%s5547 + $0x2c] sm:$0xf]
        %v5560 = vld [vmem:[%s5547 + $0x30] sm:$0xf]
        %v5561 = vld [vmem:[%s5547 + $0x34] sm:$0xf]
        %v5562 = vld [vmem:[%s5547 + $0x38] sm:$0xf]
        %v5563 = vld [vmem:[%s5547 + $0x3c] sm:$0xf]
        %v5565 = vshrl.u32 %v5530, 16
        %v5584 = vunpack.c.l.b16 %v5548
        %v5585 = vunpack.c.l.b16 %v5549
        %v5586 = vunpack.c.l.b16 %v5550
        %v5587 = vunpack.c.l.b16 %v5551
        %v5588 = vunpack.c.l.b16 %v5552
        %v5589 = vunpack.c.l.b16 %v5553
        %v5590 = vunpack.c.l.b16 %v5554
        %v5591 = vunpack.c.l.b16 %v5555
        %v5592 = vunpack.c.l.b16 %v5556
        %v5593 = vunpack.c.l.b16 %v5557
        %v5594 = vunpack.c.l.b16 %v5558
        %v5595 = vunpack.c.l.b16 %v5559
        %v5596 = vunpack.c.l.b16 %v5560
        %v5597 = vunpack.c.l.b16 %v5561
        %v5598 = vunpack.c.l.b16 %v5562
        %v5599 = vunpack.c.l.b16 %v5563
        %v5600 = vpack.c.b16 %v5585, %v5584
        %v5601 = vpack.c.b16 %v5587, %v5586
        %v5602 = vpack.c.b16 %v5589, %v5588
        %v5603 = vpack.c.b16 %v5591, %v5590
        %v5604 = vpack.c.b16 %v5593, %v5592
        %v5605 = vpack.c.b16 %v5595, %v5594
        %v5606 = vpack.c.b16 %v5597, %v5596
        %v5607 = vpack.c.b16 %v5599, %v5598
        %5616 = vmatprep.subr.bf16.mxu0 0
        %5617 = vmatpush1.bf16.msra.mxu0 %v5600
        %5618 = vmatprep.subr.bf16.mxu0 0
        %5619 = vmatpush1.bf16.msra.mxu0 %v5601
        %5620 = vmatprep.subr.bf16.mxu0 0
        %5621 = vmatpush1.bf16.msra.mxu0 %v5602
        %5622 = vmatprep.subr.bf16.mxu0 0
        %5623 = vmatpush1.bf16.msra.mxu0 %v5603
        %5624 = vmatprep.subr.bf16.mxu0 0
        %5625 = vmatpush1.bf16.msra.mxu0 %v5604
        %5626 = vmatprep.subr.bf16.mxu0 0
        %5627 = vmatpush1.bf16.msra.mxu0 %v5605
        %5628 = vmatprep.subr.bf16.mxu0 0
        %5629 = vmatpush1.bf16.msra.mxu0 %v5606
        %5630 = vmatprep.subr.bf16.mxu0 0
        %5631 = vmatpush1.bf16.msra.mxu0 %v5607
        %5632 = vmatprep.subr.bf16.mxu0 0
        %5633 = vmatpush1.bf16.msra.mxu0 0
        %5634 = vmatprep.subr.bf16.mxu0 0
        %5635 = vmatpush1.bf16.msra.mxu0 0
        %5636 = vmatprep.subr.bf16.mxu0 0
        %5637 = vmatpush1.bf16.msra.mxu0 0
        %5638 = vmatprep.subr.bf16.mxu0 0
        %5639 = vmatpush1.bf16.msra.mxu0 0
        %5640 = vmatprep.subr.bf16.mxu0 0
        %5641 = vmatpush1.bf16.msra.mxu0 0
        %5642 = vmatprep.subr.bf16.mxu0 0
        %5643 = vmatpush1.bf16.msra.mxu0 0
        %5644 = vmatprep.subr.bf16.mxu0 0
        %5645 = vmatpush1.bf16.msra.mxu0 0
        %5646 = vmatprep.subr.bf16.mxu0 0
        %5647 = vmatpush1.bf16.msra.mxu0 0
        %5648 = vmatprep.mubr.bf16.mxu0 0
        %5649 = vmatmul.mubr.bf16.gmra.mrb[0].mxu0 %v5565
        %v5650 = vpop.f32.mrb[0].mxu0
        %v5651 = vadd.f32 0.0, %v5650
        %v5652 = vpop.f32.mrb[0].mxu0
        %v5653 = vpop.f32.mrb[0].mxu0
        %v5654 = vpop.f32.mrb[0].mxu0
        %5655 = vdwg.mxu0
        %v5672 = vunpack.c.l.b16 %v5531
        %v5673 = vunpack.c.l.b16 %v5532
        %v5674 = vunpack.c.l.b16 %v5533
        %v5675 = vunpack.c.l.b16 %v5534
        %v5676 = vunpack.c.l.b16 %v5535
        %v5677 = vunpack.c.l.b16 %v5536
        %v5678 = vunpack.c.l.b16 %v5537
        %v5679 = vunpack.c.l.b16 %v5538
        %v5680 = vunpack.c.l.b16 %v5539
        %v5681 = vunpack.c.l.b16 %v5540
        %v5682 = vunpack.c.l.b16 %v5541
        %v5683 = vunpack.c.l.b16 %v5542
        %v5684 = vunpack.c.l.b16 %v5543
        %v5685 = vunpack.c.l.b16 %v5544
        %v5686 = vunpack.c.l.b16 %v5545
        %v5687 = vunpack.c.l.b16 %v5546
        %v5688 = vpack.c.b16 %v5673, %v5672
        %v5689 = vpack.c.b16 %v5675, %v5674
        %v5690 = vpack.c.b16 %v5677, %v5676
        %v5691 = vpack.c.b16 %v5679, %v5678
        %v5692 = vpack.c.b16 %v5681, %v5680
        %v5693 = vpack.c.b16 %v5683, %v5682
        %v5694 = vpack.c.b16 %v5685, %v5684
        %v5695 = vpack.c.b16 %v5687, %v5686
        %5704 = vmatprep.subr.bf16.mxu0 0
        %5705 = vmatpush1.bf16.msra.mxu0 %v5688
        %5706 = vmatprep.subr.bf16.mxu0 0
        %5707 = vmatpush1.bf16.msra.mxu0 %v5689
        %5708 = vmatprep.subr.bf16.mxu0 0
        %5709 = vmatpush1.bf16.msra.mxu0 %v5690
        %5710 = vmatprep.subr.bf16.mxu0 0
        %5711 = vmatpush1.bf16.msra.mxu0 %v5691
        %5712 = vmatprep.subr.bf16.mxu0 0
        %5713 = vmatpush1.bf16.msra.mxu0 %v5692
        %5714 = vmatprep.subr.bf16.mxu0 0
        %5715 = vmatpush1.bf16.msra.mxu0 %v5693
        %5716 = vmatprep.subr.bf16.mxu0 0
        %5717 = vmatpush1.bf16.msra.mxu0 %v5694
        %5718 = vmatprep.subr.bf16.mxu0 0
        %5719 = vmatpush1.bf16.msra.mxu0 %v5695
        %5720 = vmatprep.subr.bf16.mxu0 0
        %5721 = vmatpush1.bf16.msra.mxu0 0
        %5722 = vmatprep.subr.bf16.mxu0 0
        %5723 = vmatpush1.bf16.msra.mxu0 0
        %5724 = vmatprep.subr.bf16.mxu0 0
        %5725 = vmatpush1.bf16.msra.mxu0 0
        %5726 = vmatprep.subr.bf16.mxu0 0
        %5727 = vmatpush1.bf16.msra.mxu0 0
        %5728 = vmatprep.subr.bf16.mxu0 0
        %5729 = vmatpush1.bf16.msra.mxu0 0
        %5730 = vmatprep.subr.bf16.mxu0 0
        %5731 = vmatpush1.bf16.msra.mxu0 0
        %5732 = vmatprep.subr.bf16.mxu0 0
        %5733 = vmatpush1.bf16.msra.mxu0 0
        %5734 = vmatprep.subr.bf16.mxu0 0
        %5735 = vmatpush1.bf16.msra.mxu0 0
        %5736 = vmatprep.mubr.bf16.mxu0 0
        %5737 = vmatmul.mubr.bf16.gmra.mrb[0].mxu0 %v5530
        %v5738 = vpop.f32.mrb[0].mxu0
        %v5739 = vadd.f32 %v5651, %v5738
        %v5740 = vpop.f32.mrb[0].mxu0
        %v5741 = vpop.f32.mrb[0].mxu0
        %v5742 = vpop.f32.mrb[0].mxu0
        %5743 = vdwg.mxu0
        %s5744 = scalar_lea.vmem %s5, 128
        %v5745 = vld [vmem:[%s5744] sm:$0xf]
        %v5746 = vld [vmem:[%s5744 + $0x4] sm:$0xf]
        %v5747 = vld [vmem:[%s5744 + $0x8] sm:$0xf]
        %v5748 = vld [vmem:[%s5744 + $0xc] sm:$0xf]
        %v5749 = vld [vmem:[%s5744 + $0x10] sm:$0xf]
        %v5750 = vld [vmem:[%s5744 + $0x14] sm:$0xf]
        %v5751 = vld [vmem:[%s5744 + $0x18] sm:$0xf]
        %v5752 = vld [vmem:[%s5744 + $0x1c] sm:$0xf]
        %v5753 = vld [vmem:[%s5744 + $0x20] sm:$0xf]
        %v5754 = vld [vmem:[%s5744 + $0x24] sm:$0xf]
        %v5755 = vld [vmem:[%s5744 + $0x28] sm:$0xf]
        %v5756 = vld [vmem:[%s5744 + $0x2c] sm:$0xf]
        %v5757 = vld [vmem:[%s5744 + $0x30] sm:$0xf]
        %v5758 = vld [vmem:[%s5744 + $0x34] sm:$0xf]
        %v5759 = vld [vmem:[%s5744 + $0x38] sm:$0xf]
        %v5760 = vld [vmem:[%s5744 + $0x3c] sm:$0xf]
        %v5762 = vrot.slane %v5530, 2
        %v5780 = vunpack.c.l.b16 %v5745
        %v5781 = vunpack.c.l.b16 %v5746
        %v5782 = vunpack.c.l.b16 %v5747
        %v5783 = vunpack.c.l.b16 %v5748
        %v5784 = vunpack.c.l.b16 %v5749
        %v5785 = vunpack.c.l.b16 %v5750
        %v5786 = vunpack.c.l.b16 %v5751
        %v5787 = vunpack.c.l.b16 %v5752
        %v5788 = vunpack.c.l.b16 %v5753
        %v5789 = vunpack.c.l.b16 %v5754
        %v5790 = vunpack.c.l.b16 %v5755
        %v5791 = vunpack.c.l.b16 %v5756
        %v5792 = vunpack.c.l.b16 %v5757
        %v5793 = vunpack.c.l.b16 %v5758
        %v5794 = vunpack.c.l.b16 %v5759
        %v5795 = vunpack.c.l.b16 %v5760
        %v5796 = vpack.c.b16 %v5781, %v5780
        %v5797 = vpack.c.b16 %v5783, %v5782
        %v5798 = vpack.c.b16 %v5785, %v5784
        %v5799 = vpack.c.b16 %v5787, %v5786
        %v5800 = vpack.c.b16 %v5789, %v5788
        %v5801 = vpack.c.b16 %v5791, %v5790
        %v5802 = vpack.c.b16 %v5793, %v5792
        %v5803 = vpack.c.b16 %v5795, %v5794
        %5812 = vmatprep.subr.bf16.mxu0 0
        %5813 = vmatpush1.bf16.msra.mxu0 %v5796
        %5814 = vmatprep.subr.bf16.mxu0 0
        %5815 = vmatpush1.bf16.msra.mxu0 %v5797
        %5816 = vmatprep.subr.bf16.mxu0 0
        %5817 = vmatpush1.bf16.msra.mxu0 %v5798
        %5818 = vmatprep.subr.bf16.mxu0 0
        %5819 = vmatpush1.bf16.msra.mxu0 %v5799
        %5820 = vmatprep.subr.bf16.mxu0 0
        %5821 = vmatpush1.bf16.msra.mxu0 %v5800
        %5822 = vmatprep.subr.bf16.mxu0 0
        %5823 = vmatpush1.bf16.msra.mxu0 %v5801
        %5824 = vmatprep.subr.bf16.mxu0 0
        %5825 = vmatpush1.bf16.msra.mxu0 %v5802
        %5826 = vmatprep.subr.bf16.mxu0 0
        %5827 = vmatpush1.bf16.msra.mxu0 %v5803
        %5828 = vmatprep.subr.bf16.mxu0 0
        %5829 = vmatpush1.bf16.msra.mxu0 0
        %5830 = vmatprep.subr.bf16.mxu0 0
        %5831 = vmatpush1.bf16.msra.mxu0 0
        %5832 = vmatprep.subr.bf16.mxu0 0
        %5833 = vmatpush1.bf16.msra.mxu0 0
        %5834 = vmatprep.subr.bf16.mxu0 0
        %5835 = vmatpush1.bf16.msra.mxu0 0
        %5836 = vmatprep.subr.bf16.mxu0 0
        %5837 = vmatpush1.bf16.msra.mxu0 0
        %5838 = vmatprep.subr.bf16.mxu0 0
        %5839 = vmatpush1.bf16.msra.mxu0 0
        %5840 = vmatprep.subr.bf16.mxu0 0
        %5841 = vmatpush1.bf16.msra.mxu0 0
        %5842 = vmatprep.subr.bf16.mxu0 0
        %5843 = vmatpush1.bf16.msra.mxu0 0
        %5844 = vmatprep.mubr.bf16.mxu0 0
        %5845 = vmatmul.mubr.bf16.gmra.mrb[0].mxu0 %v5762
        %v5846 = vpop.f32.mrb[0].mxu0
        %v5847 = vadd.f32 0.0, %v5846
        %v5848 = vpop.f32.mrb[0].mxu0
        %v5849 = vpop.f32.mrb[0].mxu0
        %v5850 = vpop.f32.mrb[0].mxu0
        %5851 = vdwg.mxu0
        %v5852 = vadd.f32 %v5739, %v5847
        %s5853 = scalar_lea.vmem %s5, 192
        %v5854 = vld [vmem:[%s5853] sm:$0xf]
        %v5855 = vld [vmem:[%s5853 + $0x4] sm:$0xf]
        %v5856 = vld [vmem:[%s5853 + $0x8] sm:$0xf]
        %v5857 = vld [vmem:[%s5853 + $0xc] sm:$0xf]
        %v5858 = vld [vmem:[%s5853 + $0x10] sm:$0xf]
        %v5859 = vld [vmem:[%s5853 + $0x14] sm:$0xf]
        %v5860 = vld [vmem:[%s5853 + $0x18] sm:$0xf]
        %v5861 = vld [vmem:[%s5853 + $0x1c] sm:$0xf]
        %v5862 = vld [vmem:[%s5853 + $0x20] sm:$0xf]
        %v5863 = vld [vmem:[%s5853 + $0x24] sm:$0xf]
        %v5864 = vld [vmem:[%s5853 + $0x28] sm:$0xf]
        %v5865 = vld [vmem:[%s5853 + $0x2c] sm:$0xf]
        %v5866 = vld [vmem:[%s5853 + $0x30] sm:$0xf]
        %v5867 = vld [vmem:[%s5853 + $0x34] sm:$0xf]
        %v5868 = vld [vmem:[%s5853 + $0x38] sm:$0xf]
        %v5869 = vld [vmem:[%s5853 + $0x3c] sm:$0xf]
        %v5870 = vrot.slane %v5565, 2
        %v5888 = vunpack.c.l.b16 %v5854
        %v5889 = vunpack.c.l.b16 %v5855
        %v5890 = vunpack.c.l.b16 %v5856
        %v5891 = vunpack.c.l.b16 %v5857
        %v5892 = vunpack.c.l.b16 %v5858
        %v5893 = vunpack.c.l.b16 %v5859
        %v5894 = vunpack.c.l.b16 %v5860
        %v5895 = vunpack.c.l.b16 %v5861
        %v5896 = vunpack.c.l.b16 %v5862
        %v5897 = vunpack.c.l.b16 %v5863
        %v5898 = vunpack.c.l.b16 %v5864
        %v5899 = vunpack.c.l.b16 %v5865
        %v5900 = vunpack.c.l.b16 %v5866
        %v5901 = vunpack.c.l.b16 %v5867
        %v5902 = vunpack.c.l.b16 %v5868
        %v5903 = vunpack.c.l.b16 %v5869
        %v5904 = vpack.c.b16 %v5889, %v5888
        %v5905 = vpack.c.b16 %v5891, %v5890
        %v5906 = vpack.c.b16 %v5893, %v5892
        %v5907 = vpack.c.b16 %v5895, %v5894
        %v5908 = vpack.c.b16 %v5897, %v5896
        %v5909 = vpack.c.b16 %v5899, %v5898
        %v5910 = vpack.c.b16 %v5901, %v5900
        %v5911 = vpack.c.b16 %v5903, %v5902
        %5920 = vmatprep.subr.bf16.mxu0 0
        %5921 = vmatpush1.bf16.msra.mxu0 %v5904
        %5922 = vmatprep.subr.bf16.mxu0 0
        %5923 = vmatpush1.bf16.msra.mxu0 %v5905
        %5924 = vmatprep.subr.bf16.mxu0 0
        %5925 = vmatpush1.bf16.msra.mxu0 %v5906
        %5926 = vmatprep.subr.bf16.mxu0 0
        %5927 = vmatpush1.bf16.msra.mxu0 %v5907
        %5928 = vmatprep.subr.bf16.mxu0 0
        %5929 = vmatpush1.bf16.msra.mxu0 %v5908
        %5930 = vmatprep.subr.bf16.mxu0 0
        %5931 = vmatpush1.bf16.msra.mxu0 %v5909
        %5932 = vmatprep.subr.bf16.mxu0 0
        %5933 = vmatpush1.bf16.msra.mxu0 %v5910
        %5934 = vmatprep.subr.bf16.mxu0 0
        %5935 = vmatpush1.bf16.msra.mxu0 %v5911
        %5936 = vmatprep.subr.bf16.mxu0 0
        %5937 = vmatpush1.bf16.msra.mxu0 0
        %5938 = vmatprep.subr.bf16.mxu0 0
        %5939 = vmatpush1.bf16.msra.mxu0 0
        %5940 = vmatprep.subr.bf16.mxu0 0
        %5941 = vmatpush1.bf16.msra.mxu0 0
        %5942 = vmatprep.subr.bf16.mxu0 0
        %5943 = vmatpush1.bf16.msra.mxu0 0
        %5944 = vmatprep.subr.bf16.mxu0 0
        %5945 = vmatpush1.bf16.msra.mxu0 0
        %5946 = vmatprep.subr.bf16.mxu0 0
        %5947 = vmatpush1.bf16.msra.mxu0 0
        %5948 = vmatprep.subr.bf16.mxu0 0
        %5949 = vmatpush1.bf16.msra.mxu0 0
        %5950 = vmatprep.subr.bf16.mxu0 0
        %5951 = vmatpush1.bf16.msra.mxu0 0
        %5952 = vmatprep.mubr.bf16.mxu0 0
        %5953 = vmatmul.mubr.bf16.gmra.mrb[0].mxu0 %v5870
        %v5954 = vpop.f32.mrb[0].mxu0
        %v5955 = vadd.f32 0.0, %v5954
        %v5956 = vpop.f32.mrb[0].mxu0
        %v5957 = vpop.f32.mrb[0].mxu0
        %v5958 = vpop.f32.mrb[0].mxu0
        %5959 = vdwg.mxu0
        %v5960 = vadd.f32 %v5852, %v5955
        %v5961 = vmax.f32 %v5960, -1.0
        %v5962 = vmin.f32 %v5961, 1.0
        %5963 = vst [vmem:[%s324] sm:$0x1] %v5962
        %s5964 = sand.u32 %s225, 1
        %s5965 = scalar_lea.sflag [#allocation10], %s5964
        %s5966 = sand.u32 %s225, 1
        %s5967 = scalar_lea.vmem [#allocation9], %s5966
        // Predicated region
        $region57: #{ai85net6_forward.1} parent=55 // pred_check
          %p5968 = pneg %p235
        $region58: #{ai85net6_forward.1} parent=55 // pred_check_branch
          %5970 = sbr.rel (%p5968) target = $region60
        $region59: #{ai85net6_forward.1} parent=55 // pred_region
          %s5972 = ssub.s32 16, 16
          %5973 = vsyncadd %s5965, %s5972
          %s5974 = smul.addr %s23, 16
          %s5975 = scalar_lea.hbm %s9, %s5974
          %s5977 = sshll.u32 %s5967, 4
          %s5978 = int_to_ptr.vmem [resolvable:$true] %s5977
          %5980 = dma.vmem_to_hbm [thread:$0]  %s5978, 16, %s5975, %s5965
        $region60: #{ai85net6_forward.1} parent=55 // pred_fallthru
          _
      $region56: #{ai85net6_forward.1} parent=5 // pred_fallthru
        _
      %p5981 = scmp.le.s32.totalorder 2, %s18
      // Predicated region
      $region61: #{ai85net6_forward.1} parent=5 // pred_check
        %p5982 = pneg %p5981
      $region62: #{ai85net6_forward.1} parent=5 // pred_check_branch
        %5984 = sbr.rel (%p5982) target = $region64
      $region63: #{ai85net6_forward.1} parent=5 // pred_region
        %s5985 = ssub.s32 %s18, 2
        // Predicated region
        $region65: #{ai85net6_forward.1} parent=63 // pred_check
          %p5986 = pneg %p241
        $region66: #{ai85net6_forward.1} parent=63 // pred_check_branch
          %5988 = sbr.rel (%p5986) target = $region68
        $region67: #{ai85net6_forward.1} parent=63 // pred_region
          %s5989 = sand.u32 %s226, 1
          %s5990 = scalar_lea.sflag [#allocation10], %s5989
          %s5991 = sand.u32 %s226, 1
          %s5992 = scalar_lea.vmem [#allocation9], %s5991
          %5993 = dma.done %s5990, 16
        $region68: #{ai85net6_forward.1} parent=63 // pred_fallthru
          _
      $region64: #{ai85net6_forward.1} parent=5 // pred_fallthru
        _
    $region6: #{ai85net6_forward.1} parent=1 // loop_footer
      %s22 = sadd.s32 1, %s18
    $region7: #{ai85net6_forward.1} parent=1 // loop_footer_branch
      %17 = sbr.rel target = $region3
    $region8: #{ai85net6_forward.1} parent=1 // loop_exit
      _
    %5994 = vsyncpa [#allocation10], 1
    %s5995 = scalar_lea.sflag [#allocation10], 1
    %5996 = vsyncpa %s5995, 1

</llo_original>
